<compile_context>
chip_gen: v7x
topology: tpu7x:2x2x1
jax: 0.10.0
libtpu: 0.0.40
codegen_flags: <defaults>
</compile_context>

<pallas_src>
import jax
import jax.numpy as jnp
from jax.experimental import pallas as pl
from jax.experimental.pallas import tpu as pltpu

EPS = 1e-5      # nn.BatchNorm2d default eps
CP = 128        # padded channel width -> lane-dense vregs / MXU tiles


# ------------------------------ fused kernel --------------------------------

def contracting_kernel(x_ref, w1_ref, g1_ref, bt1_ref, w2_ref, g2_ref, bt2_ref,
                       o_ref, h_ref, col_ref):
    # x_ref  : (N, Hp, 2, Wp, 2*Cin) bf16 -- NHWC input with the 2x2 pool window
    #          exposed (row pair on axis 2, column pair folded into last axis).
    # w*_ref : (9*CP, CP) bf16 conv weights, row index = (dy*3+dx)*CP + c_in.
    # g*/bt* : (1, CP) f32 BN gamma / beta, zero-padded.
    # o_ref  : (N*Hp*Wp, CP) f32 lane-dense output.
    # h_ref  : (N, Hp+2, Wp+2, CP) f32 zero-halo'd activation scratch (shared).
    # col_ref: (N*Hp*Wp, 9*CP) bf16 im2col scratch (shared).
    N, Hp, _, Wp, two_c = x_ref.shape
    C = two_c // 2
    P, _ = o_ref.shape

    # ---- fused 2x2 max-pool, f32 VPU math -----------------------------------
    x = x_ref[...].astype(jnp.float32)
    m = jnp.maximum(x[:, :, 0], x[:, :, 1])            # max over the row pair
    pooled = jnp.maximum(m[..., :C], m[..., C:])       # max over the column pair

    # ---- zero ONLY the 1-pixel halo border (4 strips, once for both convs) ---
    zrow = jnp.zeros((N, 1, Wp + 2, CP), jnp.float32)
    zcol = jnp.zeros((N, Hp, 1, CP), jnp.float32)
    h_ref[:, 0:1, :, :] = zrow
    h_ref[:, Hp + 1:Hp + 2, :, :] = zrow
    h_ref[:, 1:Hp + 1, 0:1, :] = zcol
    h_ref[:, 1:Hp + 1, Wp + 1:Wp + 2, :] = zcol

    # ---- lane-dense interior staging: pad channels to CP in-register --------
    cpad = jnp.zeros((N, Hp, Wp, CP - C), jnp.float32)
    h_ref[:, 1:Hp + 1, 1:Wp + 1, :] = jnp.concatenate([pooled, cpad], axis=-1)

    def conv_bn_relu(w_ref, g_ref, bt_ref):
        # Explicit im2col staging: one lane-aligned copy per tap (cast fused
        # into the copy), then one K = 9*CP bf16 MXU matmul, f32 accumulation.
        for dy in range(3):
            for dx in range(3):
                tap = dy * 3 + dx
                col_ref[:, tap * CP:(tap + 1) * CP] = (
                    h_ref[:, dy:dy + Hp, dx:dx + Wp, :]
                    .reshape(P, CP).astype(jnp.bfloat16))
        acc = jnp.dot(col_ref[...], w_ref[...],
                      preferred_element_type=jnp.float32)        # (P, CP) f32
        # Training-mode BatchNorm2d (batch stats) fused into one scale/shift.
        mean = jnp.mean(acc, axis=0, keepdims=True)
        var = jnp.mean((acc - mean) ** 2, axis=0, keepdims=True)  # biased var
        s = g_ref[...] * jax.lax.rsqrt(var + EPS)
        t = bt_ref[...] - mean * s
        return jnp.maximum(acc * s + t, 0.0)                      # ReLU

    y1 = conv_bn_relu(w1_ref, g1_ref, bt1_ref)                    # (P, CP) f32

    # Restage conv2 input into the SAME halo scratch (border is still zero;
    # padded channels of y1 are exactly 0 because gamma/beta padding is 0).
    h_ref[:, 1:Hp + 1, 1:Wp + 1, :] = y1.reshape(N, Hp, Wp, CP)

    o_ref[...] = conv_bn_relu(w2_ref, g2_ref, bt2_ref)             # dense store


# ------------------------------- host glue ----------------------------------

def _prep_weight(w):
    # (Cout, Cin, 3, 3) torch layout -> (9*CP, CP) bf16, row = (dy*3+dx)*CP + cin.
    cout, cin = w.shape[0], w.shape[1]
    wm = jnp.transpose(w, (2, 3, 1, 0)).reshape(9, cin, cout)
    wm = jnp.pad(wm, ((0, 0), (0, CP - cin), (0, CP - cout)))
    return wm.reshape(9 * CP, CP).astype(jnp.bfloat16)


def _prep_vec(v):
    return jnp.pad(v.astype(jnp.float32), (0, CP - v.shape[0])).reshape(1, CP)


def contracting_forward(x_nchw, params):
    N, Cin, H, W = x_nchw.shape
    Hp, Wp = H // 2, W // 2
    Cmid, Cout = params["w1"].shape[0], params["w2"].shape[0]
    assert H % 2 == 0 and W % 2 == 0 and max(Cin, Cmid, Cout) <= CP
    P = N * Hp * Wp

    # NCHW -> NHWC, expose the 2x2 pool window, bf16 to halve the input DMA.
    x = jnp.transpose(x_nchw, (0, 2, 3, 1))
    x5 = x.reshape(N, Hp, 2, Wp, 2 * Cin).astype(jnp.bfloat16)

    args = (
        x5,
        _prep_weight(params["w1"]), _prep_vec(params["g1"]), _prep_vec(params["beta1"]),
        _prep_weight(params["w2"]), _prep_vec(params["g2"]), _prep_vec(params["beta2"]),
    )
    # NOTE: conv biases b1/b2 are intentionally NOT passed: training-mode BN's
    # batch-mean subtraction cancels a per-channel bias exactly.

    flops = 2 * P * (9 * CP) * CP * 2                 # two K-folded 3x3 convs
    bytes_accessed = int(sum(a.size * a.dtype.itemsize for a in args)) + P * CP * 4

    y = pl.pallas_call(
        contracting_kernel,
        out_shape=jax.ShapeDtypeStruct((P, CP), jnp.float32),
        in_specs=[pl.BlockSpec(memory_space=pltpu.MemorySpace.VMEM)] * len(args),
        out_specs=pl.BlockSpec(memory_space=pltpu.MemorySpace.VMEM),
        scratch_shapes=[
            pltpu.VMEM((N, Hp + 2, Wp + 2, CP), jnp.float32),   # shared halo scratch
            pltpu.VMEM((P, 9 * CP), jnp.bfloat16),              # shared im2col scratch
        ],
        # ~0.5 MiB footprint here; re-derive per generation (cap ~48-56 MiB on
        # v7x's 64 MiB VMEM) once the gridded version lands.
        compiler_params=pltpu.CompilerParams(vmem_limit_bytes=32 * 1024 * 1024),
        cost_estimate=pl.CostEstimate(flops=flops, transcendentals=2 * CP,
                                      bytes_accessed=bytes_accessed),
    )(*args)

    y = y.reshape(N, Hp, Wp, CP)[..., :Cout]          # strip channel padding
    return jnp.transpose(y, (0, 3, 1, 2))             # back to NCHW


# --------------------------- pure-f32 reference ------------------------------

def _im2col3x3(x_nhwc):
    N, H, W, C = x_nhwc.shape
    xp = jnp.pad(x_nhwc, ((0, 0), (1, 1), (1, 1), (0, 0)))
    cols = [xp[:, dy:dy + H, dx:dx + W, :] for dy in range(3) for dx in range(3)]
    return jnp.concatenate(cols, axis=-1).reshape(N * H * W, 9 * C)


def ref_forward(x_nchw, params):
    x = jnp.transpose(x_nchw, (0, 2, 3, 1)).astype(jnp.float32)
    N, H, W, C = x.shape
    x = jnp.max(x.reshape(N, H // 2, 2, W // 2, 2, C), axis=(2, 4))

    def block(x, w, b, g, bt):
        N, H, W, C = x.shape
        Cout = w.shape[0]
        p = _im2col3x3(x)
        y = p @ jnp.transpose(w, (2, 3, 1, 0)).reshape(9 * C, Cout) + b
        m = y.mean(0, keepdims=True)
        v = ((y - m) ** 2).mean(0, keepdims=True)
        y = (y - m) / jnp.sqrt(v + EPS) * g + bt
        return jnp.maximum(y, 0.0).reshape(N, H, W, Cout)

    x = block(x, params["w1"], params["b1"], params["g1"], params["beta1"])
    x = block(x, params["w2"], params["b2"], params["g2"], params["beta2"])
    return jnp.transpose(x, (0, 3, 1, 2))


# ---------------------------------- main -------------------------------------

if __name__ == "__main__":
    N, Cin, H, W = 2, 4, 16, 16
    Cout = 8  # mid_channels == out_channels (DoubleConv default)

    key = jax.random.PRNGKey(0)
    k_x, k_w1, k_b1, k_w2, k_b2 = jax.random.split(key, 5)

    x = jax.random.normal(k_x, (N, Cin, H, W), dtype=jnp.float32)

    params = {
        "w1": 0.1 * jax.random.normal(k_w1, (Cout, Cin, 3, 3), dtype=jnp.float32),
        "b1": 0.1 * jax.random.normal(k_b1, (Cout,), dtype=jnp.float32),
        "g1": jnp.ones((Cout,), dtype=jnp.float32),      # BN gamma (fresh init)
        "beta1": jnp.zeros((Cout,), dtype=jnp.float32),  # BN beta (fresh init)
        "w2": 0.1 * jax.random.normal(k_w2, (Cout, Cout, 3, 3), dtype=jnp.float32),
        "b2": 0.1 * jax.random.normal(k_b2, (Cout,), dtype=jnp.float32),
        "g2": jnp.ones((Cout,), dtype=jnp.float32),
        "beta2": jnp.zeros((Cout,), dtype=jnp.float32),
    }

    out = jax.block_until_ready(contracting_forward(x, params))
    ref = jax.block_until_ready(ref_forward(x, params))

    assert out.shape == (N, Cout, H // 2, W // 2), out.shape
    # bf16 MXU operands vs. a pure-f32 reference; BN's 1/sigma rescaling of the
    # small-variance conv outputs amplifies bf16 rounding a bit, hence the
    # slightly wider tolerance than a pure-f32 kernel would need.
    err = float(jnp.max(jnp.abs(out - ref)))
    assert jnp.allclose(out, ref, atol=5e-2, rtol=5e-2), err

    print("KERNEL_OK")
</pallas_src>

<mosaic_0001>
module attributes {stable_mosaic.version = 11 : i64} {
  func.func @contracting_kernel(%arg0: memref<2x8x2x8x8xbf16, #tpu.memory_space<vmem>>, %arg1: memref<1152x128xbf16, #tpu.memory_space<vmem>>, %arg2: memref<1x128xf32, #tpu.memory_space<vmem>>, %arg3: memref<1x128xf32, #tpu.memory_space<vmem>>, %arg4: memref<1152x128xbf16, #tpu.memory_space<vmem>>, %arg5: memref<1x128xf32, #tpu.memory_space<vmem>>, %arg6: memref<1x128xf32, #tpu.memory_space<vmem>>, %arg7: memref<128x128xf32, #tpu.memory_space<vmem>>, %arg8: memref<2x10x10x128xf32, #tpu.memory_space<vmem>>, %arg9: memref<128x1152xbf16, #tpu.memory_space<vmem>>) attributes {dimension_semantics = [], scalar_prefetch = 0 : i64, scratch_operands = 2 : i64, tpu.core_type = #tpu.core_type<tc>} {
    %c0 = arith.constant 0 : index
    %c0_0 = arith.constant 0 : index
    %c0_1 = arith.constant 0 : index
    %c0_2 = arith.constant 0 : index
    %c0_3 = arith.constant 0 : index
    %0 = vector.load %arg0[%c0, %c0_0, %c0_1, %c0_2, %c0_3] : memref<2x8x2x8x8xbf16, #tpu.memory_space<vmem>>, vector<2x8x2x8x8xbf16>
    %1 = arith.extf %0 : vector<2x8x2x8x8xbf16> to vector<2x8x2x8x8xf32>
    %2 = vector.extract_strided_slice %1 {offsets = [0, 0, 0, 0, 0], sizes = [2, 8, 1, 8, 8], strides = [1, 1, 1, 1, 1]} : vector<2x8x2x8x8xf32> to vector<2x8x1x8x8xf32>
    %3 = vector.shape_cast %2 : vector<2x8x1x8x8xf32> to vector<2x8x8x8xf32>
    %4 = vector.extract_strided_slice %1 {offsets = [0, 0, 1, 0, 0], sizes = [2, 8, 1, 8, 8], strides = [1, 1, 1, 1, 1]} : vector<2x8x2x8x8xf32> to vector<2x8x1x8x8xf32>
    %5 = vector.shape_cast %4 : vector<2x8x1x8x8xf32> to vector<2x8x8x8xf32>
    %6 = arith.maximumf %3, %5 : vector<2x8x8x8xf32>
    %7 = vector.extract_strided_slice %6 {offsets = [0, 0, 0, 0], sizes = [2, 8, 8, 4], strides = [1, 1, 1, 1]} : vector<2x8x8x8xf32> to vector<2x8x8x4xf32>
    %8 = vector.extract_strided_slice %6 {offsets = [0, 0, 0, 4], sizes = [2, 8, 8, 4], strides = [1, 1, 1, 1]} : vector<2x8x8x8xf32> to vector<2x8x8x4xf32>
    %9 = arith.maximumf %7, %8 : vector<2x8x8x4xf32>
    %cst = arith.constant 0.000000e+00 : f32
    %10 = vector.broadcast %cst : f32 to vector<2x1x10x128xf32>
    %cst_4 = arith.constant 0.000000e+00 : f32
    %11 = vector.broadcast %cst_4 : f32 to vector<2x8x1x128xf32>
    %c0_5 = arith.constant 0 : index
    %c0_6 = arith.constant 0 : index
    %c0_7 = arith.constant 0 : index
    %c0_8 = arith.constant 0 : index
    %12 = vector.load %arg8[%c0_5, %c0_6, %c0_7, %c0_8] : memref<2x10x10x128xf32, #tpu.memory_space<vmem>>, vector<2x1x10x128xf32>
    tpu.vector_store %arg8[%c0_5, %c0_6, %c0_7, %c0_8], %10 {strides = array<i32>} : memref<2x10x10x128xf32, #tpu.memory_space<vmem>>, vector<2x1x10x128xf32>,
    %c0_9 = arith.constant 0 : index
    %c9 = arith.constant 9 : index
    %c0_10 = arith.constant 0 : index
    %c0_11 = arith.constant 0 : index
    %13 = vector.load %arg8[%c0_9, %c9, %c0_10, %c0_11] : memref<2x10x10x128xf32, #tpu.memory_space<vmem>>, vector<2x1x10x128xf32>
    tpu.vector_store %arg8[%c0_9, %c9, %c0_10, %c0_11], %10 {strides = array<i32>} : memref<2x10x10x128xf32, #tpu.memory_space<vmem>>, vector<2x1x10x128xf32>,
    %c0_12 = arith.constant 0 : index
    %c1 = arith.constant 1 : index
    %c0_13 = arith.constant 0 : index
    %c0_14 = arith.constant 0 : index
    %14 = vector.load %arg8[%c0_12, %c1, %c0_13, %c0_14] : memref<2x10x10x128xf32, #tpu.memory_space<vmem>>, vector<2x8x1x128xf32>
    tpu.vector_store %arg8[%c0_12, %c1, %c0_13, %c0_14], %11 {strides = array<i32>} : memref<2x10x10x128xf32, #tpu.memory_space<vmem>>, vector<2x8x1x128xf32>,
    %c0_15 = arith.constant 0 : index
    %c1_16 = arith.constant 1 : index
    %c9_17 = arith.constant 9 : index
    %c0_18 = arith.constant 0 : index
    %15 = vector.load %arg8[%c0_15, %c1_16, %c9_17, %c0_18] : memref<2x10x10x128xf32, #tpu.memory_space<vmem>>, vector<2x8x1x128xf32>
    tpu.vector_store %arg8[%c0_15, %c1_16, %c9_17, %c0_18], %11 {strides = array<i32>} : memref<2x10x10x128xf32, #tpu.memory_space<vmem>>, vector<2x8x1x128xf32>,
    %cst_19 = arith.constant 0.000000e+00 : f32
    %16 = vector.broadcast %cst_19 : f32 to vector<2x8x8x124xf32>
    %17 = tpu.concatenate %9, %16 in 3 : vector<2x8x8x4xf32>, vector<2x8x8x124xf32> -> vector<2x8x8x128xf32>
    %c0_20 = arith.constant 0 : index
    %c1_21 = arith.constant 1 : index
    %c1_22 = arith.constant 1 : index
    %c0_23 = arith.constant 0 : index
    %18 = vector.load %arg8[%c0_20, %c1_21, %c1_22, %c0_23] : memref<2x10x10x128xf32, #tpu.memory_space<vmem>>, vector<2x8x8x128xf32>
    tpu.vector_store %arg8[%c0_20, %c1_21, %c1_22, %c0_23], %17 {strides = array<i32>} : memref<2x10x10x128xf32, #tpu.memory_space<vmem>>, vector<2x8x8x128xf32>,
    %c0_24 = arith.constant 0 : index
    %c0_25 = arith.constant 0 : index
    %c0_26 = arith.constant 0 : index
    %c0_27 = arith.constant 0 : index
    %19 = vector.load %arg8[%c0_24, %c0_25, %c0_26, %c0_27] : memref<2x10x10x128xf32, #tpu.memory_space<vmem>>, vector<2x8x8x128xf32>
    %20 = vector.shape_cast %19 : vector<2x8x8x128xf32> to vector<128x128xf32>
    %21 = arith.truncf %20 : vector<128x128xf32> to vector<128x128xbf16>
    %c0_28 = arith.constant 0 : index
    %c0_29 = arith.constant 0 : index
    %22 = vector.load %arg9[%c0_28, %c0_29] : memref<128x1152xbf16, #tpu.memory_space<vmem>>, vector<128x128xbf16>
    tpu.vector_store %arg9[%c0_28, %c0_29], %21 {strides = array<i32>} : memref<128x1152xbf16, #tpu.memory_space<vmem>>, vector<128x128xbf16>,
    %c0_30 = arith.constant 0 : index
    %c0_31 = arith.constant 0 : index
    %c1_32 = arith.constant 1 : index
    %c0_33 = arith.constant 0 : index
    %23 = vector.load %arg8[%c0_30, %c0_31, %c1_32, %c0_33] : memref<2x10x10x128xf32, #tpu.memory_space<vmem>>, vector<2x8x8x128xf32>
    %24 = vector.shape_cast %23 : vector<2x8x8x128xf32> to vector<128x128xf32>
    %25 = arith.truncf %24 : vector<128x128xf32> to vector<128x128xbf16>
    %c0_34 = arith.constant 0 : index
    %c128 = arith.constant 128 : index
    %26 = vector.load %arg9[%c0_34, %c128] : memref<128x1152xbf16, #tpu.memory_space<vmem>>, vector<128x128xbf16>
    tpu.vector_store %arg9[%c0_34, %c128], %25 {strides = array<i32>} : memref<128x1152xbf16, #tpu.memory_space<vmem>>, vector<128x128xbf16>,
    %c0_35 = arith.constant 0 : index
    %c0_36 = arith.constant 0 : index
    %c2 = arith.constant 2 : index
    %c0_37 = arith.constant 0 : index
    %27 = vector.load %arg8[%c0_35, %c0_36, %c2, %c0_37] : memref<2x10x10x128xf32, #tpu.memory_space<vmem>>, vector<2x8x8x128xf32>
    %28 = vector.shape_cast %27 : vector<2x8x8x128xf32> to vector<128x128xf32>
    %29 = arith.truncf %28 : vector<128x128xf32> to vector<128x128xbf16>
    %c0_38 = arith.constant 0 : index
    %c256 = arith.constant 256 : index
    %30 = vector.load %arg9[%c0_38, %c256] : memref<128x1152xbf16, #tpu.memory_space<vmem>>, vector<128x128xbf16>
    tpu.vector_store %arg9[%c0_38, %c256], %29 {strides = array<i32>} : memref<128x1152xbf16, #tpu.memory_space<vmem>>, vector<128x128xbf16>,
    %c0_39 = arith.constant 0 : index
    %c1_40 = arith.constant 1 : index
    %c0_41 = arith.constant 0 : index
    %c0_42 = arith.constant 0 : index
    %31 = vector.load %arg8[%c0_39, %c1_40, %c0_41, %c0_42] : memref<2x10x10x128xf32, #tpu.memory_space<vmem>>, vector<2x8x8x128xf32>
    %32 = vector.shape_cast %31 : vector<2x8x8x128xf32> to vector<128x128xf32>
    %33 = arith.truncf %32 : vector<128x128xf32> to vector<128x128xbf16>
    %c0_43 = arith.constant 0 : index
    %c384 = arith.constant 384 : index
    %34 = vector.load %arg9[%c0_43, %c384] : memref<128x1152xbf16, #tpu.memory_space<vmem>>, vector<128x128xbf16>
    tpu.vector_store %arg9[%c0_43, %c384], %33 {strides = array<i32>} : memref<128x1152xbf16, #tpu.memory_space<vmem>>, vector<128x128xbf16>,
    %c0_44 = arith.constant 0 : index
    %c1_45 = arith.constant 1 : index
    %c1_46 = arith.constant 1 : index
    %c0_47 = arith.constant 0 : index
    %35 = vector.load %arg8[%c0_44, %c1_45, %c1_46, %c0_47] : memref<2x10x10x128xf32, #tpu.memory_space<vmem>>, vector<2x8x8x128xf32>
    %36 = vector.shape_cast %35 : vector<2x8x8x128xf32> to vector<128x128xf32>
    %37 = arith.truncf %36 : vector<128x128xf32> to vector<128x128xbf16>
    %c0_48 = arith.constant 0 : index
    %c512 = arith.constant 512 : index
    %38 = vector.load %arg9[%c0_48, %c512] : memref<128x1152xbf16, #tpu.memory_space<vmem>>, vector<128x128xbf16>
    tpu.vector_store %arg9[%c0_48, %c512], %37 {strides = array<i32>} : memref<128x1152xbf16, #tpu.memory_space<vmem>>, vector<128x128xbf16>,
    %c0_49 = arith.constant 0 : index
    %c1_50 = arith.constant 1 : index
    %c2_51 = arith.constant 2 : index
    %c0_52 = arith.constant 0 : index
    %39 = vector.load %arg8[%c0_49, %c1_50, %c2_51, %c0_52] : memref<2x10x10x128xf32, #tpu.memory_space<vmem>>, vector<2x8x8x128xf32>
    %40 = vector.shape_cast %39 : vector<2x8x8x128xf32> to vector<128x128xf32>
    %41 = arith.truncf %40 : vector<128x128xf32> to vector<128x128xbf16>
    %c0_53 = arith.constant 0 : index
    %c640 = arith.constant 640 : index
    %42 = vector.load %arg9[%c0_53, %c640] : memref<128x1152xbf16, #tpu.memory_space<vmem>>, vector<128x128xbf16>
    tpu.vector_store %arg9[%c0_53, %c640], %41 {strides = array<i32>} : memref<128x1152xbf16, #tpu.memory_space<vmem>>, vector<128x128xbf16>,
    %c0_54 = arith.constant 0 : index
    %c2_55 = arith.constant 2 : index
    %c0_56 = arith.constant 0 : index
    %c0_57 = arith.constant 0 : index
    %43 = vector.load %arg8[%c0_54, %c2_55, %c0_56, %c0_57] : memref<2x10x10x128xf32, #tpu.memory_space<vmem>>, vector<2x8x8x128xf32>
    %44 = vector.shape_cast %43 : vector<2x8x8x128xf32> to vector<128x128xf32>
    %45 = arith.truncf %44 : vector<128x128xf32> to vector<128x128xbf16>
    %c0_58 = arith.constant 0 : index
    %c768 = arith.constant 768 : index
    %46 = vector.load %arg9[%c0_58, %c768] : memref<128x1152xbf16, #tpu.memory_space<vmem>>, vector<128x128xbf16>
    tpu.vector_store %arg9[%c0_58, %c768], %45 {strides = array<i32>} : memref<128x1152xbf16, #tpu.memory_space<vmem>>, vector<128x128xbf16>,
    %c0_59 = arith.constant 0 : index
    %c2_60 = arith.constant 2 : index
    %c1_61 = arith.constant 1 : index
    %c0_62 = arith.constant 0 : index
    %47 = vector.load %arg8[%c0_59, %c2_60, %c1_61, %c0_62] : memref<2x10x10x128xf32, #tpu.memory_space<vmem>>, vector<2x8x8x128xf32>
    %48 = vector.shape_cast %47 : vector<2x8x8x128xf32> to vector<128x128xf32>
    %49 = arith.truncf %48 : vector<128x128xf32> to vector<128x128xbf16>
    %c0_63 = arith.constant 0 : index
    %c896 = arith.constant 896 : index
    %50 = vector.load %arg9[%c0_63, %c896] : memref<128x1152xbf16, #tpu.memory_space<vmem>>, vector<128x128xbf16>
    tpu.vector_store %arg9[%c0_63, %c896], %49 {strides = array<i32>} : memref<128x1152xbf16, #tpu.memory_space<vmem>>, vector<128x128xbf16>,
    %c0_64 = arith.constant 0 : index
    %c2_65 = arith.constant 2 : index
    %c2_66 = arith.constant 2 : index
    %c0_67 = arith.constant 0 : index
    %51 = vector.load %arg8[%c0_64, %c2_65, %c2_66, %c0_67] : memref<2x10x10x128xf32, #tpu.memory_space<vmem>>, vector<2x8x8x128xf32>
    %52 = vector.shape_cast %51 : vector<2x8x8x128xf32> to vector<128x128xf32>
    %53 = arith.truncf %52 : vector<128x128xf32> to vector<128x128xbf16>
    %c0_68 = arith.constant 0 : index
    %c1024 = arith.constant 1024 : index
    %54 = vector.load %arg9[%c0_68, %c1024] : memref<128x1152xbf16, #tpu.memory_space<vmem>>, vector<128x128xbf16>
    tpu.vector_store %arg9[%c0_68, %c1024], %53 {strides = array<i32>} : memref<128x1152xbf16, #tpu.memory_space<vmem>>, vector<128x128xbf16>,
    %c0_69 = arith.constant 0 : index
    %c0_70 = arith.constant 0 : index
    %55 = vector.load %arg9[%c0_69, %c0_70] : memref<128x1152xbf16, #tpu.memory_space<vmem>>, vector<128x1152xbf16>
    %c0_71 = arith.constant 0 : index
    %c0_72 = arith.constant 0 : index
    %56 = vector.load %arg1[%c0_71, %c0_72] : memref<1152x128xbf16, #tpu.memory_space<vmem>>, vector<1152x128xbf16>
    %cst_73 = arith.constant dense<0.000000e+00> : vector<128x128xf32>
    %57 = tpu.matmul %55, %56, %cst_73 {dimension_numbers = #tpu.dot_dimension_numbers<[1], [0], [0], [1], [0, 0, 1, 1], [], []>} : vector<128x1152xbf16>, vector<1152x128xbf16>, vector<128x128xf32> -> vector<128x128xf32>
    %cst_74 = arith.constant dense<0.000000e+00> : vector<128xf32>
    %58 = vector.multi_reduction <add>, %57, %cst_74 [0] : vector<128x128xf32> to vector<128xf32>
    %59 = vector.shape_cast %58 : vector<128xf32> to vector<1x128xf32>
    %cst_75 = arith.constant 1.280000e+02 : f32
    %60 = vector.broadcast %cst_75 : f32 to vector<1x128xf32>
    %61 = arith.divf %59, %60 : vector<1x128xf32>
    %62 = vector.broadcast %61 : vector<1x128xf32> to vector<128x128xf32>
    %63 = arith.subf %57, %62 : vector<128x128xf32>
    %64 = arith.mulf %63, %63 : vector<128x128xf32>
    %cst_76 = arith.constant dense<0.000000e+00> : vector<128xf32>
    %65 = vector.multi_reduction <add>, %64, %cst_76 [0] : vector<128x128xf32> to vector<128xf32>
    %66 = vector.shape_cast %65 : vector<128xf32> to vector<1x128xf32>
    %cst_77 = arith.constant 1.280000e+02 : f32
    %67 = vector.broadcast %cst_77 : f32 to vector<1x128xf32>
    %68 = arith.divf %66, %67 : vector<1x128xf32>
    %c0_78 = arith.constant 0 : index
    %c0_79 = arith.constant 0 : index
    %69 = vector.load %arg2[%c0_78, %c0_79] : memref<1x128xf32, #tpu.memory_space<vmem>>, vector<1x128xf32>
    %cst_80 = arith.constant 9.99999974E-6 : f32
    %70 = vector.broadcast %cst_80 : f32 to vector<1x128xf32>
    %71 = arith.addf %68, %70 : vector<1x128xf32>
    %72 = math.rsqrt %71 : vector<1x128xf32>
    %73 = arith.mulf %69, %72 : vector<1x128xf32>
    %c0_81 = arith.constant 0 : index
    %c0_82 = arith.constant 0 : index
    %74 = vector.load %arg3[%c0_81, %c0_82] : memref<1x128xf32, #tpu.memory_space<vmem>>, vector<1x128xf32>
    %75 = arith.mulf %61, %73 : vector<1x128xf32>
    %76 = arith.subf %74, %75 : vector<1x128xf32>
    %77 = vector.broadcast %73 : vector<1x128xf32> to vector<128x128xf32>
    %78 = arith.mulf %57, %77 : vector<128x128xf32>
    %79 = vector.broadcast %76 : vector<1x128xf32> to vector<128x128xf32>
    %80 = arith.addf %78, %79 : vector<128x128xf32>
    %cst_83 = arith.constant 0.000000e+00 : f32
    %81 = vector.broadcast %cst_83 : f32 to vector<128x128xf32>
    %82 = arith.maximumf %80, %81 : vector<128x128xf32>
    %83 = vector.shape_cast %82 : vector<128x128xf32> to vector<2x8x8x128xf32>
    %c0_84 = arith.constant 0 : index
    %c1_85 = arith.constant 1 : index
    %c1_86 = arith.constant 1 : index
    %c0_87 = arith.constant 0 : index
    %84 = vector.load %arg8[%c0_84, %c1_85, %c1_86, %c0_87] : memref<2x10x10x128xf32, #tpu.memory_space<vmem>>, vector<2x8x8x128xf32>
    tpu.vector_store %arg8[%c0_84, %c1_85, %c1_86, %c0_87], %83 {strides = array<i32>} : memref<2x10x10x128xf32, #tpu.memory_space<vmem>>, vector<2x8x8x128xf32>,
    %c0_88 = arith.constant 0 : index
    %c0_89 = arith.constant 0 : index
    %c0_90 = arith.constant 0 : index
    %c0_91 = arith.constant 0 : index
    %85 = vector.load %arg8[%c0_88, %c0_89, %c0_90, %c0_91] : memref<2x10x10x128xf32, #tpu.memory_space<vmem>>, vector<2x8x8x128xf32>
    %86 = vector.shape_cast %85 : vector<2x8x8x128xf32> to vector<128x128xf32>
    %87 = arith.truncf %86 : vector<128x128xf32> to vector<128x128xbf16>
    %c0_92 = arith.constant 0 : index
    %c0_93 = arith.constant 0 : index
    %88 = vector.load %arg9[%c0_92, %c0_93] : memref<128x1152xbf16, #tpu.memory_space<vmem>>, vector<128x128xbf16>
    tpu.vector_store %arg9[%c0_92, %c0_93], %87 {strides = array<i32>} : memref<128x1152xbf16, #tpu.memory_space<vmem>>, vector<128x128xbf16>,
    %c0_94 = arith.constant 0 : index
    %c0_95 = arith.constant 0 : index
    %c1_96 = arith.constant 1 : index
    %c0_97 = arith.constant 0 : index
    %89 = vector.load %arg8[%c0_94, %c0_95, %c1_96, %c0_97] : memref<2x10x10x128xf32, #tpu.memory_space<vmem>>, vector<2x8x8x128xf32>
    %90 = vector.shape_cast %89 : vector<2x8x8x128xf32> to vector<128x128xf32>
    %91 = arith.truncf %90 : vector<128x128xf32> to vector<128x128xbf16>
    %c0_98 = arith.constant 0 : index
    %c128_99 = arith.constant 128 : index
    %92 = vector.load %arg9[%c0_98, %c128_99] : memref<128x1152xbf16, #tpu.memory_space<vmem>>, vector<128x128xbf16>
    tpu.vector_store %arg9[%c0_98, %c128_99], %91 {strides = array<i32>} : memref<128x1152xbf16, #tpu.memory_space<vmem>>, vector<128x128xbf16>,
    %c0_100 = arith.constant 0 : index
    %c0_101 = arith.constant 0 : index
    %c2_102 = arith.constant 2 : index
    %c0_103 = arith.constant 0 : index
    %93 = vector.load %arg8[%c0_100, %c0_101, %c2_102, %c0_103] : memref<2x10x10x128xf32, #tpu.memory_space<vmem>>, vector<2x8x8x128xf32>
    %94 = vector.shape_cast %93 : vector<2x8x8x128xf32> to vector<128x128xf32>
    %95 = arith.truncf %94 : vector<128x128xf32> to vector<128x128xbf16>
    %c0_104 = arith.constant 0 : index
    %c256_105 = arith.constant 256 : index
    %96 = vector.load %arg9[%c0_104, %c256_105] : memref<128x1152xbf16, #tpu.memory_space<vmem>>, vector<128x128xbf16>
    tpu.vector_store %arg9[%c0_104, %c256_105], %95 {strides = array<i32>} : memref<128x1152xbf16, #tpu.memory_space<vmem>>, vector<128x128xbf16>,
    %c0_106 = arith.constant 0 : index
    %c1_107 = arith.constant 1 : index
    %c0_108 = arith.constant 0 : index
    %c0_109 = arith.constant 0 : index
    %97 = vector.load %arg8[%c0_106, %c1_107, %c0_108, %c0_109] : memref<2x10x10x128xf32, #tpu.memory_space<vmem>>, vector<2x8x8x128xf32>
    %98 = vector.shape_cast %97 : vector<2x8x8x128xf32> to vector<128x128xf32>
    %99 = arith.truncf %98 : vector<128x128xf32> to vector<128x128xbf16>
    %c0_110 = arith.constant 0 : index
    %c384_111 = arith.constant 384 : index
    %100 = vector.load %arg9[%c0_110, %c384_111] : memref<128x1152xbf16, #tpu.memory_space<vmem>>, vector<128x128xbf16>
    tpu.vector_store %arg9[%c0_110, %c384_111], %99 {strides = array<i32>} : memref<128x1152xbf16, #tpu.memory_space<vmem>>, vector<128x128xbf16>,
    %c0_112 = arith.constant 0 : index
    %c1_113 = arith.constant 1 : index
    %c1_114 = arith.constant 1 : index
    %c0_115 = arith.constant 0 : index
    %101 = vector.load %arg8[%c0_112, %c1_113, %c1_114, %c0_115] : memref<2x10x10x128xf32, #tpu.memory_space<vmem>>, vector<2x8x8x128xf32>
    %102 = vector.shape_cast %101 : vector<2x8x8x128xf32> to vector<128x128xf32>
    %103 = arith.truncf %102 : vector<128x128xf32> to vector<128x128xbf16>
    %c0_116 = arith.constant 0 : index
    %c512_117 = arith.constant 512 : index
    %104 = vector.load %arg9[%c0_116, %c512_117] : memref<128x1152xbf16, #tpu.memory_space<vmem>>, vector<128x128xbf16>
    tpu.vector_store %arg9[%c0_116, %c512_117], %103 {strides = array<i32>} : memref<128x1152xbf16, #tpu.memory_space<vmem>>, vector<128x128xbf16>,
    %c0_118 = arith.constant 0 : index
    %c1_119 = arith.constant 1 : index
    %c2_120 = arith.constant 2 : index
    %c0_121 = arith.constant 0 : index
    %105 = vector.load %arg8[%c0_118, %c1_119, %c2_120, %c0_121] : memref<2x10x10x128xf32, #tpu.memory_space<vmem>>, vector<2x8x8x128xf32>
    %106 = vector.shape_cast %105 : vector<2x8x8x128xf32> to vector<128x128xf32>
    %107 = arith.truncf %106 : vector<128x128xf32> to vector<128x128xbf16>
    %c0_122 = arith.constant 0 : index
    %c640_123 = arith.constant 640 : index
    %108 = vector.load %arg9[%c0_122, %c640_123] : memref<128x1152xbf16, #tpu.memory_space<vmem>>, vector<128x128xbf16>
    tpu.vector_store %arg9[%c0_122, %c640_123], %107 {strides = array<i32>} : memref<128x1152xbf16, #tpu.memory_space<vmem>>, vector<128x128xbf16>,
    %c0_124 = arith.constant 0 : index
    %c2_125 = arith.constant 2 : index
    %c0_126 = arith.constant 0 : index
    %c0_127 = arith.constant 0 : index
    %109 = vector.load %arg8[%c0_124, %c2_125, %c0_126, %c0_127] : memref<2x10x10x128xf32, #tpu.memory_space<vmem>>, vector<2x8x8x128xf32>
    %110 = vector.shape_cast %109 : vector<2x8x8x128xf32> to vector<128x128xf32>
    %111 = arith.truncf %110 : vector<128x128xf32> to vector<128x128xbf16>
    %c0_128 = arith.constant 0 : index
    %c768_129 = arith.constant 768 : index
    %112 = vector.load %arg9[%c0_128, %c768_129] : memref<128x1152xbf16, #tpu.memory_space<vmem>>, vector<128x128xbf16>
    tpu.vector_store %arg9[%c0_128, %c768_129], %111 {strides = array<i32>} : memref<128x1152xbf16, #tpu.memory_space<vmem>>, vector<128x128xbf16>,
    %c0_130 = arith.constant 0 : index
    %c2_131 = arith.constant 2 : index
    %c1_132 = arith.constant 1 : index
    %c0_133 = arith.constant 0 : index
    %113 = vector.load %arg8[%c0_130, %c2_131, %c1_132, %c0_133] : memref<2x10x10x128xf32, #tpu.memory_space<vmem>>, vector<2x8x8x128xf32>
    %114 = vector.shape_cast %113 : vector<2x8x8x128xf32> to vector<128x128xf32>
    %115 = arith.truncf %114 : vector<128x128xf32> to vector<128x128xbf16>
    %c0_134 = arith.constant 0 : index
    %c896_135 = arith.constant 896 : index
    %116 = vector.load %arg9[%c0_134, %c896_135] : memref<128x1152xbf16, #tpu.memory_space<vmem>>, vector<128x128xbf16>
    tpu.vector_store %arg9[%c0_134, %c896_135], %115 {strides = array<i32>} : memref<128x1152xbf16, #tpu.memory_space<vmem>>, vector<128x128xbf16>,
    %c0_136 = arith.constant 0 : index
    %c2_137 = arith.constant 2 : index
    %c2_138 = arith.constant 2 : index
    %c0_139 = arith.constant 0 : index
    %117 = vector.load %arg8[%c0_136, %c2_137, %c2_138, %c0_139] : memref<2x10x10x128xf32, #tpu.memory_space<vmem>>, vector<2x8x8x128xf32>
    %118 = vector.shape_cast %117 : vector<2x8x8x128xf32> to vector<128x128xf32>
    %119 = arith.truncf %118 : vector<128x128xf32> to vector<128x128xbf16>
    %c0_140 = arith.constant 0 : index
    %c1024_141 = arith.constant 1024 : index
    %120 = vector.load %arg9[%c0_140, %c1024_141] : memref<128x1152xbf16, #tpu.memory_space<vmem>>, vector<128x128xbf16>
    tpu.vector_store %arg9[%c0_140, %c1024_141], %119 {strides = array<i32>} : memref<128x1152xbf16, #tpu.memory_space<vmem>>, vector<128x128xbf16>,
    %c0_142 = arith.constant 0 : index
    %c0_143 = arith.constant 0 : index
    %121 = vector.load %arg9[%c0_142, %c0_143] : memref<128x1152xbf16, #tpu.memory_space<vmem>>, vector<128x1152xbf16>
    %c0_144 = arith.constant 0 : index
    %c0_145 = arith.constant 0 : index
    %122 = vector.load %arg4[%c0_144, %c0_145] : memref<1152x128xbf16, #tpu.memory_space<vmem>>, vector<1152x128xbf16>
    %cst_146 = arith.constant dense<0.000000e+00> : vector<128x128xf32>
    %123 = tpu.matmul %121, %122, %cst_146 {dimension_numbers = #tpu.dot_dimension_numbers<[1], [0], [0], [1], [0, 0, 1, 1], [], []>} : vector<128x1152xbf16>, vector<1152x128xbf16>, vector<128x128xf32> -> vector<128x128xf32>
    %cst_147 = arith.constant dense<0.000000e+00> : vector<128xf32>
    %124 = vector.multi_reduction <add>, %123, %cst_147 [0] : vector<128x128xf32> to vector<128xf32>
    %125 = vector.shape_cast %124 : vector<128xf32> to vector<1x128xf32>
    %cst_148 = arith.constant 1.280000e+02 : f32
    %126 = vector.broadcast %cst_148 : f32 to vector<1x128xf32>
    %127 = arith.divf %125, %126 : vector<1x128xf32>
    %128 = vector.broadcast %127 : vector<1x128xf32> to vector<128x128xf32>
    %129 = arith.subf %123, %128 : vector<128x128xf32>
    %130 = arith.mulf %129, %129 : vector<128x128xf32>
    %cst_149 = arith.constant dense<0.000000e+00> : vector<128xf32>
    %131 = vector.multi_reduction <add>, %130, %cst_149 [0] : vector<128x128xf32> to vector<128xf32>
    %132 = vector.shape_cast %131 : vector<128xf32> to vector<1x128xf32>
    %cst_150 = arith.constant 1.280000e+02 : f32
    %133 = vector.broadcast %cst_150 : f32 to vector<1x128xf32>
    %134 = arith.divf %132, %133 : vector<1x128xf32>
    %c0_151 = arith.constant 0 : index
    %c0_152 = arith.constant 0 : index
    %135 = vector.load %arg5[%c0_151, %c0_152] : memref<1x128xf32, #tpu.memory_space<vmem>>, vector<1x128xf32>
    %cst_153 = arith.constant 9.99999974E-6 : f32
    %136 = vector.broadcast %cst_153 : f32 to vector<1x128xf32>
    %137 = arith.addf %134, %136 : vector<1x128xf32>
    %138 = math.rsqrt %137 : vector<1x128xf32>
    %139 = arith.mulf %135, %138 : vector<1x128xf32>
    %c0_154 = arith.constant 0 : index
    %c0_155 = arith.constant 0 : index
    %140 = vector.load %arg6[%c0_154, %c0_155] : memref<1x128xf32, #tpu.memory_space<vmem>>, vector<1x128xf32>
    %141 = arith.mulf %127, %139 : vector<1x128xf32>
    %142 = arith.subf %140, %141 : vector<1x128xf32>
    %143 = vector.broadcast %139 : vector<1x128xf32> to vector<128x128xf32>
    %144 = arith.mulf %123, %143 : vector<128x128xf32>
    %145 = vector.broadcast %142 : vector<1x128xf32> to vector<128x128xf32>
    %146 = arith.addf %144, %145 : vector<128x128xf32>
    %cst_156 = arith.constant 0.000000e+00 : f32
    %147 = vector.broadcast %cst_156 : f32 to vector<128x128xf32>
    %148 = arith.maximumf %146, %147 : vector<128x128xf32>
    %c0_157 = arith.constant 0 : index
    %c0_158 = arith.constant 0 : index
    %149 = vector.load %arg7[%c0_157, %c0_158] : memref<128x128xf32, #tpu.memory_space<vmem>>, vector<128x128xf32>
    tpu.vector_store %arg7[%c0_157, %c0_158], %148 {strides = array<i32>} : memref<128x128xf32, #tpu.memory_space<vmem>>, vector<128x128xf32>,
    return
  }
}

</mosaic_0001>

<llo_original>
// kernel: tpu_custom_call.1
$region0: #{tpu_custom_call.1}
  #allocation0 [shape = 'u32[]', space=smem, size = 0x4, offset = 0x4, fixed_abs, tag = 'smem constant byte address 0x4 - core index']
  #allocation1 [shape = 'u32[144,128]{1,0:T(1,128)}', space=vmem, size = 0x12000, scoped, tag = 'internal scratch']
  #allocation2 [shape = 'f32[2,10,10,128]{3,2,1,0:T(8,128)}', space=vmem, size = 0x28000, scoped, tag = 'scratch operand']
  #allocation3 [shape = 'bf16[128,1152]{1,0:T(16,128)(2,1)}', space=vmem, size = 0x48000, scoped, tag = 'scratch operand']
  %s0 = inlined_call_operand.hbm [shape: bf16[2,8,2,8,8], index: 0, kind: input, shape index: {}]
  %s1 = inlined_call_operand.hbm [shape: bf16[1152,128], index: 1, kind: input, shape index: {}]
  %s2 = inlined_call_operand.vmem [shape: f32[1,128], index: 2, kind: input, shape index: {}]
  %s3 = inlined_call_operand.vmem [shape: f32[1,128], index: 3, kind: input, shape index: {}]
  %s4 = inlined_call_operand.hbm [shape: bf16[1152,128], index: 4, kind: input, shape index: {}]
  %s5 = inlined_call_operand.vmem [shape: f32[1,128], index: 5, kind: input, shape index: {}]
  %s6 = inlined_call_operand.vmem [shape: f32[1,128], index: 6, kind: input, shape index: {}]
  %s7 = inlined_call_operand.hbm [shape: f32[128,128], index: 7, kind: output, shape index: {}]
  %s8 = sld [smem:[#allocation0]]
  $region50: #{tpu_custom_call.1} parent=0
    _
  %s10 = ssub.s32 1, %s8
  %s11 = scalar_select 0, %s10, %s8
  $region1: #{tpu_custom_call.1} parent=0
    #allocation4 [shape = 'u8[65536]{0}', space=vmem, size = 0x10000, scoped, tag = 'input window, operand 0, single buffered']
    #allocation5 [shape = 's32[1]{0}', space=sflag, size = 0x4, scoped, tag = 'scoped memory for tpu_custom_call.1']
    #allocation6 [shape = 's32[1]{0}', space=sflag, size = 0x4, scoped, tag = 'scoped memory for tpu_custom_call.1']
    #allocation7 [shape = 'u8[294912]{0}', space=vmem, size = 0x48000, scoped, tag = 'input window, operand 1, single buffered']
    #allocation8 [shape = 's32[1]{0}', space=sflag, size = 0x4, scoped, tag = 'scoped memory for tpu_custom_call.1']
    #allocation9 [shape = 'u8[294912]{0}', space=vmem, size = 0x48000, scoped, tag = 'input window, operand 4, single buffered']
    #allocation10 [shape = 'u8[65536]{0}', space=vmem, size = 0x10000, scoped, tag = 'output window, operand 0, single buffered']
    %12 = vsyncpa [#allocation5], 0
    %13 = vsyncpa [#allocation8], 0
    %14 = vsyncpa [#allocation6], 0
    // Predicated region
    $region2: #{tpu_custom_call.1} parent=1 // pred_check
      _
    $region3: #{tpu_custom_call.1} parent=1 // pred_check_branch
      %16 = sbr.rel (0) target = $region5
    $region4: #{tpu_custom_call.1} parent=1 // pred_region
      %s18 = ssub.s32 2048, 2048
      %19 = vsyncadd [#allocation5], %s18
      %s20 = sshll.u32 [#allocation4], 4
      %s21 = int_to_ptr.vmem [resolvable:$true] %s20
      %26 = dma.hbm_to_vmem [thread:$0]  %s0, 2048, %s21, [#allocation5], 64, 64, 4
    $region5: #{tpu_custom_call.1} parent=1 // pred_fallthru
      _
    // Predicated region
    $region6: #{tpu_custom_call.1} parent=1 // pred_check
      _
    $region7: #{tpu_custom_call.1} parent=1 // pred_check_branch
      %28 = sbr.rel (0) target = $region9
    $region8: #{tpu_custom_call.1} parent=1 // pred_region
      %s30 = ssub.s32 9216, 9216
      %31 = vsyncadd [#allocation8], %s30
      %s32 = sshll.u32 [#allocation7], 4
      %s33 = int_to_ptr.vmem [resolvable:$true] %s32
      %38 = dma.hbm_to_vmem [thread:$0]  %s1, 9216, %s33, [#allocation8], 64, 64, 4
    $region9: #{tpu_custom_call.1} parent=1 // pred_fallthru
      _
    // Predicated region
    $region10: #{tpu_custom_call.1} parent=1 // pred_check
      _
    $region11: #{tpu_custom_call.1} parent=1 // pred_check_branch
      %40 = sbr.rel (0) target = $region13
    $region12: #{tpu_custom_call.1} parent=1 // pred_region
      _
    $region13: #{tpu_custom_call.1} parent=1 // pred_fallthru
      _
    // Predicated region
    $region14: #{tpu_custom_call.1} parent=1 // pred_check
      _
    $region15: #{tpu_custom_call.1} parent=1 // pred_check_branch
      %42 = sbr.rel (0) target = $region17
    $region16: #{tpu_custom_call.1} parent=1 // pred_region
      _
    $region17: #{tpu_custom_call.1} parent=1 // pred_fallthru
      _
    // Predicated region
    $region18: #{tpu_custom_call.1} parent=1 // pred_check
      _
    $region19: #{tpu_custom_call.1} parent=1 // pred_check_branch
      %44 = sbr.rel (0) target = $region21
    $region20: #{tpu_custom_call.1} parent=1 // pred_region
      %s46 = ssub.s32 9216, 9216
      %47 = vsyncadd [#allocation8], %s46
      %s48 = sshll.u32 [#allocation9], 4
      %s49 = int_to_ptr.vmem [resolvable:$true] %s48
      %54 = dma.hbm_to_vmem [thread:$0]  %s4, 9216, %s49, [#allocation8], 64, 64, 4
    $region21: #{tpu_custom_call.1} parent=1 // pred_fallthru
      _
    // Predicated region
    $region22: #{tpu_custom_call.1} parent=1 // pred_check
      _
    $region23: #{tpu_custom_call.1} parent=1 // pred_check_branch
      %56 = sbr.rel (0) target = $region25
    $region24: #{tpu_custom_call.1} parent=1 // pred_region
      _
    $region25: #{tpu_custom_call.1} parent=1 // pred_fallthru
      _
    // Predicated region
    $region26: #{tpu_custom_call.1} parent=1 // pred_check
      _
    $region27: #{tpu_custom_call.1} parent=1 // pred_check_branch
      %58 = sbr.rel (0) target = $region29
    $region28: #{tpu_custom_call.1} parent=1 // pred_region
      _
    $region29: #{tpu_custom_call.1} parent=1 // pred_fallthru
      _
    // Predicated region
    $region30: #{tpu_custom_call.1} parent=1 // pred_check
      _
    $region31: #{tpu_custom_call.1} parent=1 // pred_check_branch
      %60 = sbr.rel (0) target = $region33
    $region32: #{tpu_custom_call.1} parent=1 // pred_region
      %61 = dma.done [#allocation5], 2048
    $region33: #{tpu_custom_call.1} parent=1 // pred_fallthru
      _
    // Predicated region
    $region34: #{tpu_custom_call.1} parent=1 // pred_check
      _
    $region35: #{tpu_custom_call.1} parent=1 // pred_check_branch
      %63 = sbr.rel (0) target = $region37
    $region36: #{tpu_custom_call.1} parent=1 // pred_region
      %64 = dma.done [#allocation8], 9216
    $region37: #{tpu_custom_call.1} parent=1 // pred_fallthru
      _
    // Predicated region
    $region38: #{tpu_custom_call.1} parent=1 // pred_check
      _
    $region39: #{tpu_custom_call.1} parent=1 // pred_check_branch
      %66 = sbr.rel (0) target = $region41
    $region40: #{tpu_custom_call.1} parent=1 // pred_region
      %67 = dma.done [#allocation8], 9216
    $region41: #{tpu_custom_call.1} parent=1 // pred_fallthru
      _
    %v69 = vld [vmem:[#allocation4] sm:$0xf]
    %v70 = vld [vmem:[#allocation4 + $0x4] sm:$0xf]
    %v71 = vld [vmem:[#allocation4 + $0x8] sm:$0xf]
    %v72 = vld [vmem:[#allocation4 + $0xc] sm:$0xf]
    %v73 = vld [vmem:[#allocation4 + $0x10] sm:$0xf]
    %v74 = vld [vmem:[#allocation4 + $0x14] sm:$0xf]
    %v75 = vld [vmem:[#allocation4 + $0x18] sm:$0xf]
    %v76 = vld [vmem:[#allocation4 + $0x1c] sm:$0xf]
    %v77 = vld [vmem:[#allocation4 + $0x20] sm:$0xf]
    %v78 = vld [vmem:[#allocation4 + $0x24] sm:$0xf]
    %v79 = vld [vmem:[#allocation4 + $0x28] sm:$0xf]
    %v80 = vld [vmem:[#allocation4 + $0x2c] sm:$0xf]
    %v81 = vld [vmem:[#allocation4 + $0x30] sm:$0xf]
    %v82 = vld [vmem:[#allocation4 + $0x34] sm:$0xf]
    %v83 = vld [vmem:[#allocation4 + $0x38] sm:$0xf]
    %v84 = vld [vmem:[#allocation4 + $0x3c] sm:$0xf]
    %v85 = vld [vmem:[#allocation4 + $0x40] sm:$0xf]
    %v86 = vld [vmem:[#allocation4 + $0x44] sm:$0xf]
    %v87 = vld [vmem:[#allocation4 + $0x48] sm:$0xf]
    %v88 = vld [vmem:[#allocation4 + $0x4c] sm:$0xf]
    %v89 = vld [vmem:[#allocation4 + $0x50] sm:$0xf]
    %v90 = vld [vmem:[#allocation4 + $0x54] sm:$0xf]
    %v91 = vld [vmem:[#allocation4 + $0x58] sm:$0xf]
    %v92 = vld [vmem:[#allocation4 + $0x5c] sm:$0xf]
    %v93 = vld [vmem:[#allocation4 + $0x60] sm:$0xf]
    %v94 = vld [vmem:[#allocation4 + $0x64] sm:$0xf]
    %v95 = vld [vmem:[#allocation4 + $0x68] sm:$0xf]
    %v96 = vld [vmem:[#allocation4 + $0x6c] sm:$0xf]
    %v97 = vld [vmem:[#allocation4 + $0x70] sm:$0xf]
    %v98 = vld [vmem:[#allocation4 + $0x74] sm:$0xf]
    %v99 = vld [vmem:[#allocation4 + $0x78] sm:$0xf]
    %v100 = vld [vmem:[#allocation4 + $0x7c] sm:$0xf]
    %v101 = vunpack.c.l.bf16 %v69
    %v102 = vunpack.c.l.bf16 %v70
    %v103 = vunpack.c.l.bf16 %v71
    %v104 = vunpack.c.l.bf16 %v72
    %v105 = vunpack.c.l.bf16 %v73
    %v106 = vunpack.c.l.bf16 %v74
    %v107 = vunpack.c.l.bf16 %v75
    %v108 = vunpack.c.l.bf16 %v76
    %v109 = vunpack.c.l.bf16 %v77
    %v110 = vunpack.c.l.bf16 %v78
    %v111 = vunpack.c.l.bf16 %v79
    %v112 = vunpack.c.l.bf16 %v80
    %v113 = vunpack.c.l.bf16 %v81
    %v114 = vunpack.c.l.bf16 %v82
    %v115 = vunpack.c.l.bf16 %v83
    %v116 = vunpack.c.l.bf16 %v84
    %v117 = vunpack.c.l.bf16 %v85
    %v118 = vunpack.c.l.bf16 %v86
    %v119 = vunpack.c.l.bf16 %v87
    %v120 = vunpack.c.l.bf16 %v88
    %v121 = vunpack.c.l.bf16 %v89
    %v122 = vunpack.c.l.bf16 %v90
    %v123 = vunpack.c.l.bf16 %v91
    %v124 = vunpack.c.l.bf16 %v92
    %v125 = vunpack.c.l.bf16 %v93
    %v126 = vunpack.c.l.bf16 %v94
    %v127 = vunpack.c.l.bf16 %v95
    %v128 = vunpack.c.l.bf16 %v96
    %v129 = vunpack.c.l.bf16 %v97
    %v130 = vunpack.c.l.bf16 %v98
    %v131 = vunpack.c.l.bf16 %v99
    %v132 = vunpack.c.l.bf16 %v100
    %v133 = vmax.f32 %v101, %v102
    %v134 = vmax.f32 %v103, %v104
    %v135 = vmax.f32 %v105, %v106
    %v136 = vmax.f32 %v107, %v108
    %v137 = vmax.f32 %v109, %v110
    %v138 = vmax.f32 %v111, %v112
    %v139 = vmax.f32 %v113, %v114
    %v140 = vmax.f32 %v115, %v116
    %v141 = vmax.f32 %v117, %v118
    %v142 = vmax.f32 %v119, %v120
    %v143 = vmax.f32 %v121, %v122
    %v144 = vmax.f32 %v123, %v124
    %v145 = vmax.f32 %v125, %v126
    %v146 = vmax.f32 %v127, %v128
    %v147 = vmax.f32 %v129, %v130
    %v148 = vmax.f32 %v131, %v132
    %165 = vrot.lane.b32.xlu0 %v133, 124
    %v166 = vpop.permute.xlu0 %165
    %167 = vrot.lane.b32.xlu0 %v134, 124
    %v168 = vpop.permute.xlu0 %167
    %169 = vrot.lane.b32.xlu0 %v135, 124
    %v170 = vpop.permute.xlu0 %169
    %171 = vrot.lane.b32.xlu0 %v136, 124
    %v172 = vpop.permute.xlu0 %171
    %173 = vrot.lane.b32.xlu0 %v137, 124
    %v174 = vpop.permute.xlu0 %173
    %175 = vrot.lane.b32.xlu0 %v138, 124
    %v176 = vpop.permute.xlu0 %175
    %177 = vrot.lane.b32.xlu0 %v139, 124
    %v178 = vpop.permute.xlu0 %177
    %179 = vrot.lane.b32.xlu0 %v140, 124
    %v180 = vpop.permute.xlu0 %179
    %181 = vrot.lane.b32.xlu0 %v141, 124
    %v182 = vpop.permute.xlu0 %181
    %183 = vrot.lane.b32.xlu0 %v142, 124
    %v184 = vpop.permute.xlu0 %183
    %185 = vrot.lane.b32.xlu0 %v143, 124
    %v186 = vpop.permute.xlu0 %185
    %187 = vrot.lane.b32.xlu0 %v144, 124
    %v188 = vpop.permute.xlu0 %187
    %189 = vrot.lane.b32.xlu0 %v145, 124
    %v190 = vpop.permute.xlu0 %189
    %191 = vrot.lane.b32.xlu0 %v146, 124
    %v192 = vpop.permute.xlu0 %191
    %193 = vrot.lane.b32.xlu0 %v147, 124
    %v194 = vpop.permute.xlu0 %193
    %195 = vrot.lane.b32.xlu0 %v148, 124
    %v196 = vpop.permute.xlu0 %195
    %v213 = vmax.f32 %v133, %v166
    %v214 = vmax.f32 %v134, %v168
    %v215 = vmax.f32 %v135, %v170
    %v216 = vmax.f32 %v136, %v172
    %v217 = vmax.f32 %v137, %v174
    %v218 = vmax.f32 %v138, %v176
    %v219 = vmax.f32 %v139, %v178
    %v220 = vmax.f32 %v140, %v180
    %v221 = vmax.f32 %v141, %v182
    %v222 = vmax.f32 %v142, %v184
    %v223 = vmax.f32 %v143, %v186
    %v224 = vmax.f32 %v144, %v188
    %v225 = vmax.f32 %v145, %v190
    %v226 = vmax.f32 %v146, %v192
    %v227 = vmax.f32 %v147, %v194
    %v228 = vmax.f32 %v148, %v196
    %229 = vst [vmem:[#allocation2] sm:$0xff] 0.0
    %230 = vst [vmem:[#allocation2 + $0x8] sm:$0x3] 0.0
    %231 = vst [vmem:[#allocation2 + $0xa0] sm:$0xff] 0.0
    %232 = vst [vmem:[#allocation2 + $0xa8] sm:$0x3] 0.0
    %s233 = scalar_lea.vmem [#allocation2], 144
    %234 = vst [vmem:[%s233] sm:$0xff] 0.0
    %235 = vst [vmem:[%s233 + $0x8] sm:$0x3] 0.0
    %236 = vst [vmem:[%s233 + $0xa0] sm:$0xff] 0.0
    %237 = vst [vmem:[%s233 + $0xa8] sm:$0x3] 0.0
    %s238 = scalar_lea.vmem [#allocation2], 16
    %239 = vst [vmem:[%s238] sm:$0x1] 0.0
    %240 = vst [vmem:[%s238 + $0x10] sm:$0x1] 0.0
    %241 = vst [vmem:[%s238 + $0x20] sm:$0x1] 0.0
    %242 = vst [vmem:[%s238 + $0x30] sm:$0x1] 0.0
    %243 = vst [vmem:[%s238 + $0x40] sm:$0x1] 0.0
    %244 = vst [vmem:[%s238 + $0x50] sm:$0x1] 0.0
    %245 = vst [vmem:[%s238 + $0x60] sm:$0x1] 0.0
    %246 = vst [vmem:[%s238 + $0x70] sm:$0x1] 0.0
    %247 = vst [vmem:[%s238 + $0xa0] sm:$0x1] 0.0
    %248 = vst [vmem:[%s238 + $0xb0] sm:$0x1] 0.0
    %249 = vst [vmem:[%s238 + $0xc0] sm:$0x1] 0.0
    %250 = vst [vmem:[%s238 + $0xd0] sm:$0x1] 0.0
    %251 = vst [vmem:[%s238 + $0xe0] sm:$0x1] 0.0
    %252 = vst [vmem:[%s238 + $0xf0] sm:$0x1] 0.0
    %253 = vst [vmem:[%s238 + $0x100] sm:$0x1] 0.0
    %254 = vst [vmem:[%s238 + $0x110] sm:$0x1] 0.0
    %255 = vst [vmem:[%s238 + $0x9] sm:$0x1] 0.0
    %256 = vst [vmem:[%s238 + $0x19] sm:$0x1] 0.0
    %257 = vst [vmem:[%s238 + $0x29] sm:$0x1] 0.0
    %258 = vst [vmem:[%s238 + $0x39] sm:$0x1] 0.0
    %259 = vst [vmem:[%s238 + $0x49] sm:$0x1] 0.0
    %260 = vst [vmem:[%s238 + $0x59] sm:$0x1] 0.0
    %261 = vst [vmem:[%s238 + $0x69] sm:$0x1] 0.0
    %262 = vst [vmem:[%s238 + $0x79] sm:$0x1] 0.0
    %263 = vst [vmem:[%s238 + $0xa9] sm:$0x1] 0.0
    %264 = vst [vmem:[%s238 + $0xb9] sm:$0x1] 0.0
    %265 = vst [vmem:[%s238 + $0xc9] sm:$0x1] 0.0
    %266 = vst [vmem:[%s238 + $0xd9] sm:$0x1] 0.0
    %267 = vst [vmem:[%s238 + $0xe9] sm:$0x1] 0.0
    %268 = vst [vmem:[%s238 + $0xf9] sm:$0x1] 0.0
    %269 = vst [vmem:[%s238 + $0x109] sm:$0x1] 0.0
    %270 = vst [vmem:[%s238 + $0x119] sm:$0x1] 0.0
    %vm271 = vcmask 31744
    %v272 = vsel %vm271, %v213, 0.0
    %v273 = vsel %vm271, %v214, 0.0
    %v274 = vsel %vm271, %v215, 0.0
    %v275 = vsel %vm271, %v216, 0.0
    %v276 = vsel %vm271, %v217, 0.0
    %v277 = vsel %vm271, %v218, 0.0
    %v278 = vsel %vm271, %v219, 0.0
    %v279 = vsel %vm271, %v220, 0.0
    %v280 = vsel %vm271, %v221, 0.0
    %v281 = vsel %vm271, %v222, 0.0
    %v282 = vsel %vm271, %v223, 0.0
    %v283 = vsel %vm271, %v224, 0.0
    %v284 = vsel %vm271, %v225, 0.0
    %v285 = vsel %vm271, %v226, 0.0
    %v286 = vsel %vm271, %v227, 0.0
    %v287 = vsel %vm271, %v228, 0.0
    %288 = vst [vmem:[%s238 + $0x1] sm:$0xff] %v272
    %289 = vst [vmem:[%s238 + $0x11] sm:$0xff] %v273
    %290 = vst [vmem:[%s238 + $0x21] sm:$0xff] %v274
    %291 = vst [vmem:[%s238 + $0x31] sm:$0xff] %v275
    %292 = vst [vmem:[%s238 + $0x41] sm:$0xff] %v276
    %293 = vst [vmem:[%s238 + $0x51] sm:$0xff] %v277
    %294 = vst [vmem:[%s238 + $0x61] sm:$0xff] %v278
    %295 = vst [vmem:[%s238 + $0x71] sm:$0xff] %v279
    %296 = vst [vmem:[%s238 + $0xa1] sm:$0xff] %v280
    %297 = vst [vmem:[%s238 + $0xb1] sm:$0xff] %v281
    %298 = vst [vmem:[%s238 + $0xc1] sm:$0xff] %v282
    %299 = vst [vmem:[%s238 + $0xd1] sm:$0xff] %v283
    %300 = vst [vmem:[%s238 + $0xe1] sm:$0xff] %v284
    %301 = vst [vmem:[%s238 + $0xf1] sm:$0xff] %v285
    %302 = vst [vmem:[%s238 + $0x101] sm:$0xff] %v286
    %303 = vst [vmem:[%s238 + $0x111] sm:$0xff] %v287
    %v304 = vld [vmem:[#allocation2] sm:$0xff]
    %v305 = vld [vmem:[#allocation2 + $0x10] sm:$0xff]
    %v306 = vld [vmem:[#allocation2 + $0x20] sm:$0xff]
    %v307 = vld [vmem:[#allocation2 + $0x30] sm:$0xff]
    %v308 = vld [vmem:[#allocation2 + $0x40] sm:$0xff]
    %v309 = vld [vmem:[#allocation2 + $0x50] sm:$0xff]
    %v310 = vld [vmem:[#allocation2 + $0x60] sm:$0xff]
    %v311 = vld [vmem:[#allocation2 + $0x70] sm:$0xff]
    %v312 = vld [vmem:[#allocation2 + $0xa0] sm:$0xff]
    %v313 = vld [vmem:[#allocation2 + $0xb0] sm:$0xff]
    %v314 = vld [vmem:[#allocation2 + $0xc0] sm:$0xff]
    %v315 = vld [vmem:[#allocation2 + $0xd0] sm:$0xff]
    %v316 = vld [vmem:[#allocation2 + $0xe0] sm:$0xff]
    %v317 = vld [vmem:[#allocation2 + $0xf0] sm:$0xff]
    %v318 = vld [vmem:[#allocation2 + $0x100] sm:$0xff]
    %v319 = vld [vmem:[#allocation2 + $0x110] sm:$0xff]
    %v320 = vpack.c.bf16 %v305, %v304
    %v321 = vpack.c.bf16 %v307, %v306
    %v322 = vpack.c.bf16 %v309, %v308
    %v323 = vpack.c.bf16 %v311, %v310
    %v324 = vpack.c.bf16 %v313, %v312
    %v325 = vpack.c.bf16 %v315, %v314
    %v326 = vpack.c.bf16 %v317, %v316
    %v327 = vpack.c.bf16 %v319, %v318
    %328 = vst [vmem:[#allocation3] sm:$0xff] %v320
    %329 = vst [vmem:[#allocation3 + $0x48] sm:$0xff] %v321
    %330 = vst [vmem:[#allocation3 + $0x90] sm:$0xff] %v322
    %331 = vst [vmem:[#allocation3 + $0xd8] sm:$0xff] %v323
    %332 = vst [vmem:[#allocation3 + $0x120] sm:$0xff] %v324
    %333 = vst [vmem:[#allocation3 + $0x168] sm:$0xff] %v325
    %334 = vst [vmem:[#allocation3 + $0x1b0] sm:$0xff] %v326
    %335 = vst [vmem:[#allocation3 + $0x1f8] sm:$0xff] %v327
    %v336 = vld [vmem:[#allocation2 + $0x1] sm:$0xff]
    %v337 = vld [vmem:[#allocation2 + $0x11] sm:$0xff]
    %v338 = vld [vmem:[#allocation2 + $0x21] sm:$0xff]
    %v339 = vld [vmem:[#allocation2 + $0x31] sm:$0xff]
    %v340 = vld [vmem:[#allocation2 + $0x41] sm:$0xff]
    %v341 = vld [vmem:[#allocation2 + $0x51] sm:$0xff]
    %v342 = vld [vmem:[#allocation2 + $0x61] sm:$0xff]
    %v343 = vld [vmem:[#allocation2 + $0x71] sm:$0xff]
    %v344 = vld [vmem:[#allocation2 + $0xa1] sm:$0xff]
    %v345 = vld [vmem:[#allocation2 + $0xb1] sm:$0xff]
    %v346 = vld [vmem:[#allocation2 + $0xc1] sm:$0xff]
    %v347 = vld [vmem:[#allocation2 + $0xd1] sm:$0xff]
    %v348 = vld [vmem:[#allocation2 + $0xe1] sm:$0xff]
    %v349 = vld [vmem:[#allocation2 + $0xf1] sm:$0xff]
    %v350 = vld [vmem:[#allocation2 + $0x101] sm:$0xff]
    %v351 = vld [vmem:[#allocation2 + $0x111] sm:$0xff]
    %v352 = vpack.c.bf16 %v337, %v336
    %v353 = vpack.c.bf16 %v339, %v338
    %v354 = vpack.c.bf16 %v341, %v340
    %v355 = vpack.c.bf16 %v343, %v342
    %v356 = vpack.c.bf16 %v345, %v344
    %v357 = vpack.c.bf16 %v347, %v346
    %v358 = vpack.c.bf16 %v349, %v348
    %v359 = vpack.c.bf16 %v351, %v350
    %360 = vst [vmem:[#allocation3 + $0x8] sm:$0xff] %v352
    %361 = vst [vmem:[#allocation3 + $0x50] sm:$0xff] %v353
    %362 = vst [vmem:[#allocation3 + $0x98] sm:$0xff] %v354
    %363 = vst [vmem:[#allocation3 + $0xe0] sm:$0xff] %v355
    %364 = vst [vmem:[#allocation3 + $0x128] sm:$0xff] %v356
    %365 = vst [vmem:[#allocation3 + $0x170] sm:$0xff] %v357
    %366 = vst [vmem:[#allocation3 + $0x1b8] sm:$0xff] %v358
    %367 = vst [vmem:[#allocation3 + $0x200] sm:$0xff] %v359
    %v368 = vld [vmem:[#allocation2 + $0x2] sm:$0xff]
    %v369 = vld [vmem:[#allocation2 + $0x12] sm:$0xff]
    %v370 = vld [vmem:[#allocation2 + $0x22] sm:$0xff]
    %v371 = vld [vmem:[#allocation2 + $0x32] sm:$0xff]
    %v372 = vld [vmem:[#allocation2 + $0x42] sm:$0xff]
    %v373 = vld [vmem:[#allocation2 + $0x52] sm:$0xff]
    %v374 = vld [vmem:[#allocation2 + $0x62] sm:$0xff]
    %v375 = vld [vmem:[#allocation2 + $0x72] sm:$0xff]
    %v376 = vld [vmem:[#allocation2 + $0xa2] sm:$0xff]
    %v377 = vld [vmem:[#allocation2 + $0xb2] sm:$0xff]
    %v378 = vld [vmem:[#allocation2 + $0xc2] sm:$0xff]
    %v379 = vld [vmem:[#allocation2 + $0xd2] sm:$0xff]
    %v380 = vld [vmem:[#allocation2 + $0xe2] sm:$0xff]
    %v381 = vld [vmem:[#allocation2 + $0xf2] sm:$0xff]
    %v382 = vld [vmem:[#allocation2 + $0x102] sm:$0xff]
    %v383 = vld [vmem:[#allocation2 + $0x112] sm:$0xff]
    %v384 = vpack.c.bf16 %v369, %v368
    %v385 = vpack.c.bf16 %v371, %v370
    %v386 = vpack.c.bf16 %v373, %v372
    %v387 = vpack.c.bf16 %v375, %v374
    %v388 = vpack.c.bf16 %v377, %v376
    %v389 = vpack.c.bf16 %v379, %v378
    %v390 = vpack.c.bf16 %v381, %v380
    %v391 = vpack.c.bf16 %v383, %v382
    %392 = vst [vmem:[#allocation3 + $0x10] sm:$0xff] %v384
    %393 = vst [vmem:[#allocation3 + $0x58] sm:$0xff] %v385
    %394 = vst [vmem:[#allocation3 + $0xa0] sm:$0xff] %v386
    %395 = vst [vmem:[#allocation3 + $0xe8] sm:$0xff] %v387
    %396 = vst [vmem:[#allocation3 + $0x130] sm:$0xff] %v388
    %397 = vst [vmem:[#allocation3 + $0x178] sm:$0xff] %v389
    %398 = vst [vmem:[#allocation3 + $0x1c0] sm:$0xff] %v390
    %399 = vst [vmem:[#allocation3 + $0x208] sm:$0xff] %v391
    %v400 = vld [vmem:[%s238] sm:$0xff]
    %v401 = vld [vmem:[%s238 + $0x10] sm:$0xff]
    %v402 = vld [vmem:[%s238 + $0x20] sm:$0xff]
    %v403 = vld [vmem:[%s238 + $0x30] sm:$0xff]
    %v404 = vld [vmem:[%s238 + $0x40] sm:$0xff]
    %v405 = vld [vmem:[%s238 + $0x50] sm:$0xff]
    %v406 = vld [vmem:[%s238 + $0x60] sm:$0xff]
    %v407 = vld [vmem:[%s238 + $0x70] sm:$0xff]
    %v408 = vld [vmem:[%s238 + $0xa0] sm:$0xff]
    %v409 = vld [vmem:[%s238 + $0xb0] sm:$0xff]
    %v410 = vld [vmem:[%s238 + $0xc0] sm:$0xff]
    %v411 = vld [vmem:[%s238 + $0xd0] sm:$0xff]
    %v412 = vld [vmem:[%s238 + $0xe0] sm:$0xff]
    %v413 = vld [vmem:[%s238 + $0xf0] sm:$0xff]
    %v414 = vld [vmem:[%s238 + $0x100] sm:$0xff]
    %v415 = vld [vmem:[%s238 + $0x110] sm:$0xff]
    %v416 = vpack.c.bf16 %v401, %v400
    %v417 = vpack.c.bf16 %v403, %v402
    %v418 = vpack.c.bf16 %v405, %v404
    %v419 = vpack.c.bf16 %v407, %v406
    %v420 = vpack.c.bf16 %v409, %v408
    %v421 = vpack.c.bf16 %v411, %v410
    %v422 = vpack.c.bf16 %v413, %v412
    %v423 = vpack.c.bf16 %v415, %v414
    %424 = vst [vmem:[#allocation3 + $0x18] sm:$0xff] %v416
    %425 = vst [vmem:[#allocation3 + $0x60] sm:$0xff] %v417
    %426 = vst [vmem:[#allocation3 + $0xa8] sm:$0xff] %v418
    %427 = vst [vmem:[#allocation3 + $0xf0] sm:$0xff] %v419
    %428 = vst [vmem:[#allocation3 + $0x138] sm:$0xff] %v420
    %429 = vst [vmem:[#allocation3 + $0x180] sm:$0xff] %v421
    %430 = vst [vmem:[#allocation3 + $0x1c8] sm:$0xff] %v422
    %431 = vst [vmem:[#allocation3 + $0x210] sm:$0xff] %v423
    %v432 = vld [vmem:[%s238 + $0x1] sm:$0xff]
    %v433 = vld [vmem:[%s238 + $0x11] sm:$0xff]
    %v434 = vld [vmem:[%s238 + $0x21] sm:$0xff]
    %v435 = vld [vmem:[%s238 + $0x31] sm:$0xff]
    %v436 = vld [vmem:[%s238 + $0x41] sm:$0xff]
    %v437 = vld [vmem:[%s238 + $0x51] sm:$0xff]
    %v438 = vld [vmem:[%s238 + $0x61] sm:$0xff]
    %v439 = vld [vmem:[%s238 + $0x71] sm:$0xff]
    %v440 = vld [vmem:[%s238 + $0xa1] sm:$0xff]
    %v441 = vld [vmem:[%s238 + $0xb1] sm:$0xff]
    %v442 = vld [vmem:[%s238 + $0xc1] sm:$0xff]
    %v443 = vld [vmem:[%s238 + $0xd1] sm:$0xff]
    %v444 = vld [vmem:[%s238 + $0xe1] sm:$0xff]
    %v445 = vld [vmem:[%s238 + $0xf1] sm:$0xff]
    %v446 = vld [vmem:[%s238 + $0x101] sm:$0xff]
    %v447 = vld [vmem:[%s238 + $0x111] sm:$0xff]
    %v448 = vpack.c.bf16 %v433, %v432
    %v449 = vpack.c.bf16 %v435, %v434
    %v450 = vpack.c.bf16 %v437, %v436
    %v451 = vpack.c.bf16 %v439, %v438
    %v452 = vpack.c.bf16 %v441, %v440
    %v453 = vpack.c.bf16 %v443, %v442
    %v454 = vpack.c.bf16 %v445, %v444
    %v455 = vpack.c.bf16 %v447, %v446
    %456 = vst [vmem:[#allocation3 + $0x20] sm:$0xff] %v448
    %457 = vst [vmem:[#allocation3 + $0x68] sm:$0xff] %v449
    %458 = vst [vmem:[#allocation3 + $0xb0] sm:$0xff] %v450
    %459 = vst [vmem:[#allocation3 + $0xf8] sm:$0xff] %v451
    %460 = vst [vmem:[#allocation3 + $0x140] sm:$0xff] %v452
    %461 = vst [vmem:[#allocation3 + $0x188] sm:$0xff] %v453
    %462 = vst [vmem:[#allocation3 + $0x1d0] sm:$0xff] %v454
    %463 = vst [vmem:[#allocation3 + $0x218] sm:$0xff] %v455
    %v464 = vld [vmem:[%s238 + $0x2] sm:$0xff]
    %v465 = vld [vmem:[%s238 + $0x12] sm:$0xff]
    %v466 = vld [vmem:[%s238 + $0x22] sm:$0xff]
    %v467 = vld [vmem:[%s238 + $0x32] sm:$0xff]
    %v468 = vld [vmem:[%s238 + $0x42] sm:$0xff]
    %v469 = vld [vmem:[%s238 + $0x52] sm:$0xff]
    %v470 = vld [vmem:[%s238 + $0x62] sm:$0xff]
    %v471 = vld [vmem:[%s238 + $0x72] sm:$0xff]
    %v472 = vld [vmem:[%s238 + $0xa2] sm:$0xff]
    %v473 = vld [vmem:[%s238 + $0xb2] sm:$0xff]
    %v474 = vld [vmem:[%s238 + $0xc2] sm:$0xff]
    %v475 = vld [vmem:[%s238 + $0xd2] sm:$0xff]
    %v476 = vld [vmem:[%s238 + $0xe2] sm:$0xff]
    %v477 = vld [vmem:[%s238 + $0xf2] sm:$0xff]
    %v478 = vld [vmem:[%s238 + $0x102] sm:$0xff]
    %v479 = vld [vmem:[%s238 + $0x112] sm:$0xff]
    %v480 = vpack.c.bf16 %v465, %v464
    %v481 = vpack.c.bf16 %v467, %v466
    %v482 = vpack.c.bf16 %v469, %v468
    %v483 = vpack.c.bf16 %v471, %v470
    %v484 = vpack.c.bf16 %v473, %v472
    %v485 = vpack.c.bf16 %v475, %v474
    %v486 = vpack.c.bf16 %v477, %v476
    %v487 = vpack.c.bf16 %v479, %v478
    %488 = vst [vmem:[#allocation3 + $0x28] sm:$0xff] %v480
    %489 = vst [vmem:[#allocation3 + $0x70] sm:$0xff] %v481
    %490 = vst [vmem:[#allocation3 + $0xb8] sm:$0xff] %v482
    %491 = vst [vmem:[#allocation3 + $0x100] sm:$0xff] %v483
    %492 = vst [vmem:[#allocation3 + $0x148] sm:$0xff] %v484
    %493 = vst [vmem:[#allocation3 + $0x190] sm:$0xff] %v485
    %494 = vst [vmem:[#allocation3 + $0x1d8] sm:$0xff] %v486
    %495 = vst [vmem:[#allocation3 + $0x220] sm:$0xff] %v487
    %s496 = scalar_lea.vmem [#allocation2], 32
    %v497 = vld [vmem:[%s496] sm:$0xff]
    %v498 = vld [vmem:[%s496 + $0x10] sm:$0xff]
    %v499 = vld [vmem:[%s496 + $0x20] sm:$0xff]
    %v500 = vld [vmem:[%s496 + $0x30] sm:$0xff]
    %v501 = vld [vmem:[%s496 + $0x40] sm:$0xff]
    %v502 = vld [vmem:[%s496 + $0x50] sm:$0xff]
    %v503 = vld [vmem:[%s496 + $0x60] sm:$0xff]
    %v504 = vld [vmem:[%s496 + $0x70] sm:$0xff]
    %v505 = vld [vmem:[%s496 + $0xa0] sm:$0xff]
    %v506 = vld [vmem:[%s496 + $0xb0] sm:$0xff]
    %v507 = vld [vmem:[%s496 + $0xc0] sm:$0xff]
    %v508 = vld [vmem:[%s496 + $0xd0] sm:$0xff]
    %v509 = vld [vmem:[%s496 + $0xe0] sm:$0xff]
    %v510 = vld [vmem:[%s496 + $0xf0] sm:$0xff]
    %v511 = vld [vmem:[%s496 + $0x100] sm:$0xff]
    %v512 = vld [vmem:[%s496 + $0x110] sm:$0xff]
    %v513 = vpack.c.bf16 %v498, %v497
    %v514 = vpack.c.bf16 %v500, %v499
    %v515 = vpack.c.bf16 %v502, %v501
    %v516 = vpack.c.bf16 %v504, %v503
    %v517 = vpack.c.bf16 %v506, %v505
    %v518 = vpack.c.bf16 %v508, %v507
    %v519 = vpack.c.bf16 %v510, %v509
    %v520 = vpack.c.bf16 %v512, %v511
    %521 = vst [vmem:[#allocation3 + $0x30] sm:$0xff] %v513
    %522 = vst [vmem:[#allocation3 + $0x78] sm:$0xff] %v514
    %523 = vst [vmem:[#allocation3 + $0xc0] sm:$0xff] %v515
    %524 = vst [vmem:[#allocation3 + $0x108] sm:$0xff] %v516
    %525 = vst [vmem:[#allocation3 + $0x150] sm:$0xff] %v517
    %526 = vst [vmem:[#allocation3 + $0x198] sm:$0xff] %v518
    %527 = vst [vmem:[#allocation3 + $0x1e0] sm:$0xff] %v519
    %528 = vst [vmem:[#allocation3 + $0x228] sm:$0xff] %v520
    %v529 = vld [vmem:[%s496 + $0x1] sm:$0xff]
    %v530 = vld [vmem:[%s496 + $0x11] sm:$0xff]
    %v531 = vld [vmem:[%s496 + $0x21] sm:$0xff]
    %v532 = vld [vmem:[%s496 + $0x31] sm:$0xff]
    %v533 = vld [vmem:[%s496 + $0x41] sm:$0xff]
    %v534 = vld [vmem:[%s496 + $0x51] sm:$0xff]
    %v535 = vld [vmem:[%s496 + $0x61] sm:$0xff]
    %v536 = vld [vmem:[%s496 + $0x71] sm:$0xff]
    %v537 = vld [vmem:[%s496 + $0xa1] sm:$0xff]
    %v538 = vld [vmem:[%s496 + $0xb1] sm:$0xff]
    %v539 = vld [vmem:[%s496 + $0xc1] sm:$0xff]
    %v540 = vld [vmem:[%s496 + $0xd1] sm:$0xff]
    %v541 = vld [vmem:[%s496 + $0xe1] sm:$0xff]
    %v542 = vld [vmem:[%s496 + $0xf1] sm:$0xff]
    %v543 = vld [vmem:[%s496 + $0x101] sm:$0xff]
    %v544 = vld [vmem:[%s496 + $0x111] sm:$0xff]
    %v545 = vpack.c.bf16 %v530, %v529
    %v546 = vpack.c.bf16 %v532, %v531
    %v547 = vpack.c.bf16 %v534, %v533
    %v548 = vpack.c.bf16 %v536, %v535
    %v549 = vpack.c.bf16 %v538, %v537
    %v550 = vpack.c.bf16 %v540, %v539
    %v551 = vpack.c.bf16 %v542, %v541
    %v552 = vpack.c.bf16 %v544, %v543
    %553 = vst [vmem:[#allocation3 + $0x38] sm:$0xff] %v545
    %554 = vst [vmem:[#allocation3 + $0x80] sm:$0xff] %v546
    %555 = vst [vmem:[#allocation3 + $0xc8] sm:$0xff] %v547
    %556 = vst [vmem:[#allocation3 + $0x110] sm:$0xff] %v548
    %557 = vst [vmem:[#allocation3 + $0x158] sm:$0xff] %v549
    %558 = vst [vmem:[#allocation3 + $0x1a0] sm:$0xff] %v550
    %559 = vst [vmem:[#allocation3 + $0x1e8] sm:$0xff] %v551
    %560 = vst [vmem:[#allocation3 + $0x230] sm:$0xff] %v552
    %v561 = vld [vmem:[%s496 + $0x2] sm:$0xff]
    %v562 = vld [vmem:[%s496 + $0x12] sm:$0xff]
    %v563 = vld [vmem:[%s496 + $0x22] sm:$0xff]
    %v564 = vld [vmem:[%s496 + $0x32] sm:$0xff]
    %v565 = vld [vmem:[%s496 + $0x42] sm:$0xff]
    %v566 = vld [vmem:[%s496 + $0x52] sm:$0xff]
    %v567 = vld [vmem:[%s496 + $0x62] sm:$0xff]
    %v568 = vld [vmem:[%s496 + $0x72] sm:$0xff]
    %v569 = vld [vmem:[%s496 + $0xa2] sm:$0xff]
    %v570 = vld [vmem:[%s496 + $0xb2] sm:$0xff]
    %v571 = vld [vmem:[%s496 + $0xc2] sm:$0xff]
    %v572 = vld [vmem:[%s496 + $0xd2] sm:$0xff]
    %v573 = vld [vmem:[%s496 + $0xe2] sm:$0xff]
    %v574 = vld [vmem:[%s496 + $0xf2] sm:$0xff]
    %v575 = vld [vmem:[%s496 + $0x102] sm:$0xff]
    %v576 = vld [vmem:[%s496 + $0x112] sm:$0xff]
    %v577 = vpack.c.bf16 %v562, %v561
    %v578 = vpack.c.bf16 %v564, %v563
    %v579 = vpack.c.bf16 %v566, %v565
    %v580 = vpack.c.bf16 %v568, %v567
    %v581 = vpack.c.bf16 %v570, %v569
    %v582 = vpack.c.bf16 %v572, %v571
    %v583 = vpack.c.bf16 %v574, %v573
    %v584 = vpack.c.bf16 %v576, %v575
    %585 = vst [vmem:[#allocation3 + $0x40] sm:$0xff] %v577
    %586 = vst [vmem:[#allocation3 + $0x88] sm:$0xff] %v578
    %587 = vst [vmem:[#allocation3 + $0xd0] sm:$0xff] %v579
    %588 = vst [vmem:[#allocation3 + $0x118] sm:$0xff] %v580
    %589 = vst [vmem:[#allocation3 + $0x160] sm:$0xff] %v581
    %590 = vst [vmem:[#allocation3 + $0x1a8] sm:$0xff] %v582
    %591 = vst [vmem:[#allocation3 + $0x1f0] sm:$0xff] %v583
    %592 = vst [vmem:[#allocation3 + $0x238] sm:$0xff] %v584
    %v593 = vld [vmem:[#allocation3] sm:$0xff]
    %v594 = vld [vmem:[#allocation3 + $0x8] sm:$0xff]
    %v595 = vld [vmem:[#allocation3 + $0x10] sm:$0xff]
    %v596 = vld [vmem:[#allocation3 + $0x18] sm:$0xff]
    %v597 = vld [vmem:[#allocation3 + $0x20] sm:$0xff]
    %v598 = vld [vmem:[#allocation3 + $0x28] sm:$0xff]
    %v599 = vld [vmem:[#allocation3 + $0x30] sm:$0xff]
    %v600 = vld [vmem:[#allocation3 + $0x38] sm:$0xff]
    %v601 = vld [vmem:[#allocation3 + $0x40] sm:$0xff]
    %v602 = vld [vmem:[#allocation3 + $0x48] sm:$0xff]
    %v603 = vld [vmem:[#allocation3 + $0x50] sm:$0xff]
    %v604 = vld [vmem:[#allocation3 + $0x58] sm:$0xff]
    %v605 = vld [vmem:[#allocation3 + $0x60] sm:$0xff]
    %v606 = vld [vmem:[#allocation3 + $0x68] sm:$0xff]
    %v607 = vld [vmem:[#allocation3 + $0x70] sm:$0xff]
    %v608 = vld [vmem:[#allocation3 + $0x78] sm:$0xff]
    %v609 = vld [vmem:[#allocation3 + $0x80] sm:$0xff]
    %v610 = vld [vmem:[#allocation3 + $0x88] sm:$0xff]
    %v611 = vld [vmem:[#allocation3 + $0x90] sm:$0xff]
    %v612 = vld [vmem:[#allocation3 + $0x98] sm:$0xff]
    %v613 = vld [vmem:[#allocation3 + $0xa0] sm:$0xff]
    %v614 = vld [vmem:[#allocation3 + $0xa8] sm:$0xff]
    %v615 = vld [vmem:[#allocation3 + $0xb0] sm:$0xff]
    %v616 = vld [vmem:[#allocation3 + $0xb8] sm:$0xff]
    %v617 = vld [vmem:[#allocation3 + $0xc0] sm:$0xff]
    %v618 = vld [vmem:[#allocation3 + $0xc8] sm:$0xff]
    %v619 = vld [vmem:[#allocation3 + $0xd0] sm:$0xff]
    %v620 = vld [vmem:[#allocation3 + $0xd8] sm:$0xff]
    %v621 = vld [vmem:[#allocation3 + $0xe0] sm:$0xff]
    %v622 = vld [vmem:[#allocation3 + $0xe8] sm:$0xff]
    %v623 = vld [vmem:[#allocation3 + $0xf0] sm:$0xff]
    %v624 = vld [vmem:[#allocation3 + $0xf8] sm:$0xff]
    %v625 = vld [vmem:[#allocation3 + $0x100] sm:$0xff]
    %v626 = vld [vmem:[#allocation3 + $0x108] sm:$0xff]
    %v627 = vld [vmem:[#allocation3 + $0x110] sm:$0xff]
    %v628 = vld [vmem:[#allocation3 + $0x118] sm:$0xff]
    %v629 = vld [vmem:[#allocation3 + $0x120] sm:$0xff]
    %v630 = vld [vmem:[#allocation3 + $0x128] sm:$0xff]
    %v631 = vld [vmem:[#allocation3 + $0x130] sm:$0xff]
    %v632 = vld [vmem:[#allocation3 + $0x138] sm:$0xff]
    %v633 = vld [vmem:[#allocation3 + $0x140] sm:$0xff]
    %v634 = vld [vmem:[#allocation3 + $0x148] sm:$0xff]
    %v635 = vld [vmem:[#allocation3 + $0x150] sm:$0xff]
    %v636 = vld [vmem:[#allocation3 + $0x158] sm:$0xff]
    %v637 = vld [vmem:[#allocation3 + $0x160] sm:$0xff]
    %v638 = vld [vmem:[#allocation3 + $0x168] sm:$0xff]
    %v639 = vld [vmem:[#allocation3 + $0x170] sm:$0xff]
    %v640 = vld [vmem:[#allocation3 + $0x178] sm:$0xff]
    %v641 = vld [vmem:[#allocation3 + $0x180] sm:$0xff]
    %v642 = vld [vmem:[#allocation3 + $0x188] sm:$0xff]
    %v643 = vld [vmem:[#allocation3 + $0x190] sm:$0xff]
    %v644 = vld [vmem:[#allocation3 + $0x198] sm:$0xff]
    %v645 = vld [vmem:[#allocation3 + $0x1a0] sm:$0xff]
    %v646 = vld [vmem:[#allocation3 + $0x1a8] sm:$0xff]
    %v647 = vld [vmem:[#allocation3 + $0x1b0] sm:$0xff]
    %v648 = vld [vmem:[#allocation3 + $0x1b8] sm:$0xff]
    %v649 = vld [vmem:[#allocation3 + $0x1c0] sm:$0xff]
    %v650 = vld [vmem:[#allocation3 + $0x1c8] sm:$0xff]
    %v651 = vld [vmem:[#allocation3 + $0x1d0] sm:$0xff]
    %v652 = vld [vmem:[#allocation3 + $0x1d8] sm:$0xff]
    %v653 = vld [vmem:[#allocation3 + $0x1e0] sm:$0xff]
    %v654 = vld [vmem:[#allocation3 + $0x1e8] sm:$0xff]
    %v655 = vld [vmem:[#allocation3 + $0x1f0] sm:$0xff]
    %v656 = vld [vmem:[#allocation3 + $0x1f8] sm:$0xff]
    %v657 = vld [vmem:[#allocation3 + $0x200] sm:$0xff]
    %v658 = vld [vmem:[#allocation3 + $0x208] sm:$0xff]
    %v659 = vld [vmem:[#allocation3 + $0x210] sm:$0xff]
    %v660 = vld [vmem:[#allocation3 + $0x218] sm:$0xff]
    %v661 = vld [vmem:[#allocation3 + $0x220] sm:$0xff]
    %v662 = vld [vmem:[#allocation3 + $0x228] sm:$0xff]
    %v663 = vld [vmem:[#allocation3 + $0x230] sm:$0xff]
    %v664 = vld [vmem:[#allocation3 + $0x238] sm:$0xff]
    %v665 = vld [vmem:[#allocation7] sm:$0xf]
    %v666 = vld [vmem:[#allocation7 + $0x4] sm:$0xf]
    %v667 = vld [vmem:[#allocation7 + $0x8] sm:$0xf]
    %v668 = vld [vmem:[#allocation7 + $0xc] sm:$0xf]
    %v669 = vld [vmem:[#allocation7 + $0x10] sm:$0xf]
    %v670 = vld [vmem:[#allocation7 + $0x14] sm:$0xf]
    %v671 = vld [vmem:[#allocation7 + $0x18] sm:$0xf]
    %v672 = vld [vmem:[#allocation7 + $0x1c] sm:$0xf]
    %v673 = vld [vmem:[#allocation7 + $0x20] sm:$0xf]
    %v674 = vld [vmem:[#allocation7 + $0x24] sm:$0xf]
    %v675 = vld [vmem:[#allocation7 + $0x28] sm:$0xf]
    %v676 = vld [vmem:[#allocation7 + $0x2c] sm:$0xf]
    %v677 = vld [vmem:[#allocation7 + $0x30] sm:$0xf]
    %v678 = vld [vmem:[#allocation7 + $0x34] sm:$0xf]
    %v679 = vld [vmem:[#allocation7 + $0x38] sm:$0xf]
    %v680 = vld [vmem:[#allocation7 + $0x3c] sm:$0xf]
    %v681 = vld [vmem:[#allocation7 + $0x40] sm:$0xf]
    %v682 = vld [vmem:[#allocation7 + $0x44] sm:$0xf]
    %v683 = vld [vmem:[#allocation7 + $0x48] sm:$0xf]
    %v684 = vld [vmem:[#allocation7 + $0x4c] sm:$0xf]
    %v685 = vld [vmem:[#allocation7 + $0x50] sm:$0xf]
    %v686 = vld [vmem:[#allocation7 + $0x54] sm:$0xf]
    %v687 = vld [vmem:[#allocation7 + $0x58] sm:$0xf]
    %v688 = vld [vmem:[#allocation7 + $0x5c] sm:$0xf]
    %v689 = vld [vmem:[#allocation7 + $0x60] sm:$0xf]
    %v690 = vld [vmem:[#allocation7 + $0x64] sm:$0xf]
    %v691 = vld [vmem:[#allocation7 + $0x68] sm:$0xf]
    %v692 = vld [vmem:[#allocation7 + $0x6c] sm:$0xf]
    %v693 = vld [vmem:[#allocation7 + $0x70] sm:$0xf]
    %v694 = vld [vmem:[#allocation7 + $0x74] sm:$0xf]
    %v695 = vld [vmem:[#allocation7 + $0x78] sm:$0xf]
    %v696 = vld [vmem:[#allocation7 + $0x7c] sm:$0xf]
    %v697 = vld [vmem:[#allocation7 + $0x80] sm:$0xf]
    %v698 = vld [vmem:[#allocation7 + $0x84] sm:$0xf]
    %v699 = vld [vmem:[#allocation7 + $0x88] sm:$0xf]
    %v700 = vld [vmem:[#allocation7 + $0x8c] sm:$0xf]
    %v701 = vld [vmem:[#allocation7 + $0x90] sm:$0xf]
    %v702 = vld [vmem:[#allocation7 + $0x94] sm:$0xf]
    %v703 = vld [vmem:[#allocation7 + $0x98] sm:$0xf]
    %v704 = vld [vmem:[#allocation7 + $0x9c] sm:$0xf]
    %v705 = vld [vmem:[#allocation7 + $0xa0] sm:$0xf]
    %v706 = vld [vmem:[#allocation7 + $0xa4] sm:$0xf]
    %v707 = vld [vmem:[#allocation7 + $0xa8] sm:$0xf]
    %v708 = vld [vmem:[#allocation7 + $0xac] sm:$0xf]
    %v709 = vld [vmem:[#allocation7 + $0xb0] sm:$0xf]
    %v710 = vld [vmem:[#allocation7 + $0xb4] sm:$0xf]
    %v711 = vld [vmem:[#allocation7 + $0xb8] sm:$0xf]
    %v712 = vld [vmem:[#allocation7 + $0xbc] sm:$0xf]
    %v713 = vld [vmem:[#allocation7 + $0xc0] sm:$0xf]
    %v714 = vld [vmem:[#allocation7 + $0xc4] sm:$0xf]
    %v715 = vld [vmem:[#allocation7 + $0xc8] sm:$0xf]
    %v716 = vld [vmem:[#allocation7 + $0xcc] sm:$0xf]
    %v717 = vld [vmem:[#allocation7 + $0xd0] sm:$0xf]
    %v718 = vld [vmem:[#allocation7 + $0xd4] sm:$0xf]
    %v719 = vld [vmem:[#allocation7 + $0xd8] sm:$0xf]
    %v720 = vld [vmem:[#allocation7 + $0xdc] sm:$0xf]
    %v721 = vld [vmem:[#allocation7 + $0xe0] sm:$0xf]
    %v722 = vld [vmem:[#allocation7 + $0xe4] sm:$0xf]
    %v723 = vld [vmem:[#allocation7 + $0xe8] sm:$0xf]
    %v724 = vld [vmem:[#allocation7 + $0xec] sm:$0xf]
    %v725 = vld [vmem:[#allocation7 + $0xf0] sm:$0xf]
    %v726 = vld [vmem:[#allocation7 + $0xf4] sm:$0xf]
    %v727 = vld [vmem:[#allocation7 + $0xf8] sm:$0xf]
    %v728 = vld [vmem:[#allocation7 + $0xfc] sm:$0xf]
    %v729 = vld [vmem:[#allocation7 + $0x100] sm:$0xf]
    %v730 = vld [vmem:[#allocation7 + $0x104] sm:$0xf]
    %v731 = vld [vmem:[#allocation7 + $0x108] sm:$0xf]
    %v732 = vld [vmem:[#allocation7 + $0x10c] sm:$0xf]
    %v733 = vld [vmem:[#allocation7 + $0x110] sm:$0xf]
    %v734 = vld [vmem:[#allocation7 + $0x114] sm:$0xf]
    %v735 = vld [vmem:[#allocation7 + $0x118] sm:$0xf]
    %v736 = vld [vmem:[#allocation7 + $0x11c] sm:$0xf]
    %v737 = vld [vmem:[#allocation7 + $0x120] sm:$0xf]
    %v738 = vld [vmem:[#allocation7 + $0x124] sm:$0xf]
    %v739 = vld [vmem:[#allocation7 + $0x128] sm:$0xf]
    %v740 = vld [vmem:[#allocation7 + $0x12c] sm:$0xf]
    %v741 = vld [vmem:[#allocation7 + $0x130] sm:$0xf]
    %v742 = vld [vmem:[#allocation7 + $0x134] sm:$0xf]
    %v743 = vld [vmem:[#allocation7 + $0x138] sm:$0xf]
    %v744 = vld [vmem:[#allocation7 + $0x13c] sm:$0xf]
    %v745 = vld [vmem:[#allocation7 + $0x140] sm:$0xf]
    %v746 = vld [vmem:[#allocation7 + $0x144] sm:$0xf]
    %v747 = vld [vmem:[#allocation7 + $0x148] sm:$0xf]
    %v748 = vld [vmem:[#allocation7 + $0x14c] sm:$0xf]
    %v749 = vld [vmem:[#allocation7 + $0x150] sm:$0xf]
    %v750 = vld [vmem:[#allocation7 + $0x154] sm:$0xf]
    %v751 = vld [vmem:[#allocation7 + $0x158] sm:$0xf]
    %v752 = vld [vmem:[#allocation7 + $0x15c] sm:$0xf]
    %v753 = vld [vmem:[#allocation7 + $0x160] sm:$0xf]
    %v754 = vld [vmem:[#allocation7 + $0x164] sm:$0xf]
    %v755 = vld [vmem:[#allocation7 + $0x168] sm:$0xf]
    %v756 = vld [vmem:[#allocation7 + $0x16c] sm:$0xf]
    %v757 = vld [vmem:[#allocation7 + $0x170] sm:$0xf]
    %v758 = vld [vmem:[#allocation7 + $0x174] sm:$0xf]
    %v759 = vld [vmem:[#allocation7 + $0x178] sm:$0xf]
    %v760 = vld [vmem:[#allocation7 + $0x17c] sm:$0xf]
    %v761 = vld [vmem:[#allocation7 + $0x180] sm:$0xf]
    %v762 = vld [vmem:[#allocation7 + $0x184] sm:$0xf]
    %v763 = vld [vmem:[#allocation7 + $0x188] sm:$0xf]
    %v764 = vld [vmem:[#allocation7 + $0x18c] sm:$0xf]
    %v765 = vld [vmem:[#allocation7 + $0x190] sm:$0xf]
    %v766 = vld [vmem:[#allocation7 + $0x194] sm:$0xf]
    %v767 = vld [vmem:[#allocation7 + $0x198] sm:$0xf]
    %v768 = vld [vmem:[#allocation7 + $0x19c] sm:$0xf]
    %v769 = vld [vmem:[#allocation7 + $0x1a0] sm:$0xf]
    %v770 = vld [vmem:[#allocation7 + $0x1a4] sm:$0xf]
    %v771 = vld [vmem:[#allocation7 + $0x1a8] sm:$0xf]
    %v772 = vld [vmem:[#allocation7 + $0x1ac] sm:$0xf]
    %v773 = vld [vmem:[#allocation7 + $0x1b0] sm:$0xf]
    %v774 = vld [vmem:[#allocation7 + $0x1b4] sm:$0xf]
    %v775 = vld [vmem:[#allocation7 + $0x1b8] sm:$0xf]
    %v776 = vld [vmem:[#allocation7 + $0x1bc] sm:$0xf]
    %v777 = vld [vmem:[#allocation7 + $0x1c0] sm:$0xf]
    %v778 = vld [vmem:[#allocation7 + $0x1c4] sm:$0xf]
    %v779 = vld [vmem:[#allocation7 + $0x1c8] sm:$0xf]
    %v780 = vld [vmem:[#allocation7 + $0x1cc] sm:$0xf]
    %v781 = vld [vmem:[#allocation7 + $0x1d0] sm:$0xf]
    %v782 = vld [vmem:[#allocation7 + $0x1d4] sm:$0xf]
    %v783 = vld [vmem:[#allocation7 + $0x1d8] sm:$0xf]
    %v784 = vld [vmem:[#allocation7 + $0x1dc] sm:$0xf]
    %v785 = vld [vmem:[#allocation7 + $0x1e0] sm:$0xf]
    %v786 = vld [vmem:[#allocation7 + $0x1e4] sm:$0xf]
    %v787 = vld [vmem:[#allocation7 + $0x1e8] sm:$0xf]
    %v788 = vld [vmem:[#allocation7 + $0x1ec] sm:$0xf]
    %v789 = vld [vmem:[#allocation7 + $0x1f0] sm:$0xf]
    %v790 = vld [vmem:[#allocation7 + $0x1f4] sm:$0xf]
    %v791 = vld [vmem:[#allocation7 + $0x1f8] sm:$0xf]
    %v792 = vld [vmem:[#allocation7 + $0x1fc] sm:$0xf]
    %v793 = vld [vmem:[#allocation7 + $0x200] sm:$0xf]
    %v794 = vld [vmem:[#allocation7 + $0x204] sm:$0xf]
    %v795 = vld [vmem:[#allocation7 + $0x208] sm:$0xf]
    %v796 = vld [vmem:[#allocation7 + $0x20c] sm:$0xf]
    %v797 = vld [vmem:[#allocation7 + $0x210] sm:$0xf]
    %v798 = vld [vmem:[#allocation7 + $0x214] sm:$0xf]
    %v799 = vld [vmem:[#allocation7 + $0x218] sm:$0xf]
    %v800 = vld [vmem:[#allocation7 + $0x21c] sm:$0xf]
    %v801 = vld [vmem:[#allocation7 + $0x220] sm:$0xf]
    %v802 = vld [vmem:[#allocation7 + $0x224] sm:$0xf]
    %v803 = vld [vmem:[#allocation7 + $0x228] sm:$0xf]
    %v804 = vld [vmem:[#allocation7 + $0x22c] sm:$0xf]
    %v805 = vld [vmem:[#allocation7 + $0x230] sm:$0xf]
    %v806 = vld [vmem:[#allocation7 + $0x234] sm:$0xf]
    %v807 = vld [vmem:[#allocation7 + $0x238] sm:$0xf]
    %v808 = vld [vmem:[#allocation7 + $0x23c] sm:$0xf]
    %v953 = vunpack.c.l.b16 %v665
    %v954 = vunpack.c.l.b16 %v666
    %v955 = vunpack.c.l.b16 %v667
    %v956 = vunpack.c.l.b16 %v668
    %v957 = vunpack.c.l.b16 %v669
    %v958 = vunpack.c.l.b16 %v670
    %v959 = vunpack.c.l.b16 %v671
    %v960 = vunpack.c.l.b16 %v672
    %v961 = vunpack.c.l.b16 %v673
    %v962 = vunpack.c.l.b16 %v674
    %v963 = vunpack.c.l.b16 %v675
    %v964 = vunpack.c.l.b16 %v676
    %v965 = vunpack.c.l.b16 %v677
    %v966 = vunpack.c.l.b16 %v678
    %v967 = vunpack.c.l.b16 %v679
    %v968 = vunpack.c.l.b16 %v680
    %v969 = vunpack.c.l.b16 %v681
    %v970 = vunpack.c.l.b16 %v682
    %v971 = vunpack.c.l.b16 %v683
    %v972 = vunpack.c.l.b16 %v684
    %v973 = vunpack.c.l.b16 %v685
    %v974 = vunpack.c.l.b16 %v686
    %v975 = vunpack.c.l.b16 %v687
    %v976 = vunpack.c.l.b16 %v688
    %v977 = vunpack.c.l.b16 %v689
    %v978 = vunpack.c.l.b16 %v690
    %v979 = vunpack.c.l.b16 %v691
    %v980 = vunpack.c.l.b16 %v692
    %v981 = vunpack.c.l.b16 %v693
    %v982 = vunpack.c.l.b16 %v694
    %v983 = vunpack.c.l.b16 %v695
    %v984 = vunpack.c.l.b16 %v696
    %v985 = vunpack.c.l.b16 %v697
    %v986 = vunpack.c.l.b16 %v698
    %v987 = vunpack.c.l.b16 %v699
    %v988 = vunpack.c.l.b16 %v700
    %v989 = vunpack.c.l.b16 %v701
    %v990 = vunpack.c.l.b16 %v702
    %v991 = vunpack.c.l.b16 %v703
    %v992 = vunpack.c.l.b16 %v704
    %v993 = vunpack.c.l.b16 %v705
    %v994 = vunpack.c.l.b16 %v706
    %v995 = vunpack.c.l.b16 %v707
    %v996 = vunpack.c.l.b16 %v708
    %v997 = vunpack.c.l.b16 %v709
    %v998 = vunpack.c.l.b16 %v710
    %v999 = vunpack.c.l.b16 %v711
    %v1000 = vunpack.c.l.b16 %v712
    %v1001 = vunpack.c.l.b16 %v713
    %v1002 = vunpack.c.l.b16 %v714
    %v1003 = vunpack.c.l.b16 %v715
    %v1004 = vunpack.c.l.b16 %v716
    %v1005 = vunpack.c.l.b16 %v717
    %v1006 = vunpack.c.l.b16 %v718
    %v1007 = vunpack.c.l.b16 %v719
    %v1008 = vunpack.c.l.b16 %v720
    %v1009 = vunpack.c.l.b16 %v721
    %v1010 = vunpack.c.l.b16 %v722
    %v1011 = vunpack.c.l.b16 %v723
    %v1012 = vunpack.c.l.b16 %v724
    %v1013 = vunpack.c.l.b16 %v725
    %v1014 = vunpack.c.l.b16 %v726
    %v1015 = vunpack.c.l.b16 %v727
    %v1016 = vunpack.c.l.b16 %v728
    %v1017 = vunpack.c.l.b16 %v729
    %v1018 = vunpack.c.l.b16 %v730
    %v1019 = vunpack.c.l.b16 %v731
    %v1020 = vunpack.c.l.b16 %v732
    %v1021 = vunpack.c.l.b16 %v733
    %v1022 = vunpack.c.l.b16 %v734
    %v1023 = vunpack.c.l.b16 %v735
    %v1024 = vunpack.c.l.b16 %v736
    %v1025 = vunpack.c.l.b16 %v737
    %v1026 = vunpack.c.l.b16 %v738
    %v1027 = vunpack.c.l.b16 %v739
    %v1028 = vunpack.c.l.b16 %v740
    %v1029 = vunpack.c.l.b16 %v741
    %v1030 = vunpack.c.l.b16 %v742
    %v1031 = vunpack.c.l.b16 %v743
    %v1032 = vunpack.c.l.b16 %v744
    %v1033 = vunpack.c.l.b16 %v745
    %v1034 = vunpack.c.l.b16 %v746
    %v1035 = vunpack.c.l.b16 %v747
    %v1036 = vunpack.c.l.b16 %v748
    %v1037 = vunpack.c.l.b16 %v749
    %v1038 = vunpack.c.l.b16 %v750
    %v1039 = vunpack.c.l.b16 %v751
    %v1040 = vunpack.c.l.b16 %v752
    %v1041 = vunpack.c.l.b16 %v753
    %v1042 = vunpack.c.l.b16 %v754
    %v1043 = vunpack.c.l.b16 %v755
    %v1044 = vunpack.c.l.b16 %v756
    %v1045 = vunpack.c.l.b16 %v757
    %v1046 = vunpack.c.l.b16 %v758
    %v1047 = vunpack.c.l.b16 %v759
    %v1048 = vunpack.c.l.b16 %v760
    %v1049 = vunpack.c.l.b16 %v761
    %v1050 = vunpack.c.l.b16 %v762
    %v1051 = vunpack.c.l.b16 %v763
    %v1052 = vunpack.c.l.b16 %v764
    %v1053 = vunpack.c.l.b16 %v765
    %v1054 = vunpack.c.l.b16 %v766
    %v1055 = vunpack.c.l.b16 %v767
    %v1056 = vunpack.c.l.b16 %v768
    %v1057 = vunpack.c.l.b16 %v769
    %v1058 = vunpack.c.l.b16 %v770
    %v1059 = vunpack.c.l.b16 %v771
    %v1060 = vunpack.c.l.b16 %v772
    %v1061 = vunpack.c.l.b16 %v773
    %v1062 = vunpack.c.l.b16 %v774
    %v1063 = vunpack.c.l.b16 %v775
    %v1064 = vunpack.c.l.b16 %v776
    %v1065 = vunpack.c.l.b16 %v777
    %v1066 = vunpack.c.l.b16 %v778
    %v1067 = vunpack.c.l.b16 %v779
    %v1068 = vunpack.c.l.b16 %v780
    %v1069 = vunpack.c.l.b16 %v781
    %v1070 = vunpack.c.l.b16 %v782
    %v1071 = vunpack.c.l.b16 %v783
    %v1072 = vunpack.c.l.b16 %v784
    %v1073 = vunpack.c.l.b16 %v785
    %v1074 = vunpack.c.l.b16 %v786
    %v1075 = vunpack.c.l.b16 %v787
    %v1076 = vunpack.c.l.b16 %v788
    %v1077 = vunpack.c.l.b16 %v789
    %v1078 = vunpack.c.l.b16 %v790
    %v1079 = vunpack.c.l.b16 %v791
    %v1080 = vunpack.c.l.b16 %v792
    %v1081 = vunpack.c.l.b16 %v793
    %v1082 = vunpack.c.l.b16 %v794
    %v1083 = vunpack.c.l.b16 %v795
    %v1084 = vunpack.c.l.b16 %v796
    %v1085 = vunpack.c.l.b16 %v797
    %v1086 = vunpack.c.l.b16 %v798
    %v1087 = vunpack.c.l.b16 %v799
    %v1088 = vunpack.c.l.b16 %v800
    %v1089 = vunpack.c.l.b16 %v801
    %v1090 = vunpack.c.l.b16 %v802
    %v1091 = vunpack.c.l.b16 %v803
    %v1092 = vunpack.c.l.b16 %v804
    %v1093 = vunpack.c.l.b16 %v805
    %v1094 = vunpack.c.l.b16 %v806
    %v1095 = vunpack.c.l.b16 %v807
    %v1096 = vunpack.c.l.b16 %v808
    %v1097 = vpack.c.b16 %v954, %v953
    %v1098 = vpack.c.b16 %v956, %v955
    %v1099 = vpack.c.b16 %v958, %v957
    %v1100 = vpack.c.b16 %v960, %v959
    %v1101 = vpack.c.b16 %v962, %v961
    %v1102 = vpack.c.b16 %v964, %v963
    %v1103 = vpack.c.b16 %v966, %v965
    %v1104 = vpack.c.b16 %v968, %v967
    %v1105 = vpack.c.b16 %v970, %v969
    %v1106 = vpack.c.b16 %v972, %v971
    %v1107 = vpack.c.b16 %v974, %v973
    %v1108 = vpack.c.b16 %v976, %v975
    %v1109 = vpack.c.b16 %v978, %v977
    %v1110 = vpack.c.b16 %v980, %v979
    %v1111 = vpack.c.b16 %v982, %v981
    %v1112 = vpack.c.b16 %v984, %v983
    %v1113 = vpack.c.b16 %v986, %v985
    %v1114 = vpack.c.b16 %v988, %v987
    %v1115 = vpack.c.b16 %v990, %v989
    %v1116 = vpack.c.b16 %v992, %v991
    %v1117 = vpack.c.b16 %v994, %v993
    %v1118 = vpack.c.b16 %v996, %v995
    %v1119 = vpack.c.b16 %v998, %v997
    %v1120 = vpack.c.b16 %v1000, %v999
    %v1121 = vpack.c.b16 %v1002, %v1001
    %v1122 = vpack.c.b16 %v1004, %v1003
    %v1123 = vpack.c.b16 %v1006, %v1005
    %v1124 = vpack.c.b16 %v1008, %v1007
    %v1125 = vpack.c.b16 %v1010, %v1009
    %v1126 = vpack.c.b16 %v1012, %v1011
    %v1127 = vpack.c.b16 %v1014, %v1013
    %v1128 = vpack.c.b16 %v1016, %v1015
    %v1129 = vpack.c.b16 %v1018, %v1017
    %v1130 = vpack.c.b16 %v1020, %v1019
    %v1131 = vpack.c.b16 %v1022, %v1021
    %v1132 = vpack.c.b16 %v1024, %v1023
    %v1133 = vpack.c.b16 %v1026, %v1025
    %v1134 = vpack.c.b16 %v1028, %v1027
    %v1135 = vpack.c.b16 %v1030, %v1029
    %v1136 = vpack.c.b16 %v1032, %v1031
    %v1137 = vpack.c.b16 %v1034, %v1033
    %v1138 = vpack.c.b16 %v1036, %v1035
    %v1139 = vpack.c.b16 %v1038, %v1037
    %v1140 = vpack.c.b16 %v1040, %v1039
    %v1141 = vpack.c.b16 %v1042, %v1041
    %v1142 = vpack.c.b16 %v1044, %v1043
    %v1143 = vpack.c.b16 %v1046, %v1045
    %v1144 = vpack.c.b16 %v1048, %v1047
    %v1145 = vpack.c.b16 %v1050, %v1049
    %v1146 = vpack.c.b16 %v1052, %v1051
    %v1147 = vpack.c.b16 %v1054, %v1053
    %v1148 = vpack.c.b16 %v1056, %v1055
    %v1149 = vpack.c.b16 %v1058, %v1057
    %v1150 = vpack.c.b16 %v1060, %v1059
    %v1151 = vpack.c.b16 %v1062, %v1061
    %v1152 = vpack.c.b16 %v1064, %v1063
    %v1153 = vpack.c.b16 %v1066, %v1065
    %v1154 = vpack.c.b16 %v1068, %v1067
    %v1155 = vpack.c.b16 %v1070, %v1069
    %v1156 = vpack.c.b16 %v1072, %v1071
    %v1157 = vpack.c.b16 %v1074, %v1073
    %v1158 = vpack.c.b16 %v1076, %v1075
    %v1159 = vpack.c.b16 %v1078, %v1077
    %v1160 = vpack.c.b16 %v1080, %v1079
    %v1161 = vpack.c.b16 %v1082, %v1081
    %v1162 = vpack.c.b16 %v1084, %v1083
    %v1163 = vpack.c.b16 %v1086, %v1085
    %v1164 = vpack.c.b16 %v1088, %v1087
    %v1165 = vpack.c.b16 %v1090, %v1089
    %v1166 = vpack.c.b16 %v1092, %v1091
    %v1167 = vpack.c.b16 %v1094, %v1093
    %v1168 = vpack.c.b16 %v1096, %v1095
    %1241 = vmatprep.subr.bf16.mxu0 0
    %1242 = vmatpush1.bf16.msra.mxu0 %v1097
    %1243 = vmatprep.subr.bf16.mxu0 0
    %1244 = vmatpush1.bf16.msra.mxu0 %v1098
    %1245 = vmatprep.subr.bf16.mxu0 0
    %1246 = vmatpush1.bf16.msra.mxu0 %v1099
    %1247 = vmatprep.subr.bf16.mxu0 0
    %1248 = vmatpush1.bf16.msra.mxu0 %v1100
    %1249 = vmatprep.subr.bf16.mxu0 0
    %1250 = vmatpush1.bf16.msra.mxu0 %v1101
    %1251 = vmatprep.subr.bf16.mxu0 0
    %1252 = vmatpush1.bf16.msra.mxu0 %v1102
    %1253 = vmatprep.subr.bf16.mxu0 0
    %1254 = vmatpush1.bf16.msra.mxu0 %v1103
    %1255 = vmatprep.subr.bf16.mxu0 0
    %1256 = vmatpush1.bf16.msra.mxu0 %v1104
    %1257 = vmatprep.subr.bf16.mxu0 0
    %1258 = vmatpush1.bf16.msra.mxu0 %v1105
    %1259 = vmatprep.subr.bf16.mxu0 0
    %1260 = vmatpush1.bf16.msra.mxu0 %v1106
    %1261 = vmatprep.subr.bf16.mxu0 0
    %1262 = vmatpush1.bf16.msra.mxu0 %v1107
    %1263 = vmatprep.subr.bf16.mxu0 0
    %1264 = vmatpush1.bf16.msra.mxu0 %v1108
    %1265 = vmatprep.subr.bf16.mxu0 0
    %1266 = vmatpush1.bf16.msra.mxu0 %v1109
    %1267 = vmatprep.subr.bf16.mxu0 0
    %1268 = vmatpush1.bf16.msra.mxu0 %v1110
    %1269 = vmatprep.subr.bf16.mxu0 0
    %1270 = vmatpush1.bf16.msra.mxu0 %v1111
    %1271 = vmatprep.subr.bf16.mxu0 0
    %1272 = vmatpush1.bf16.msra.mxu0 %v1112
    %1273 = vmatprep.mubr.bf16.mxu0 %v594
    %1274 = vmatmul.mubr.bf16.gmra.mrb[0].mxu0 %v593
    %v1275 = vpop.f32.mrb[0].mxu0
    %v1276 = vadd.f32 0.0, %v1275
    %v1277 = vpop.f32.mrb[0].mxu0
    %v1278 = vpop.f32.mrb[0].mxu0
    %v1279 = vadd.f32 0.0, %v1278
    %v1280 = vpop.f32.mrb[0].mxu0
    %1281 = vmatprep.mubr.bf16.mxu0 %v603
    %1282 = vmatmul.mubr.bf16.gmra.mrb[0].mxu0 %v602
    %v1283 = vpop.f32.mrb[0].mxu0
    %v1284 = vadd.f32 0.0, %v1283
    %v1285 = vpop.f32.mrb[0].mxu0
    %v1286 = vpop.f32.mrb[0].mxu0
    %v1287 = vadd.f32 0.0, %v1286
    %v1288 = vpop.f32.mrb[0].mxu0
    %1289 = vmatprep.mubr.bf16.mxu0 %v612
    %1290 = vmatmul.mubr.bf16.gmra.mrb[0].mxu0 %v611
    %v1291 = vpop.f32.mrb[0].mxu0
    %v1292 = vadd.f32 0.0, %v1291
    %v1293 = vpop.f32.mrb[0].mxu0
    %v1294 = vpop.f32.mrb[0].mxu0
    %v1295 = vadd.f32 0.0, %v1294
    %v1296 = vpop.f32.mrb[0].mxu0
    %1297 = vmatprep.mubr.bf16.mxu0 %v621
    %1298 = vmatmul.mubr.bf16.gmra.mrb[0].mxu0 %v620
    %v1299 = vpop.f32.mrb[0].mxu0
    %v1300 = vadd.f32 0.0, %v1299
    %v1301 = vpop.f32.mrb[0].mxu0
    %v1302 = vpop.f32.mrb[0].mxu0
    %v1303 = vadd.f32 0.0, %v1302
    %v1304 = vpop.f32.mrb[0].mxu0
    %1305 = vmatprep.mubr.bf16.mxu0 %v630
    %1306 = vmatmul.mubr.bf16.gmra.mrb[0].mxu0 %v629
    %v1307 = vpop.f32.mrb[0].mxu0
    %v1308 = vadd.f32 0.0, %v1307
    %v1309 = vpop.f32.mrb[0].mxu0
    %v1310 = vpop.f32.mrb[0].mxu0
    %v1311 = vadd.f32 0.0, %v1310
    %v1312 = vpop.f32.mrb[0].mxu0
    %1313 = vmatprep.mubr.bf16.mxu0 %v639
    %1314 = vmatmul.mubr.bf16.gmra.mrb[0].mxu0 %v638
    %v1315 = vpop.f32.mrb[0].mxu0
    %v1316 = vadd.f32 0.0, %v1315
    %v1317 = vpop.f32.mrb[0].mxu0
    %v1318 = vpop.f32.mrb[0].mxu0
    %v1319 = vadd.f32 0.0, %v1318
    %v1320 = vpop.f32.mrb[0].mxu0
    %1321 = vmatprep.mubr.bf16.mxu0 %v648
    %1322 = vmatmul.mubr.bf16.gmra.mrb[0].mxu0 %v647
    %v1323 = vpop.f32.mrb[0].mxu0
    %v1324 = vadd.f32 0.0, %v1323
    %v1325 = vpop.f32.mrb[0].mxu0
    %v1326 = vpop.f32.mrb[0].mxu0
    %v1327 = vadd.f32 0.0, %v1326
    %v1328 = vpop.f32.mrb[0].mxu0
    %1329 = vmatprep.mubr.bf16.mxu0 %v657
    %1330 = vmatmul.mubr.bf16.gmra.mrb[0].mxu0 %v656
    %v1331 = vpop.f32.mrb[0].mxu0
    %v1332 = vadd.f32 0.0, %v1331
    %v1333 = vpop.f32.mrb[0].mxu0
    %v1334 = vpop.f32.mrb[0].mxu0
    %v1335 = vadd.f32 0.0, %v1334
    %v1336 = vpop.f32.mrb[0].mxu0
    %1337 = vdwg.mxu0
    %1338 = vmatprep.subr.bf16.mxu0 0
    %1339 = vmatpush1.bf16.msra.mxu0 %v1113
    %1340 = vmatprep.subr.bf16.mxu0 0
    %1341 = vmatpush1.bf16.msra.mxu0 %v1114
    %1342 = vmatprep.subr.bf16.mxu0 0
    %1343 = vmatpush1.bf16.msra.mxu0 %v1115
    %1344 = vmatprep.subr.bf16.mxu0 0
    %1345 = vmatpush1.bf16.msra.mxu0 %v1116
    %1346 = vmatprep.subr.bf16.mxu0 0
    %1347 = vmatpush1.bf16.msra.mxu0 %v1117
    %1348 = vmatprep.subr.bf16.mxu0 0
    %1349 = vmatpush1.bf16.msra.mxu0 %v1118
    %1350 = vmatprep.subr.bf16.mxu0 0
    %1351 = vmatpush1.bf16.msra.mxu0 %v1119
    %1352 = vmatprep.subr.bf16.mxu0 0
    %1353 = vmatpush1.bf16.msra.mxu0 %v1120
    %1354 = vmatprep.subr.bf16.mxu0 0
    %1355 = vmatpush1.bf16.msra.mxu0 %v1121
    %1356 = vmatprep.subr.bf16.mxu0 0
    %1357 = vmatpush1.bf16.msra.mxu0 %v1122
    %1358 = vmatprep.subr.bf16.mxu0 0
    %1359 = vmatpush1.bf16.msra.mxu0 %v1123
    %1360 = vmatprep.subr.bf16.mxu0 0
    %1361 = vmatpush1.bf16.msra.mxu0 %v1124
    %1362 = vmatprep.subr.bf16.mxu0 0
    %1363 = vmatpush1.bf16.msra.mxu0 %v1125
    %1364 = vmatprep.subr.bf16.mxu0 0
    %1365 = vmatpush1.bf16.msra.mxu0 %v1126
    %1366 = vmatprep.subr.bf16.mxu0 0
    %1367 = vmatpush1.bf16.msra.mxu0 %v1127
    %1368 = vmatprep.subr.bf16.mxu0 0
    %1369 = vmatpush1.bf16.msra.mxu0 %v1128
    %1370 = vmatprep.mubr.bf16.mxu0 %v596
    %1371 = vmatmul.mubr.bf16.gmra.mrb[0].mxu0 %v595
    %v1372 = vpop.f32.mrb[0].mxu0
    %v1373 = vadd.f32 %v1276, %v1372
    %v1374 = vpop.f32.mrb[0].mxu0
    %v1375 = vpop.f32.mrb[0].mxu0
    %v1376 = vadd.f32 %v1279, %v1375
    %v1377 = vpop.f32.mrb[0].mxu0
    %1378 = vmatprep.mubr.bf16.mxu0 %v605
    %1379 = vmatmul.mubr.bf16.gmra.mrb[0].mxu0 %v604
    %v1380 = vpop.f32.mrb[0].mxu0
    %v1381 = vadd.f32 %v1284, %v1380
    %v1382 = vpop.f32.mrb[0].mxu0
    %v1383 = vpop.f32.mrb[0].mxu0
    %v1384 = vadd.f32 %v1287, %v1383
    %v1385 = vpop.f32.mrb[0].mxu0
    %1386 = vmatprep.mubr.bf16.mxu0 %v614
    %1387 = vmatmul.mubr.bf16.gmra.mrb[0].mxu0 %v613
    %v1388 = vpop.f32.mrb[0].mxu0
    %v1389 = vadd.f32 %v1292, %v1388
    %v1390 = vpop.f32.mrb[0].mxu0
    %v1391 = vpop.f32.mrb[0].mxu0
    %v1392 = vadd.f32 %v1295, %v1391
    %v1393 = vpop.f32.mrb[0].mxu0
    %1394 = vmatprep.mubr.bf16.mxu0 %v623
    %1395 = vmatmul.mubr.bf16.gmra.mrb[0].mxu0 %v622
    %v1396 = vpop.f32.mrb[0].mxu0
    %v1397 = vadd.f32 %v1300, %v1396
    %v1398 = vpop.f32.mrb[0].mxu0
    %v1399 = vpop.f32.mrb[0].mxu0
    %v1400 = vadd.f32 %v1303, %v1399
    %v1401 = vpop.f32.mrb[0].mxu0
    %1402 = vmatprep.mubr.bf16.mxu0 %v632
    %1403 = vmatmul.mubr.bf16.gmra.mrb[0].mxu0 %v631
    %v1404 = vpop.f32.mrb[0].mxu0
    %v1405 = vadd.f32 %v1308, %v1404
    %v1406 = vpop.f32.mrb[0].mxu0
    %v1407 = vpop.f32.mrb[0].mxu0
    %v1408 = vadd.f32 %v1311, %v1407
    %v1409 = vpop.f32.mrb[0].mxu0
    %1410 = vmatprep.mubr.bf16.mxu0 %v641
    %1411 = vmatmul.mubr.bf16.gmra.mrb[0].mxu0 %v640
    %v1412 = vpop.f32.mrb[0].mxu0
    %v1413 = vadd.f32 %v1316, %v1412
    %v1414 = vpop.f32.mrb[0].mxu0
    %v1415 = vpop.f32.mrb[0].mxu0
    %v1416 = vadd.f32 %v1319, %v1415
    %v1417 = vpop.f32.mrb[0].mxu0
    %1418 = vmatprep.mubr.bf16.mxu0 %v650
    %1419 = vmatmul.mubr.bf16.gmra.mrb[0].mxu0 %v649
    %v1420 = vpop.f32.mrb[0].mxu0
    %v1421 = vadd.f32 %v1324, %v1420
    %v1422 = vpop.f32.mrb[0].mxu0
    %v1423 = vpop.f32.mrb[0].mxu0
    %v1424 = vadd.f32 %v1327, %v1423
    %v1425 = vpop.f32.mrb[0].mxu0
    %1426 = vmatprep.mubr.bf16.mxu0 %v659
    %1427 = vmatmul.mubr.bf16.gmra.mrb[0].mxu0 %v658
    %v1428 = vpop.f32.mrb[0].mxu0
    %v1429 = vadd.f32 %v1332, %v1428
    %v1430 = vpop.f32.mrb[0].mxu0
    %v1431 = vpop.f32.mrb[0].mxu0
    %v1432 = vadd.f32 %v1335, %v1431
    %v1433 = vpop.f32.mrb[0].mxu0
    %1434 = vdwg.mxu0
    %1435 = vmatprep.subr.bf16.mxu0 0
    %1436 = vmatpush1.bf16.msra.mxu0 %v1129
    %1437 = vmatprep.subr.bf16.mxu0 0
    %1438 = vmatpush1.bf16.msra.mxu0 %v1130
    %1439 = vmatprep.subr.bf16.mxu0 0
    %1440 = vmatpush1.bf16.msra.mxu0 %v1131
    %1441 = vmatprep.subr.bf16.mxu0 0
    %1442 = vmatpush1.bf16.msra.mxu0 %v1132
    %1443 = vmatprep.subr.bf16.mxu0 0
    %1444 = vmatpush1.bf16.msra.mxu0 %v1133
    %1445 = vmatprep.subr.bf16.mxu0 0
    %1446 = vmatpush1.bf16.msra.mxu0 %v1134
    %1447 = vmatprep.subr.bf16.mxu0 0
    %1448 = vmatpush1.bf16.msra.mxu0 %v1135
    %1449 = vmatprep.subr.bf16.mxu0 0
    %1450 = vmatpush1.bf16.msra.mxu0 %v1136
    %1451 = vmatprep.subr.bf16.mxu0 0
    %1452 = vmatpush1.bf16.msra.mxu0 %v1137
    %1453 = vmatprep.subr.bf16.mxu0 0
    %1454 = vmatpush1.bf16.msra.mxu0 %v1138
    %1455 = vmatprep.subr.bf16.mxu0 0
    %1456 = vmatpush1.bf16.msra.mxu0 %v1139
    %1457 = vmatprep.subr.bf16.mxu0 0
    %1458 = vmatpush1.bf16.msra.mxu0 %v1140
    %1459 = vmatprep.subr.bf16.mxu0 0
    %1460 = vmatpush1.bf16.msra.mxu0 %v1141
    %1461 = vmatprep.subr.bf16.mxu0 0
    %1462 = vmatpush1.bf16.msra.mxu0 %v1142
    %1463 = vmatprep.subr.bf16.mxu0 0
    %1464 = vmatpush1.bf16.msra.mxu0 %v1143
    %1465 = vmatprep.subr.bf16.mxu0 0
    %1466 = vmatpush1.bf16.msra.mxu0 %v1144
    %1467 = vmatprep.mubr.bf16.mxu0 %v598
    %1468 = vmatmul.mubr.bf16.gmra.mrb[0].mxu0 %v597
    %v1469 = vpop.f32.mrb[0].mxu0
    %v1470 = vadd.f32 %v1373, %v1469
    %v1471 = vpop.f32.mrb[0].mxu0
    %v1472 = vpop.f32.mrb[0].mxu0
    %v1473 = vadd.f32 %v1376, %v1472
    %v1474 = vpop.f32.mrb[0].mxu0
    %1475 = vmatprep.mubr.bf16.mxu0 %v607
    %1476 = vmatmul.mubr.bf16.gmra.mrb[0].mxu0 %v606
    %v1477 = vpop.f32.mrb[0].mxu0
    %v1478 = vadd.f32 %v1381, %v1477
    %v1479 = vpop.f32.mrb[0].mxu0
    %v1480 = vpop.f32.mrb[0].mxu0
    %v1481 = vadd.f32 %v1384, %v1480
    %v1482 = vpop.f32.mrb[0].mxu0
    %1483 = vmatprep.mubr.bf16.mxu0 %v616
    %1484 = vmatmul.mubr.bf16.gmra.mrb[0].mxu0 %v615
    %v1485 = vpop.f32.mrb[0].mxu0
    %v1486 = vadd.f32 %v1389, %v1485
    %v1487 = vpop.f32.mrb[0].mxu0
    %v1488 = vpop.f32.mrb[0].mxu0
    %v1489 = vadd.f32 %v1392, %v1488
    %v1490 = vpop.f32.mrb[0].mxu0
    %1491 = vmatprep.mubr.bf16.mxu0 %v625
    %1492 = vmatmul.mubr.bf16.gmra.mrb[0].mxu0 %v624
    %v1493 = vpop.f32.mrb[0].mxu0
    %v1494 = vadd.f32 %v1397, %v1493
    %v1495 = vpop.f32.mrb[0].mxu0
    %v1496 = vpop.f32.mrb[0].mxu0
    %v1497 = vadd.f32 %v1400, %v1496
    %v1498 = vpop.f32.mrb[0].mxu0
    %1499 = vmatprep.mubr.bf16.mxu0 %v634
    %1500 = vmatmul.mubr.bf16.gmra.mrb[0].mxu0 %v633
    %v1501 = vpop.f32.mrb[0].mxu0
    %v1502 = vadd.f32 %v1405, %v1501
    %v1503 = vpop.f32.mrb[0].mxu0
    %v1504 = vpop.f32.mrb[0].mxu0
    %v1505 = vadd.f32 %v1408, %v1504
    %v1506 = vpop.f32.mrb[0].mxu0
    %1507 = vmatprep.mubr.bf16.mxu0 %v643
    %1508 = vmatmul.mubr.bf16.gmra.mrb[0].mxu0 %v642
    %v1509 = vpop.f32.mrb[0].mxu0
    %v1510 = vadd.f32 %v1413, %v1509
    %v1511 = vpop.f32.mrb[0].mxu0
    %v1512 = vpop.f32.mrb[0].mxu0
    %v1513 = vadd.f32 %v1416, %v1512
    %v1514 = vpop.f32.mrb[0].mxu0
    %1515 = vmatprep.mubr.bf16.mxu0 %v652
    %1516 = vmatmul.mubr.bf16.gmra.mrb[0].mxu0 %v651
    %v1517 = vpop.f32.mrb[0].mxu0
    %v1518 = vadd.f32 %v1421, %v1517
    %v1519 = vpop.f32.mrb[0].mxu0
    %v1520 = vpop.f32.mrb[0].mxu0
    %v1521 = vadd.f32 %v1424, %v1520
    %v1522 = vpop.f32.mrb[0].mxu0
    %1523 = vmatprep.mubr.bf16.mxu0 %v661
    %1524 = vmatmul.mubr.bf16.gmra.mrb[0].mxu0 %v660
    %v1525 = vpop.f32.mrb[0].mxu0
    %v1526 = vadd.f32 %v1429, %v1525
    %v1527 = vpop.f32.mrb[0].mxu0
    %v1528 = vpop.f32.mrb[0].mxu0
    %v1529 = vadd.f32 %v1432, %v1528
    %v1530 = vpop.f32.mrb[0].mxu0
    %1531 = vdwg.mxu0
    %1532 = vmatprep.subr.bf16.mxu0 0
    %1533 = vmatpush1.bf16.msra.mxu0 %v1145
    %1534 = vmatprep.subr.bf16.mxu0 0
    %1535 = vmatpush1.bf16.msra.mxu0 %v1146
    %1536 = vmatprep.subr.bf16.mxu0 0
    %1537 = vmatpush1.bf16.msra.mxu0 %v1147
    %1538 = vmatprep.subr.bf16.mxu0 0
    %1539 = vmatpush1.bf16.msra.mxu0 %v1148
    %1540 = vmatprep.subr.bf16.mxu0 0
    %1541 = vmatpush1.bf16.msra.mxu0 %v1149
    %1542 = vmatprep.subr.bf16.mxu0 0
    %1543 = vmatpush1.bf16.msra.mxu0 %v1150
    %1544 = vmatprep.subr.bf16.mxu0 0
    %1545 = vmatpush1.bf16.msra.mxu0 %v1151
    %1546 = vmatprep.subr.bf16.mxu0 0
    %1547 = vmatpush1.bf16.msra.mxu0 %v1152
    %1548 = vmatprep.subr.bf16.mxu0 0
    %1549 = vmatpush1.bf16.msra.mxu0 %v1153
    %1550 = vmatprep.subr.bf16.mxu0 0
    %1551 = vmatpush1.bf16.msra.mxu0 %v1154
    %1552 = vmatprep.subr.bf16.mxu0 0
    %1553 = vmatpush1.bf16.msra.mxu0 %v1155
    %1554 = vmatprep.subr.bf16.mxu0 0
    %1555 = vmatpush1.bf16.msra.mxu0 %v1156
    %1556 = vmatprep.subr.bf16.mxu0 0
    %1557 = vmatpush1.bf16.msra.mxu0 %v1157
    %1558 = vmatprep.subr.bf16.mxu0 0
    %1559 = vmatpush1.bf16.msra.mxu0 %v1158
    %1560 = vmatprep.subr.bf16.mxu0 0
    %1561 = vmatpush1.bf16.msra.mxu0 %v1159
    %1562 = vmatprep.subr.bf16.mxu0 0
    %1563 = vmatpush1.bf16.msra.mxu0 %v1160
    %1564 = vmatprep.mubr.bf16.mxu0 %v600
    %1565 = vmatmul.mubr.bf16.gmra.mrb[0].mxu0 %v599
    %v1566 = vpop.f32.mrb[0].mxu0
    %v1567 = vadd.f32 %v1470, %v1566
    %v1568 = vpop.f32.mrb[0].mxu0
    %v1569 = vpop.f32.mrb[0].mxu0
    %v1570 = vadd.f32 %v1473, %v1569
    %v1571 = vpop.f32.mrb[0].mxu0
    %1572 = vmatprep.mubr.bf16.mxu0 %v609
    %1573 = vmatmul.mubr.bf16.gmra.mrb[0].mxu0 %v608
    %v1574 = vpop.f32.mrb[0].mxu0
    %v1575 = vadd.f32 %v1478, %v1574
    %v1576 = vpop.f32.mrb[0].mxu0
    %v1577 = vpop.f32.mrb[0].mxu0
    %v1578 = vadd.f32 %v1481, %v1577
    %v1579 = vpop.f32.mrb[0].mxu0
    %1580 = vmatprep.mubr.bf16.mxu0 %v618
    %1581 = vmatmul.mubr.bf16.gmra.mrb[0].mxu0 %v617
    %v1582 = vpop.f32.mrb[0].mxu0
    %v1583 = vadd.f32 %v1486, %v1582
    %v1584 = vpop.f32.mrb[0].mxu0
    %v1585 = vpop.f32.mrb[0].mxu0
    %v1586 = vadd.f32 %v1489, %v1585
    %v1587 = vpop.f32.mrb[0].mxu0
    %1588 = vmatprep.mubr.bf16.mxu0 %v627
    %1589 = vmatmul.mubr.bf16.gmra.mrb[0].mxu0 %v626
    %v1590 = vpop.f32.mrb[0].mxu0
    %v1591 = vadd.f32 %v1494, %v1590
    %v1592 = vpop.f32.mrb[0].mxu0
    %v1593 = vpop.f32.mrb[0].mxu0
    %v1594 = vadd.f32 %v1497, %v1593
    %v1595 = vpop.f32.mrb[0].mxu0
    %1596 = vmatprep.mubr.bf16.mxu0 %v636
    %1597 = vmatmul.mubr.bf16.gmra.mrb[0].mxu0 %v635
    %v1598 = vpop.f32.mrb[0].mxu0
    %v1599 = vadd.f32 %v1502, %v1598
    %v1600 = vpop.f32.mrb[0].mxu0
    %v1601 = vpop.f32.mrb[0].mxu0
    %v1602 = vadd.f32 %v1505, %v1601
    %v1603 = vpop.f32.mrb[0].mxu0
    %1604 = vmatprep.mubr.bf16.mxu0 %v645
    %1605 = vmatmul.mubr.bf16.gmra.mrb[0].mxu0 %v644
    %v1606 = vpop.f32.mrb[0].mxu0
    %v1607 = vadd.f32 %v1510, %v1606
    %v1608 = vpop.f32.mrb[0].mxu0
    %v1609 = vpop.f32.mrb[0].mxu0
    %v1610 = vadd.f32 %v1513, %v1609
    %v1611 = vpop.f32.mrb[0].mxu0
    %1612 = vmatprep.mubr.bf16.mxu0 %v654
    %1613 = vmatmul.mubr.bf16.gmra.mrb[0].mxu0 %v653
    %v1614 = vpop.f32.mrb[0].mxu0
    %v1615 = vadd.f32 %v1518, %v1614
    %v1616 = vpop.f32.mrb[0].mxu0
    %v1617 = vpop.f32.mrb[0].mxu0
    %v1618 = vadd.f32 %v1521, %v1617
    %v1619 = vpop.f32.mrb[0].mxu0
    %1620 = vmatprep.mubr.bf16.mxu0 %v663
    %1621 = vmatmul.mubr.bf16.gmra.mrb[0].mxu0 %v662
    %v1622 = vpop.f32.mrb[0].mxu0
    %v1623 = vadd.f32 %v1526, %v1622
    %v1624 = vpop.f32.mrb[0].mxu0
    %v1625 = vpop.f32.mrb[0].mxu0
    %v1626 = vadd.f32 %v1529, %v1625
    %v1627 = vpop.f32.mrb[0].mxu0
    %1628 = vdwg.mxu0
    %1629 = vmatprep.subr.bf16.mxu0 0
    %1630 = vmatpush1.bf16.msra.mxu0 %v1161
    %1631 = vmatprep.subr.bf16.mxu0 0
    %1632 = vmatpush1.bf16.msra.mxu0 %v1162
    %1633 = vmatprep.subr.bf16.mxu0 0
    %1634 = vmatpush1.bf16.msra.mxu0 %v1163
    %1635 = vmatprep.subr.bf16.mxu0 0
    %1636 = vmatpush1.bf16.msra.mxu0 %v1164
    %1637 = vmatprep.subr.bf16.mxu0 0
    %1638 = vmatpush1.bf16.msra.mxu0 %v1165
    %1639 = vmatprep.subr.bf16.mxu0 0
    %1640 = vmatpush1.bf16.msra.mxu0 %v1166
    %1641 = vmatprep.subr.bf16.mxu0 0
    %1642 = vmatpush1.bf16.msra.mxu0 %v1167
    %1643 = vmatprep.subr.bf16.mxu0 0
    %1644 = vmatpush1.bf16.msra.mxu0 %v1168
    %1645 = vmatprep.subr.bf16.mxu0 0
    %1646 = vmatpush1.bf16.msra.mxu0 0
    %1647 = vmatprep.subr.bf16.mxu0 0
    %1648 = vmatpush1.bf16.msra.mxu0 0
    %1649 = vmatprep.subr.bf16.mxu0 0
    %1650 = vmatpush1.bf16.msra.mxu0 0
    %1651 = vmatprep.subr.bf16.mxu0 0
    %1652 = vmatpush1.bf16.msra.mxu0 0
    %1653 = vmatprep.subr.bf16.mxu0 0
    %1654 = vmatpush1.bf16.msra.mxu0 0
    %1655 = vmatprep.subr.bf16.mxu0 0
    %1656 = vmatpush1.bf16.msra.mxu0 0
    %1657 = vmatprep.subr.bf16.mxu0 0
    %1658 = vmatpush1.bf16.msra.mxu0 0
    %1659 = vmatprep.subr.bf16.mxu0 0
    %1660 = vmatpush1.bf16.msra.mxu0 0
    %1661 = vmatprep.mubr.bf16.mxu0 0
    %1662 = vmatmul.mubr.bf16.gmra.mrb[0].mxu0 %v601
    %v1663 = vpop.f32.mrb[0].mxu0
    %v1664 = vadd.f32 %v1567, %v1663
    %v1665 = vpop.f32.mrb[0].mxu0
    %v1666 = vpop.f32.mrb[0].mxu0
    %v1667 = vadd.f32 %v1570, %v1666
    %v1668 = vpop.f32.mrb[0].mxu0
    %1669 = vmatprep.mubr.bf16.mxu0 0
    %1670 = vmatmul.mubr.bf16.gmra.mrb[0].mxu0 %v610
    %v1671 = vpop.f32.mrb[0].mxu0
    %v1672 = vadd.f32 %v1575, %v1671
    %v1673 = vpop.f32.mrb[0].mxu0
    %v1674 = vpop.f32.mrb[0].mxu0
    %v1675 = vadd.f32 %v1578, %v1674
    %v1676 = vpop.f32.mrb[0].mxu0
    %1677 = vmatprep.mubr.bf16.mxu0 0
    %1678 = vmatmul.mubr.bf16.gmra.mrb[0].mxu0 %v619
    %v1679 = vpop.f32.mrb[0].mxu0
    %v1680 = vadd.f32 %v1583, %v1679
    %v1681 = vpop.f32.mrb[0].mxu0
    %v1682 = vpop.f32.mrb[0].mxu0
    %v1683 = vadd.f32 %v1586, %v1682
    %v1684 = vpop.f32.mrb[0].mxu0
    %1685 = vmatprep.mubr.bf16.mxu0 0
    %1686 = vmatmul.mubr.bf16.gmra.mrb[0].mxu0 %v628
    %v1687 = vpop.f32.mrb[0].mxu0
    %v1688 = vadd.f32 %v1591, %v1687
    %v1689 = vpop.f32.mrb[0].mxu0
    %v1690 = vpop.f32.mrb[0].mxu0
    %v1691 = vadd.f32 %v1594, %v1690
    %v1692 = vpop.f32.mrb[0].mxu0
    %1693 = vmatprep.mubr.bf16.mxu0 0
    %1694 = vmatmul.mubr.bf16.gmra.mrb[0].mxu0 %v637
    %v1695 = vpop.f32.mrb[0].mxu0
    %v1696 = vadd.f32 %v1599, %v1695
    %v1697 = vpop.f32.mrb[0].mxu0
    %v1698 = vpop.f32.mrb[0].mxu0
    %v1699 = vadd.f32 %v1602, %v1698
    %v1700 = vpop.f32.mrb[0].mxu0
    %1701 = vmatprep.mubr.bf16.mxu0 0
    %1702 = vmatmul.mubr.bf16.gmra.mrb[0].mxu0 %v646
    %v1703 = vpop.f32.mrb[0].mxu0
    %v1704 = vadd.f32 %v1607, %v1703
    %v1705 = vpop.f32.mrb[0].mxu0
    %v1706 = vpop.f32.mrb[0].mxu0
    %v1707 = vadd.f32 %v1610, %v1706
    %v1708 = vpop.f32.mrb[0].mxu0
    %1709 = vmatprep.mubr.bf16.mxu0 0
    %1710 = vmatmul.mubr.bf16.gmra.mrb[0].mxu0 %v655
    %v1711 = vpop.f32.mrb[0].mxu0
    %v1712 = vadd.f32 %v1615, %v1711
    %v1713 = vpop.f32.mrb[0].mxu0
    %v1714 = vpop.f32.mrb[0].mxu0
    %v1715 = vadd.f32 %v1618, %v1714
    %v1716 = vpop.f32.mrb[0].mxu0
    %1717 = vmatprep.mubr.bf16.mxu0 0
    %1718 = vmatmul.mubr.bf16.gmra.mrb[0].mxu0 %v664
    %v1719 = vpop.f32.mrb[0].mxu0
    %v1720 = vadd.f32 %v1623, %v1719
    %v1721 = vpop.f32.mrb[0].mxu0
    %v1722 = vpop.f32.mrb[0].mxu0
    %v1723 = vadd.f32 %v1626, %v1722
    %v1724 = vpop.f32.mrb[0].mxu0
    %1725 = vdwg.mxu0
    %v1726 = vadd.f32 %v1664, %v1667
    %v1727 = vadd.f32 %v1726, %v1672
    %v1728 = vadd.f32 %v1727, %v1675
    %v1729 = vadd.f32 %v1728, %v1680
    %v1730 = vadd.f32 %v1729, %v1683
    %v1731 = vadd.f32 %v1730, %v1688
    %v1732 = vadd.f32 %v1731, %v1691
    %v1733 = vadd.f32 %v1732, %v1696
    %v1734 = vadd.f32 %v1733, %v1699
    %v1735 = vadd.f32 %v1734, %v1704
    %v1736 = vadd.f32 %v1735, %v1707
    %v1737 = vadd.f32 %v1736, %v1712
    %v1738 = vadd.f32 %v1737, %v1715
    %v1739 = vadd.f32 %v1738, %v1720
    %v1740 = vadd.f32 %v1739, %v1723
    %v1741 = vrot.slane %v1740, 4
    %v1742 = vadd.f32 %v1740, %v1741
    %v1743 = vrot.slane %v1742, 2
    %v1744 = vadd.f32 %v1742, %v1743
    %v1745 = vrot.slane %v1744, 1
    %v1746 = vadd.f32 %v1744, %v1745
    %v1747 = vrcp.pop 128.0
    %v1748 = vmul.f32 %v1746, %v1747
    %v1749 = vsub.f32 %v1664, %v1748
    %v1750 = vsub.f32 %v1667, %v1748
    %v1751 = vsub.f32 %v1672, %v1748
    %v1752 = vsub.f32 %v1675, %v1748
    %v1753 = vsub.f32 %v1680, %v1748
    %v1754 = vsub.f32 %v1683, %v1748
    %v1755 = vsub.f32 %v1688, %v1748
    %v1756 = vsub.f32 %v1691, %v1748
    %v1757 = vsub.f32 %v1696, %v1748
    %v1758 = vsub.f32 %v1699, %v1748
    %v1759 = vsub.f32 %v1704, %v1748
    %v1760 = vsub.f32 %v1707, %v1748
    %v1761 = vsub.f32 %v1712, %v1748
    %v1762 = vsub.f32 %v1715, %v1748
    %v1763 = vsub.f32 %v1720, %v1748
    %v1764 = vsub.f32 %v1723, %v1748
    %v1765 = vmul.f32 %v1749, %v1749
    %v1766 = vmul.f32 %v1750, %v1750
    %v1767 = vmul.f32 %v1751, %v1751
    %v1768 = vmul.f32 %v1752, %v1752
    %v1769 = vmul.f32 %v1753, %v1753
    %v1770 = vmul.f32 %v1754, %v1754
    %v1771 = vmul.f32 %v1755, %v1755
    %v1772 = vmul.f32 %v1756, %v1756
    %v1773 = vmul.f32 %v1757, %v1757
    %v1774 = vmul.f32 %v1758, %v1758
    %v1775 = vmul.f32 %v1759, %v1759
    %v1776 = vmul.f32 %v1760, %v1760
    %v1777 = vmul.f32 %v1761, %v1761
    %v1778 = vmul.f32 %v1762, %v1762
    %v1779 = vmul.f32 %v1763, %v1763
    %v1780 = vmul.f32 %v1764, %v1764
    %v1781 = vadd.f32 %v1765, %v1766
    %v1782 = vadd.f32 %v1781, %v1767
    %v1783 = vadd.f32 %v1782, %v1768
    %v1784 = vadd.f32 %v1783, %v1769
    %v1785 = vadd.f32 %v1784, %v1770
    %v1786 = vadd.f32 %v1785, %v1771
    %v1787 = vadd.f32 %v1786, %v1772
    %v1788 = vadd.f32 %v1787, %v1773
    %v1789 = vadd.f32 %v1788, %v1774
    %v1790 = vadd.f32 %v1789, %v1775
    %v1791 = vadd.f32 %v1790, %v1776
    %v1792 = vadd.f32 %v1791, %v1777
    %v1793 = vadd.f32 %v1792, %v1778
    %v1794 = vadd.f32 %v1793, %v1779
    %v1795 = vadd.f32 %v1794, %v1780
    %v1796 = vrot.slane %v1795, 4
    %v1797 = vadd.f32 %v1795, %v1796
    %v1798 = vrot.slane %v1797, 2
    %v1799 = vadd.f32 %v1797, %v1798
    %v1800 = vrot.slane %v1799, 1
    %v1801 = vadd.f32 %v1799, %v1800
    %v1802 = vmul.f32 %v1801, %v1747
    %v1803 = vld [vmem:[%s2] sm:$0x1]
    %v1804 = vadd.f32 %v1802, 1e-05
    %v1805 = vrsqrt.pop %v1804
    %v1806 = vmul.f32 %v1803, %v1805
    %v1807 = vld [vmem:[%s3] sm:$0x1]
    %v1808 = vmul.f32 %v1748, %v1806
    %v1809 = vsub.f32 %v1807, %v1808
    %v1811 = vlaneseq
    %v1812 = vshrl.u32 %v1811, 7
    %v1813 = vsub.s32 0, %v1812
    %v1814 = vrot.slane %v1806, %v1813
    %v1816 = vmul.f32 %v1664, %v1814
    %v1817 = vmul.f32 %v1667, %v1814
    %v1818 = vmul.f32 %v1672, %v1814
    %v1819 = vmul.f32 %v1675, %v1814
    %v1820 = vmul.f32 %v1680, %v1814
    %v1821 = vmul.f32 %v1683, %v1814
    %v1822 = vmul.f32 %v1688, %v1814
    %v1823 = vmul.f32 %v1691, %v1814
    %v1824 = vmul.f32 %v1696, %v1814
    %v1825 = vmul.f32 %v1699, %v1814
    %v1826 = vmul.f32 %v1704, %v1814
    %v1827 = vmul.f32 %v1707, %v1814
    %v1828 = vmul.f32 %v1712, %v1814
    %v1829 = vmul.f32 %v1715, %v1814
    %v1830 = vmul.f32 %v1720, %v1814
    %v1831 = vmul.f32 %v1723, %v1814
    %v1833 = vlaneseq
    %v1834 = vshrl.u32 %v1833, 7
    %v1835 = vsub.s32 0, %v1834
    %v1836 = vrot.slane %v1809, %v1835
    %v1838 = vadd.f32 %v1816, %v1836
    %v1839 = vadd.f32 %v1817, %v1836
    %v1840 = vadd.f32 %v1818, %v1836
    %v1841 = vadd.f32 %v1819, %v1836
    %v1842 = vadd.f32 %v1820, %v1836
    %v1843 = vadd.f32 %v1821, %v1836
    %v1844 = vadd.f32 %v1822, %v1836
    %v1845 = vadd.f32 %v1823, %v1836
    %v1846 = vadd.f32 %v1824, %v1836
    %v1847 = vadd.f32 %v1825, %v1836
    %v1848 = vadd.f32 %v1826, %v1836
    %v1849 = vadd.f32 %v1827, %v1836
    %v1850 = vadd.f32 %v1828, %v1836
    %v1851 = vadd.f32 %v1829, %v1836
    %v1852 = vadd.f32 %v1830, %v1836
    %v1853 = vadd.f32 %v1831, %v1836
    %v1854 = vmax.f32 %v1838, 0.0
    %v1855 = vmax.f32 %v1839, 0.0
    %v1856 = vmax.f32 %v1840, 0.0
    %v1857 = vmax.f32 %v1841, 0.0
    %v1858 = vmax.f32 %v1842, 0.0
    %v1859 = vmax.f32 %v1843, 0.0
    %v1860 = vmax.f32 %v1844, 0.0
    %v1861 = vmax.f32 %v1845, 0.0
    %v1862 = vmax.f32 %v1846, 0.0
    %v1863 = vmax.f32 %v1847, 0.0
    %v1864 = vmax.f32 %v1848, 0.0
    %v1865 = vmax.f32 %v1849, 0.0
    %v1866 = vmax.f32 %v1850, 0.0
    %v1867 = vmax.f32 %v1851, 0.0
    %v1868 = vmax.f32 %v1852, 0.0
    %v1869 = vmax.f32 %v1853, 0.0
    %1870 = vst [vmem:[%s238 + $0x1] sm:$0xff] %v1854
    %1871 = vst [vmem:[%s238 + $0x11] sm:$0xff] %v1855
    %1872 = vst [vmem:[%s238 + $0x21] sm:$0xff] %v1856
    %1873 = vst [vmem:[%s238 + $0x31] sm:$0xff] %v1857
    %1874 = vst [vmem:[%s238 + $0x41] sm:$0xff] %v1858
    %1875 = vst [vmem:[%s238 + $0x51] sm:$0xff] %v1859
    %1876 = vst [vmem:[%s238 + $0x61] sm:$0xff] %v1860
    %1877 = vst [vmem:[%s238 + $0x71] sm:$0xff] %v1861
    %1878 = vst [vmem:[%s238 + $0xa1] sm:$0xff] %v1862
    %1879 = vst [vmem:[%s238 + $0xb1] sm:$0xff] %v1863
    %1880 = vst [vmem:[%s238 + $0xc1] sm:$0xff] %v1864
    %1881 = vst [vmem:[%s238 + $0xd1] sm:$0xff] %v1865
    %1882 = vst [vmem:[%s238 + $0xe1] sm:$0xff] %v1866
    %1883 = vst [vmem:[%s238 + $0xf1] sm:$0xff] %v1867
    %1884 = vst [vmem:[%s238 + $0x101] sm:$0xff] %v1868
    %1885 = vst [vmem:[%s238 + $0x111] sm:$0xff] %v1869
    %v1886 = vld [vmem:[#allocation2] sm:$0xff]
    %v1887 = vld [vmem:[#allocation2 + $0x10] sm:$0xff]
    %v1888 = vld [vmem:[#allocation2 + $0x20] sm:$0xff]
    %v1889 = vld [vmem:[#allocation2 + $0x30] sm:$0xff]
    %v1890 = vld [vmem:[#allocation2 + $0x40] sm:$0xff]
    %v1891 = vld [vmem:[#allocation2 + $0x50] sm:$0xff]
    %v1892 = vld [vmem:[#allocation2 + $0x60] sm:$0xff]
    %v1893 = vld [vmem:[#allocation2 + $0x70] sm:$0xff]
    %v1894 = vld [vmem:[#allocation2 + $0xa0] sm:$0xff]
    %v1895 = vld [vmem:[#allocation2 + $0xb0] sm:$0xff]
    %v1896 = vld [vmem:[#allocation2 + $0xc0] sm:$0xff]
    %v1897 = vld [vmem:[#allocation2 + $0xd0] sm:$0xff]
    %v1898 = vld [vmem:[#allocation2 + $0xe0] sm:$0xff]
    %v1899 = vld [vmem:[#allocation2 + $0xf0] sm:$0xff]
    %v1900 = vld [vmem:[#allocation2 + $0x100] sm:$0xff]
    %v1901 = vld [vmem:[#allocation2 + $0x110] sm:$0xff]
    %v1902 = vpack.c.bf16 %v1887, %v1886
    %v1903 = vpack.c.bf16 %v1889, %v1888
    %v1904 = vpack.c.bf16 %v1891, %v1890
    %v1905 = vpack.c.bf16 %v1893, %v1892
    %v1906 = vpack.c.bf16 %v1895, %v1894
    %v1907 = vpack.c.bf16 %v1897, %v1896
    %v1908 = vpack.c.bf16 %v1899, %v1898
    %v1909 = vpack.c.bf16 %v1901, %v1900
    %1910 = vst [vmem:[#allocation3] sm:$0xff] %v1902
    %1911 = vst [vmem:[#allocation3 + $0x48] sm:$0xff] %v1903
    %1912 = vst [vmem:[#allocation3 + $0x90] sm:$0xff] %v1904
    %1913 = vst [vmem:[#allocation3 + $0xd8] sm:$0xff] %v1905
    %1914 = vst [vmem:[#allocation3 + $0x120] sm:$0xff] %v1906
    %1915 = vst [vmem:[#allocation3 + $0x168] sm:$0xff] %v1907
    %1916 = vst [vmem:[#allocation3 + $0x1b0] sm:$0xff] %v1908
    %1917 = vst [vmem:[#allocation3 + $0x1f8] sm:$0xff] %v1909
    %v1918 = vld [vmem:[#allocation2 + $0x1] sm:$0xff]
    %v1919 = vld [vmem:[#allocation2 + $0x11] sm:$0xff]
    %v1920 = vld [vmem:[#allocation2 + $0x21] sm:$0xff]
    %v1921 = vld [vmem:[#allocation2 + $0x31] sm:$0xff]
    %v1922 = vld [vmem:[#allocation2 + $0x41] sm:$0xff]
    %v1923 = vld [vmem:[#allocation2 + $0x51] sm:$0xff]
    %v1924 = vld [vmem:[#allocation2 + $0x61] sm:$0xff]
    %v1925 = vld [vmem:[#allocation2 + $0x71] sm:$0xff]
    %v1926 = vld [vmem:[#allocation2 + $0xa1] sm:$0xff]
    %v1927 = vld [vmem:[#allocation2 + $0xb1] sm:$0xff]
    %v1928 = vld [vmem:[#allocation2 + $0xc1] sm:$0xff]
    %v1929 = vld [vmem:[#allocation2 + $0xd1] sm:$0xff]
    %v1930 = vld [vmem:[#allocation2 + $0xe1] sm:$0xff]
    %v1931 = vld [vmem:[#allocation2 + $0xf1] sm:$0xff]
    %v1932 = vld [vmem:[#allocation2 + $0x101] sm:$0xff]
    %v1933 = vld [vmem:[#allocation2 + $0x111] sm:$0xff]
    %v1934 = vpack.c.bf16 %v1919, %v1918
    %v1935 = vpack.c.bf16 %v1921, %v1920
    %v1936 = vpack.c.bf16 %v1923, %v1922
    %v1937 = vpack.c.bf16 %v1925, %v1924
    %v1938 = vpack.c.bf16 %v1927, %v1926
    %v1939 = vpack.c.bf16 %v1929, %v1928
    %v1940 = vpack.c.bf16 %v1931, %v1930
    %v1941 = vpack.c.bf16 %v1933, %v1932
    %1942 = vst [vmem:[#allocation3 + $0x8] sm:$0xff] %v1934
    %1943 = vst [vmem:[#allocation3 + $0x50] sm:$0xff] %v1935
    %1944 = vst [vmem:[#allocation3 + $0x98] sm:$0xff] %v1936
    %1945 = vst [vmem:[#allocation3 + $0xe0] sm:$0xff] %v1937
    %1946 = vst [vmem:[#allocation3 + $0x128] sm:$0xff] %v1938
    %1947 = vst [vmem:[#allocation3 + $0x170] sm:$0xff] %v1939
    %1948 = vst [vmem:[#allocation3 + $0x1b8] sm:$0xff] %v1940
    %1949 = vst [vmem:[#allocation3 + $0x200] sm:$0xff] %v1941
    %v1950 = vld [vmem:[#allocation2 + $0x2] sm:$0xff]
    %v1951 = vld [vmem:[#allocation2 + $0x12] sm:$0xff]
    %v1952 = vld [vmem:[#allocation2 + $0x22] sm:$0xff]
    %v1953 = vld [vmem:[#allocation2 + $0x32] sm:$0xff]
    %v1954 = vld [vmem:[#allocation2 + $0x42] sm:$0xff]
    %v1955 = vld [vmem:[#allocation2 + $0x52] sm:$0xff]
    %v1956 = vld [vmem:[#allocation2 + $0x62] sm:$0xff]
    %v1957 = vld [vmem:[#allocation2 + $0x72] sm:$0xff]
    %v1958 = vld [vmem:[#allocation2 + $0xa2] sm:$0xff]
    %v1959 = vld [vmem:[#allocation2 + $0xb2] sm:$0xff]
    %v1960 = vld [vmem:[#allocation2 + $0xc2] sm:$0xff]
    %v1961 = vld [vmem:[#allocation2 + $0xd2] sm:$0xff]
    %v1962 = vld [vmem:[#allocation2 + $0xe2] sm:$0xff]
    %v1963 = vld [vmem:[#allocation2 + $0xf2] sm:$0xff]
    %v1964 = vld [vmem:[#allocation2 + $0x102] sm:$0xff]
    %v1965 = vld [vmem:[#allocation2 + $0x112] sm:$0xff]
    %v1966 = vpack.c.bf16 %v1951, %v1950
    %v1967 = vpack.c.bf16 %v1953, %v1952
    %v1968 = vpack.c.bf16 %v1955, %v1954
    %v1969 = vpack.c.bf16 %v1957, %v1956
    %v1970 = vpack.c.bf16 %v1959, %v1958
    %v1971 = vpack.c.bf16 %v1961, %v1960
    %v1972 = vpack.c.bf16 %v1963, %v1962
    %v1973 = vpack.c.bf16 %v1965, %v1964
    %1974 = vst [vmem:[#allocation3 + $0x10] sm:$0xff] %v1966
    %1975 = vst [vmem:[#allocation3 + $0x58] sm:$0xff] %v1967
    %1976 = vst [vmem:[#allocation3 + $0xa0] sm:$0xff] %v1968
    %1977 = vst [vmem:[#allocation3 + $0xe8] sm:$0xff] %v1969
    %1978 = vst [vmem:[#allocation3 + $0x130] sm:$0xff] %v1970
    %1979 = vst [vmem:[#allocation3 + $0x178] sm:$0xff] %v1971
    %1980 = vst [vmem:[#allocation3 + $0x1c0] sm:$0xff] %v1972
    %1981 = vst [vmem:[#allocation3 + $0x208] sm:$0xff] %v1973
    %v1982 = vld [vmem:[%s238] sm:$0xff]
    %v1983 = vld [vmem:[%s238 + $0x10] sm:$0xff]
    %v1984 = vld [vmem:[%s238 + $0x20] sm:$0xff]
    %v1985 = vld [vmem:[%s238 + $0x30] sm:$0xff]
    %v1986 = vld [vmem:[%s238 + $0x40] sm:$0xff]
    %v1987 = vld [vmem:[%s238 + $0x50] sm:$0xff]
    %v1988 = vld [vmem:[%s238 + $0x60] sm:$0xff]
    %v1989 = vld [vmem:[%s238 + $0x70] sm:$0xff]
    %v1990 = vld [vmem:[%s238 + $0xa0] sm:$0xff]
    %v1991 = vld [vmem:[%s238 + $0xb0] sm:$0xff]
    %v1992 = vld [vmem:[%s238 + $0xc0] sm:$0xff]
    %v1993 = vld [vmem:[%s238 + $0xd0] sm:$0xff]
    %v1994 = vld [vmem:[%s238 + $0xe0] sm:$0xff]
    %v1995 = vld [vmem:[%s238 + $0xf0] sm:$0xff]
    %v1996 = vld [vmem:[%s238 + $0x100] sm:$0xff]
    %v1997 = vld [vmem:[%s238 + $0x110] sm:$0xff]
    %v1998 = vpack.c.bf16 %v1983, %v1982
    %v1999 = vpack.c.bf16 %v1985, %v1984
    %v2000 = vpack.c.bf16 %v1987, %v1986
    %v2001 = vpack.c.bf16 %v1989, %v1988
    %v2002 = vpack.c.bf16 %v1991, %v1990
    %v2003 = vpack.c.bf16 %v1993, %v1992
    %v2004 = vpack.c.bf16 %v1995, %v1994
    %v2005 = vpack.c.bf16 %v1997, %v1996
    %2006 = vst [vmem:[#allocation3 + $0x18] sm:$0xff] %v1998
    %2007 = vst [vmem:[#allocation3 + $0x60] sm:$0xff] %v1999
    %2008 = vst [vmem:[#allocation3 + $0xa8] sm:$0xff] %v2000
    %2009 = vst [vmem:[#allocation3 + $0xf0] sm:$0xff] %v2001
    %2010 = vst [vmem:[#allocation3 + $0x138] sm:$0xff] %v2002
    %2011 = vst [vmem:[#allocation3 + $0x180] sm:$0xff] %v2003
    %2012 = vst [vmem:[#allocation3 + $0x1c8] sm:$0xff] %v2004
    %2013 = vst [vmem:[#allocation3 + $0x210] sm:$0xff] %v2005
    %v2014 = vld [vmem:[%s238 + $0x1] sm:$0xff]
    %v2015 = vld [vmem:[%s238 + $0x11] sm:$0xff]
    %v2016 = vld [vmem:[%s238 + $0x21] sm:$0xff]
    %v2017 = vld [vmem:[%s238 + $0x31] sm:$0xff]
    %v2018 = vld [vmem:[%s238 + $0x41] sm:$0xff]
    %v2019 = vld [vmem:[%s238 + $0x51] sm:$0xff]
    %v2020 = vld [vmem:[%s238 + $0x61] sm:$0xff]
    %v2021 = vld [vmem:[%s238 + $0x71] sm:$0xff]
    %v2022 = vld [vmem:[%s238 + $0xa1] sm:$0xff]
    %v2023 = vld [vmem:[%s238 + $0xb1] sm:$0xff]
    %v2024 = vld [vmem:[%s238 + $0xc1] sm:$0xff]
    %v2025 = vld [vmem:[%s238 + $0xd1] sm:$0xff]
    %v2026 = vld [vmem:[%s238 + $0xe1] sm:$0xff]
    %v2027 = vld [vmem:[%s238 + $0xf1] sm:$0xff]
    %v2028 = vld [vmem:[%s238 + $0x101] sm:$0xff]
    %v2029 = vld [vmem:[%s238 + $0x111] sm:$0xff]
    %v2030 = vpack.c.bf16 %v2015, %v2014
    %v2031 = vpack.c.bf16 %v2017, %v2016
    %v2032 = vpack.c.bf16 %v2019, %v2018
    %v2033 = vpack.c.bf16 %v2021, %v2020
    %v2034 = vpack.c.bf16 %v2023, %v2022
    %v2035 = vpack.c.bf16 %v2025, %v2024
    %v2036 = vpack.c.bf16 %v2027, %v2026
    %v2037 = vpack.c.bf16 %v2029, %v2028
    %2038 = vst [vmem:[#allocation3 + $0x20] sm:$0xff] %v2030
    %2039 = vst [vmem:[#allocation3 + $0x68] sm:$0xff] %v2031
    %2040 = vst [vmem:[#allocation3 + $0xb0] sm:$0xff] %v2032
    %2041 = vst [vmem:[#allocation3 + $0xf8] sm:$0xff] %v2033
    %2042 = vst [vmem:[#allocation3 + $0x140] sm:$0xff] %v2034
    %2043 = vst [vmem:[#allocation3 + $0x188] sm:$0xff] %v2035
    %2044 = vst [vmem:[#allocation3 + $0x1d0] sm:$0xff] %v2036
    %2045 = vst [vmem:[#allocation3 + $0x218] sm:$0xff] %v2037
    %v2046 = vld [vmem:[%s238 + $0x2] sm:$0xff]
    %v2047 = vld [vmem:[%s238 + $0x12] sm:$0xff]
    %v2048 = vld [vmem:[%s238 + $0x22] sm:$0xff]
    %v2049 = vld [vmem:[%s238 + $0x32] sm:$0xff]
    %v2050 = vld [vmem:[%s238 + $0x42] sm:$0xff]
    %v2051 = vld [vmem:[%s238 + $0x52] sm:$0xff]
    %v2052 = vld [vmem:[%s238 + $0x62] sm:$0xff]
    %v2053 = vld [vmem:[%s238 + $0x72] sm:$0xff]
    %v2054 = vld [vmem:[%s238 + $0xa2] sm:$0xff]
    %v2055 = vld [vmem:[%s238 + $0xb2] sm:$0xff]
    %v2056 = vld [vmem:[%s238 + $0xc2] sm:$0xff]
    %v2057 = vld [vmem:[%s238 + $0xd2] sm:$0xff]
    %v2058 = vld [vmem:[%s238 + $0xe2] sm:$0xff]
    %v2059 = vld [vmem:[%s238 + $0xf2] sm:$0xff]
    %v2060 = vld [vmem:[%s238 + $0x102] sm:$0xff]
    %v2061 = vld [vmem:[%s238 + $0x112] sm:$0xff]
    %v2062 = vpack.c.bf16 %v2047, %v2046
    %v2063 = vpack.c.bf16 %v2049, %v2048
    %v2064 = vpack.c.bf16 %v2051, %v2050
    %v2065 = vpack.c.bf16 %v2053, %v2052
    %v2066 = vpack.c.bf16 %v2055, %v2054
    %v2067 = vpack.c.bf16 %v2057, %v2056
    %v2068 = vpack.c.bf16 %v2059, %v2058
    %v2069 = vpack.c.bf16 %v2061, %v2060
    %2070 = vst [vmem:[#allocation3 + $0x28] sm:$0xff] %v2062
    %2071 = vst [vmem:[#allocation3 + $0x70] sm:$0xff] %v2063
    %2072 = vst [vmem:[#allocation3 + $0xb8] sm:$0xff] %v2064
    %2073 = vst [vmem:[#allocation3 + $0x100] sm:$0xff] %v2065
    %2074 = vst [vmem:[#allocation3 + $0x148] sm:$0xff] %v2066
    %2075 = vst [vmem:[#allocation3 + $0x190] sm:$0xff] %v2067
    %2076 = vst [vmem:[#allocation3 + $0x1d8] sm:$0xff] %v2068
    %2077 = vst [vmem:[#allocation3 + $0x220] sm:$0xff] %v2069
    %v2078 = vld [vmem:[%s496] sm:$0xff]
    %v2079 = vld [vmem:[%s496 + $0x10] sm:$0xff]
    %v2080 = vld [vmem:[%s496 + $0x20] sm:$0xff]
    %v2081 = vld [vmem:[%s496 + $0x30] sm:$0xff]
    %v2082 = vld [vmem:[%s496 + $0x40] sm:$0xff]
    %v2083 = vld [vmem:[%s496 + $0x50] sm:$0xff]
    %v2084 = vld [vmem:[%s496 + $0x60] sm:$0xff]
    %v2085 = vld [vmem:[%s496 + $0x70] sm:$0xff]
    %v2086 = vld [vmem:[%s496 + $0xa0] sm:$0xff]
    %v2087 = vld [vmem:[%s496 + $0xb0] sm:$0xff]
    %v2088 = vld [vmem:[%s496 + $0xc0] sm:$0xff]
    %v2089 = vld [vmem:[%s496 + $0xd0] sm:$0xff]
    %v2090 = vld [vmem:[%s496 + $0xe0] sm:$0xff]
    %v2091 = vld [vmem:[%s496 + $0xf0] sm:$0xff]
    %v2092 = vld [vmem:[%s496 + $0x100] sm:$0xff]
    %v2093 = vld [vmem:[%s496 + $0x110] sm:$0xff]
    %v2094 = vpack.c.bf16 %v2079, %v2078
    %v2095 = vpack.c.bf16 %v2081, %v2080
    %v2096 = vpack.c.bf16 %v2083, %v2082
    %v2097 = vpack.c.bf16 %v2085, %v2084
    %v2098 = vpack.c.bf16 %v2087, %v2086
    %v2099 = vpack.c.bf16 %v2089, %v2088
    %v2100 = vpack.c.bf16 %v2091, %v2090
    %v2101 = vpack.c.bf16 %v2093, %v2092
    %2102 = vst [vmem:[#allocation3 + $0x30] sm:$0xff] %v2094
    %2103 = vst [vmem:[#allocation3 + $0x78] sm:$0xff] %v2095
    %2104 = vst [vmem:[#allocation3 + $0xc0] sm:$0xff] %v2096
    %2105 = vst [vmem:[#allocation3 + $0x108] sm:$0xff] %v2097
    %2106 = vst [vmem:[#allocation3 + $0x150] sm:$0xff] %v2098
    %2107 = vst [vmem:[#allocation3 + $0x198] sm:$0xff] %v2099
    %2108 = vst [vmem:[#allocation3 + $0x1e0] sm:$0xff] %v2100
    %2109 = vst [vmem:[#allocation3 + $0x228] sm:$0xff] %v2101
    %v2110 = vld [vmem:[%s496 + $0x1] sm:$0xff]
    %v2111 = vld [vmem:[%s496 + $0x11] sm:$0xff]
    %v2112 = vld [vmem:[%s496 + $0x21] sm:$0xff]
    %v2113 = vld [vmem:[%s496 + $0x31] sm:$0xff]
    %v2114 = vld [vmem:[%s496 + $0x41] sm:$0xff]
    %v2115 = vld [vmem:[%s496 + $0x51] sm:$0xff]
    %v2116 = vld [vmem:[%s496 + $0x61] sm:$0xff]
    %v2117 = vld [vmem:[%s496 + $0x71] sm:$0xff]
    %v2118 = vld [vmem:[%s496 + $0xa1] sm:$0xff]
    %v2119 = vld [vmem:[%s496 + $0xb1] sm:$0xff]
    %v2120 = vld [vmem:[%s496 + $0xc1] sm:$0xff]
    %v2121 = vld [vmem:[%s496 + $0xd1] sm:$0xff]
    %v2122 = vld [vmem:[%s496 + $0xe1] sm:$0xff]
    %v2123 = vld [vmem:[%s496 + $0xf1] sm:$0xff]
    %v2124 = vld [vmem:[%s496 + $0x101] sm:$0xff]
    %v2125 = vld [vmem:[%s496 + $0x111] sm:$0xff]
    %v2126 = vpack.c.bf16 %v2111, %v2110
    %v2127 = vpack.c.bf16 %v2113, %v2112
    %v2128 = vpack.c.bf16 %v2115, %v2114
    %v2129 = vpack.c.bf16 %v2117, %v2116
    %v2130 = vpack.c.bf16 %v2119, %v2118
    %v2131 = vpack.c.bf16 %v2121, %v2120
    %v2132 = vpack.c.bf16 %v2123, %v2122
    %v2133 = vpack.c.bf16 %v2125, %v2124
    %2134 = vst [vmem:[#allocation3 + $0x38] sm:$0xff] %v2126
    %2135 = vst [vmem:[#allocation3 + $0x80] sm:$0xff] %v2127
    %2136 = vst [vmem:[#allocation3 + $0xc8] sm:$0xff] %v2128
    %2137 = vst [vmem:[#allocation3 + $0x110] sm:$0xff] %v2129
    %2138 = vst [vmem:[#allocation3 + $0x158] sm:$0xff] %v2130
    %2139 = vst [vmem:[#allocation3 + $0x1a0] sm:$0xff] %v2131
    %2140 = vst [vmem:[#allocation3 + $0x1e8] sm:$0xff] %v2132
    %2141 = vst [vmem:[#allocation3 + $0x230] sm:$0xff] %v2133
    %v2142 = vld [vmem:[%s496 + $0x2] sm:$0xff]
    %v2143 = vld [vmem:[%s496 + $0x12] sm:$0xff]
    %v2144 = vld [vmem:[%s496 + $0x22] sm:$0xff]
    %v2145 = vld [vmem:[%s496 + $0x32] sm:$0xff]
    %v2146 = vld [vmem:[%s496 + $0x42] sm:$0xff]
    %v2147 = vld [vmem:[%s496 + $0x52] sm:$0xff]
    %v2148 = vld [vmem:[%s496 + $0x62] sm:$0xff]
    %v2149 = vld [vmem:[%s496 + $0x72] sm:$0xff]
    %v2150 = vld [vmem:[%s496 + $0xa2] sm:$0xff]
    %v2151 = vld [vmem:[%s496 + $0xb2] sm:$0xff]
    %v2152 = vld [vmem:[%s496 + $0xc2] sm:$0xff]
    %v2153 = vld [vmem:[%s496 + $0xd2] sm:$0xff]
    %v2154 = vld [vmem:[%s496 + $0xe2] sm:$0xff]
    %v2155 = vld [vmem:[%s496 + $0xf2] sm:$0xff]
    %v2156 = vld [vmem:[%s496 + $0x102] sm:$0xff]
    %v2157 = vld [vmem:[%s496 + $0x112] sm:$0xff]
    %v2158 = vpack.c.bf16 %v2143, %v2142
    %v2159 = vpack.c.bf16 %v2145, %v2144
    %v2160 = vpack.c.bf16 %v2147, %v2146
    %v2161 = vpack.c.bf16 %v2149, %v2148
    %v2162 = vpack.c.bf16 %v2151, %v2150
    %v2163 = vpack.c.bf16 %v2153, %v2152
    %v2164 = vpack.c.bf16 %v2155, %v2154
    %v2165 = vpack.c.bf16 %v2157, %v2156
    %2166 = vst [vmem:[#allocation3 + $0x40] sm:$0xff] %v2158
    %2167 = vst [vmem:[#allocation3 + $0x88] sm:$0xff] %v2159
    %2168 = vst [vmem:[#allocation3 + $0xd0] sm:$0xff] %v2160
    %2169 = vst [vmem:[#allocation3 + $0x118] sm:$0xff] %v2161
    %2170 = vst [vmem:[#allocation3 + $0x160] sm:$0xff] %v2162
    %2171 = vst [vmem:[#allocation3 + $0x1a8] sm:$0xff] %v2163
    %2172 = vst [vmem:[#allocation3 + $0x1f0] sm:$0xff] %v2164
    %2173 = vst [vmem:[#allocation3 + $0x238] sm:$0xff] %v2165
    %v2174 = vld [vmem:[#allocation3] sm:$0xff]
    %v2175 = vld [vmem:[#allocation3 + $0x8] sm:$0xff]
    %v2176 = vld [vmem:[#allocation3 + $0x10] sm:$0xff]
    %v2177 = vld [vmem:[#allocation3 + $0x18] sm:$0xff]
    %v2178 = vld [vmem:[#allocation3 + $0x20] sm:$0xff]
    %v2179 = vld [vmem:[#allocation3 + $0x28] sm:$0xff]
    %v2180 = vld [vmem:[#allocation3 + $0x30] sm:$0xff]
    %v2181 = vld [vmem:[#allocation3 + $0x38] sm:$0xff]
    %v2182 = vld [vmem:[#allocation3 + $0x40] sm:$0xff]
    %v2183 = vld [vmem:[#allocation3 + $0x48] sm:$0xff]
    %v2184 = vld [vmem:[#allocation3 + $0x50] sm:$0xff]
    %v2185 = vld [vmem:[#allocation3 + $0x58] sm:$0xff]
    %v2186 = vld [vmem:[#allocation3 + $0x60] sm:$0xff]
    %v2187 = vld [vmem:[#allocation3 + $0x68] sm:$0xff]
    %v2188 = vld [vmem:[#allocation3 + $0x70] sm:$0xff]
    %v2189 = vld [vmem:[#allocation3 + $0x78] sm:$0xff]
    %v2190 = vld [vmem:[#allocation3 + $0x80] sm:$0xff]
    %v2191 = vld [vmem:[#allocation3 + $0x88] sm:$0xff]
    %v2192 = vld [vmem:[#allocation3 + $0x90] sm:$0xff]
    %v2193 = vld [vmem:[#allocation3 + $0x98] sm:$0xff]
    %v2194 = vld [vmem:[#allocation3 + $0xa0] sm:$0xff]
    %v2195 = vld [vmem:[#allocation3 + $0xa8] sm:$0xff]
    %v2196 = vld [vmem:[#allocation3 + $0xb0] sm:$0xff]
    %v2197 = vld [vmem:[#allocation3 + $0xb8] sm:$0xff]
    %v2198 = vld [vmem:[#allocation3 + $0xc0] sm:$0xff]
    %v2199 = vld [vmem:[#allocation3 + $0xc8] sm:$0xff]
    %v2200 = vld [vmem:[#allocation3 + $0xd0] sm:$0xff]
    %v2201 = vld [vmem:[#allocation3 + $0xd8] sm:$0xff]
    %v2202 = vld [vmem:[#allocation3 + $0xe0] sm:$0xff]
    %v2203 = vld [vmem:[#allocation3 + $0xe8] sm:$0xff]
    %v2204 = vld [vmem:[#allocation3 + $0xf0] sm:$0xff]
    %v2205 = vld [vmem:[#allocation3 + $0xf8] sm:$0xff]
    %v2206 = vld [vmem:[#allocation3 + $0x100] sm:$0xff]
    %v2207 = vld [vmem:[#allocation3 + $0x108] sm:$0xff]
    %v2208 = vld [vmem:[#allocation3 + $0x110] sm:$0xff]
    %v2209 = vld [vmem:[#allocation3 + $0x118] sm:$0xff]
    %v2210 = vld [vmem:[#allocation3 + $0x120] sm:$0xff]
    %v2211 = vld [vmem:[#allocation3 + $0x128] sm:$0xff]
    %v2212 = vld [vmem:[#allocation3 + $0x130] sm:$0xff]
    %v2213 = vld [vmem:[#allocation3 + $0x138] sm:$0xff]
    %v2214 = vld [vmem:[#allocation3 + $0x140] sm:$0xff]
    %v2215 = vld [vmem:[#allocation3 + $0x148] sm:$0xff]
    %v2216 = vld [vmem:[#allocation3 + $0x150] sm:$0xff]
    %v2217 = vld [vmem:[#allocation3 + $0x158] sm:$0xff]
    %v2218 = vld [vmem:[#allocation3 + $0x160] sm:$0xff]
    %v2219 = vld [vmem:[#allocation3 + $0x168] sm:$0xff]
    %v2220 = vld [vmem:[#allocation3 + $0x170] sm:$0xff]
    %v2221 = vld [vmem:[#allocation3 + $0x178] sm:$0xff]
    %v2222 = vld [vmem:[#allocation3 + $0x180] sm:$0xff]
    %v2223 = vld [vmem:[#allocation3 + $0x188] sm:$0xff]
    %v2224 = vld [vmem:[#allocation3 + $0x190] sm:$0xff]
    %v2225 = vld [vmem:[#allocation3 + $0x198] sm:$0xff]
    %v2226 = vld [vmem:[#allocation3 + $0x1a0] sm:$0xff]
    %v2227 = vld [vmem:[#allocation3 + $0x1a8] sm:$0xff]
    %v2228 = vld [vmem:[#allocation3 + $0x1b0] sm:$0xff]
    %v2229 = vld [vmem:[#allocation3 + $0x1b8] sm:$0xff]
    %v2230 = vld [vmem:[#allocation3 + $0x1c0] sm:$0xff]
    %v2231 = vld [vmem:[#allocation3 + $0x1c8] sm:$0xff]
    %v2232 = vld [vmem:[#allocation3 + $0x1d0] sm:$0xff]
    %v2233 = vld [vmem:[#allocation3 + $0x1d8] sm:$0xff]
    %v2234 = vld [vmem:[#allocation3 + $0x1e0] sm:$0xff]
    %v2235 = vld [vmem:[#allocation3 + $0x1e8] sm:$0xff]
    %v2236 = vld [vmem:[#allocation3 + $0x1f0] sm:$0xff]
    %v2237 = vld [vmem:[#allocation3 + $0x1f8] sm:$0xff]
    %v2238 = vld [vmem:[#allocation3 + $0x200] sm:$0xff]
    %v2239 = vld [vmem:[#allocation3 + $0x208] sm:$0xff]
    %v2240 = vld [vmem:[#allocation3 + $0x210] sm:$0xff]
    %v2241 = vld [vmem:[#allocation3 + $0x218] sm:$0xff]
    %v2242 = vld [vmem:[#allocation3 + $0x220] sm:$0xff]
    %v2243 = vld [vmem:[#allocation3 + $0x228] sm:$0xff]
    %v2244 = vld [vmem:[#allocation3 + $0x230] sm:$0xff]
    %v2245 = vld [vmem:[#allocation3 + $0x238] sm:$0xff]
    %v2246 = vld [vmem:[#allocation9] sm:$0xf]
    %v2247 = vld [vmem:[#allocation9 + $0x4] sm:$0xf]
    %v2248 = vld [vmem:[#allocation9 + $0x8] sm:$0xf]
    %v2249 = vld [vmem:[#allocation9 + $0xc] sm:$0xf]
    %v2250 = vld [vmem:[#allocation9 + $0x10] sm:$0xf]
    %v2251 = vld [vmem:[#allocation9 + $0x14] sm:$0xf]
    %v2252 = vld [vmem:[#allocation9 + $0x18] sm:$0xf]
    %v2253 = vld [vmem:[#allocation9 + $0x1c] sm:$0xf]
    %v2254 = vld [vmem:[#allocation9 + $0x20] sm:$0xf]
    %v2255 = vld [vmem:[#allocation9 + $0x24] sm:$0xf]
    %v2256 = vld [vmem:[#allocation9 + $0x28] sm:$0xf]
    %v2257 = vld [vmem:[#allocation9 + $0x2c] sm:$0xf]
    %v2258 = vld [vmem:[#allocation9 + $0x30] sm:$0xf]
    %v2259 = vld [vmem:[#allocation9 + $0x34] sm:$0xf]
    %v2260 = vld [vmem:[#allocation9 + $0x38] sm:$0xf]
    %v2261 = vld [vmem:[#allocation9 + $0x3c] sm:$0xf]
    %v2262 = vld [vmem:[#allocation9 + $0x40] sm:$0xf]
    %v2263 = vld [vmem:[#allocation9 + $0x44] sm:$0xf]
    %v2264 = vld [vmem:[#allocation9 + $0x48] sm:$0xf]
    %v2265 = vld [vmem:[#allocation9 + $0x4c] sm:$0xf]
    %v2266 = vld [vmem:[#allocation9 + $0x50] sm:$0xf]
    %v2267 = vld [vmem:[#allocation9 + $0x54] sm:$0xf]
    %v2268 = vld [vmem:[#allocation9 + $0x58] sm:$0xf]
    %v2269 = vld [vmem:[#allocation9 + $0x5c] sm:$0xf]
    %v2270 = vld [vmem:[#allocation9 + $0x60] sm:$0xf]
    %v2271 = vld [vmem:[#allocation9 + $0x64] sm:$0xf]
    %v2272 = vld [vmem:[#allocation9 + $0x68] sm:$0xf]
    %v2273 = vld [vmem:[#allocation9 + $0x6c] sm:$0xf]
    %v2274 = vld [vmem:[#allocation9 + $0x70] sm:$0xf]
    %v2275 = vld [vmem:[#allocation9 + $0x74] sm:$0xf]
    %v2276 = vld [vmem:[#allocation9 + $0x78] sm:$0xf]
    %v2277 = vld [vmem:[#allocation9 + $0x7c] sm:$0xf]
    %v2278 = vld [vmem:[#allocation9 + $0x80] sm:$0xf]
    %v2279 = vld [vmem:[#allocation9 + $0x84] sm:$0xf]
    %v2280 = vld [vmem:[#allocation9 + $0x88] sm:$0xf]
    %v2281 = vld [vmem:[#allocation9 + $0x8c] sm:$0xf]
    %v2282 = vld [vmem:[#allocation9 + $0x90] sm:$0xf]
    %v2283 = vld [vmem:[#allocation9 + $0x94] sm:$0xf]
    %v2284 = vld [vmem:[#allocation9 + $0x98] sm:$0xf]
    %v2285 = vld [vmem:[#allocation9 + $0x9c] sm:$0xf]
    %v2286 = vld [vmem:[#allocation9 + $0xa0] sm:$0xf]
    %v2287 = vld [vmem:[#allocation9 + $0xa4] sm:$0xf]
    %v2288 = vld [vmem:[#allocation9 + $0xa8] sm:$0xf]
    %v2289 = vld [vmem:[#allocation9 + $0xac] sm:$0xf]
    %v2290 = vld [vmem:[#allocation9 + $0xb0] sm:$0xf]
    %v2291 = vld [vmem:[#allocation9 + $0xb4] sm:$0xf]
    %v2292 = vld [vmem:[#allocation9 + $0xb8] sm:$0xf]
    %v2293 = vld [vmem:[#allocation9 + $0xbc] sm:$0xf]
    %v2294 = vld [vmem:[#allocation9 + $0xc0] sm:$0xf]
    %v2295 = vld [vmem:[#allocation9 + $0xc4] sm:$0xf]
    %v2296 = vld [vmem:[#allocation9 + $0xc8] sm:$0xf]
    %v2297 = vld [vmem:[#allocation9 + $0xcc] sm:$0xf]
    %v2298 = vld [vmem:[#allocation9 + $0xd0] sm:$0xf]
    %v2299 = vld [vmem:[#allocation9 + $0xd4] sm:$0xf]
    %v2300 = vld [vmem:[#allocation9 + $0xd8] sm:$0xf]
    %v2301 = vld [vmem:[#allocation9 + $0xdc] sm:$0xf]
    %v2302 = vld [vmem:[#allocation9 + $0xe0] sm:$0xf]
    %v2303 = vld [vmem:[#allocation9 + $0xe4] sm:$0xf]
    %v2304 = vld [vmem:[#allocation9 + $0xe8] sm:$0xf]
    %v2305 = vld [vmem:[#allocation9 + $0xec] sm:$0xf]
    %v2306 = vld [vmem:[#allocation9 + $0xf0] sm:$0xf]
    %v2307 = vld [vmem:[#allocation9 + $0xf4] sm:$0xf]
    %v2308 = vld [vmem:[#allocation9 + $0xf8] sm:$0xf]
    %v2309 = vld [vmem:[#allocation9 + $0xfc] sm:$0xf]
    %v2310 = vld [vmem:[#allocation9 + $0x100] sm:$0xf]
    %v2311 = vld [vmem:[#allocation9 + $0x104] sm:$0xf]
    %v2312 = vld [vmem:[#allocation9 + $0x108] sm:$0xf]
    %v2313 = vld [vmem:[#allocation9 + $0x10c] sm:$0xf]
    %v2314 = vld [vmem:[#allocation9 + $0x110] sm:$0xf]
    %v2315 = vld [vmem:[#allocation9 + $0x114] sm:$0xf]
    %v2316 = vld [vmem:[#allocation9 + $0x118] sm:$0xf]
    %v2317 = vld [vmem:[#allocation9 + $0x11c] sm:$0xf]
    %v2318 = vld [vmem:[#allocation9 + $0x120] sm:$0xf]
    %v2319 = vld [vmem:[#allocation9 + $0x124] sm:$0xf]
    %v2320 = vld [vmem:[#allocation9 + $0x128] sm:$0xf]
    %v2321 = vld [vmem:[#allocation9 + $0x12c] sm:$0xf]
    %v2322 = vld [vmem:[#allocation9 + $0x130] sm:$0xf]
    %v2323 = vld [vmem:[#allocation9 + $0x134] sm:$0xf]
    %v2324 = vld [vmem:[#allocation9 + $0x138] sm:$0xf]
    %v2325 = vld [vmem:[#allocation9 + $0x13c] sm:$0xf]
    %v2326 = vld [vmem:[#allocation9 + $0x140] sm:$0xf]
    %v2327 = vld [vmem:[#allocation9 + $0x144] sm:$0xf]
    %v2328 = vld [vmem:[#allocation9 + $0x148] sm:$0xf]
    %v2329 = vld [vmem:[#allocation9 + $0x14c] sm:$0xf]
    %v2330 = vld [vmem:[#allocation9 + $0x150] sm:$0xf]
    %v2331 = vld [vmem:[#allocation9 + $0x154] sm:$0xf]
    %v2332 = vld [vmem:[#allocation9 + $0x158] sm:$0xf]
    %v2333 = vld [vmem:[#allocation9 + $0x15c] sm:$0xf]
    %v2334 = vld [vmem:[#allocation9 + $0x160] sm:$0xf]
    %v2335 = vld [vmem:[#allocation9 + $0x164] sm:$0xf]
    %v2336 = vld [vmem:[#allocation9 + $0x168] sm:$0xf]
    %v2337 = vld [vmem:[#allocation9 + $0x16c] sm:$0xf]
    %v2338 = vld [vmem:[#allocation9 + $0x170] sm:$0xf]
    %v2339 = vld [vmem:[#allocation9 + $0x174] sm:$0xf]
    %v2340 = vld [vmem:[#allocation9 + $0x178] sm:$0xf]
    %v2341 = vld [vmem:[#allocation9 + $0x17c] sm:$0xf]
    %v2342 = vld [vmem:[#allocation9 + $0x180] sm:$0xf]
    %v2343 = vld [vmem:[#allocation9 + $0x184] sm:$0xf]
    %v2344 = vld [vmem:[#allocation9 + $0x188] sm:$0xf]
    %v2345 = vld [vmem:[#allocation9 + $0x18c] sm:$0xf]
    %v2346 = vld [vmem:[#allocation9 + $0x190] sm:$0xf]
    %v2347 = vld [vmem:[#allocation9 + $0x194] sm:$0xf]
    %v2348 = vld [vmem:[#allocation9 + $0x198] sm:$0xf]
    %v2349 = vld [vmem:[#allocation9 + $0x19c] sm:$0xf]
    %v2350 = vld [vmem:[#allocation9 + $0x1a0] sm:$0xf]
    %v2351 = vld [vmem:[#allocation9 + $0x1a4] sm:$0xf]
    %v2352 = vld [vmem:[#allocation9 + $0x1a8] sm:$0xf]
    %v2353 = vld [vmem:[#allocation9 + $0x1ac] sm:$0xf]
    %v2354 = vld [vmem:[#allocation9 + $0x1b0] sm:$0xf]
    %v2355 = vld [vmem:[#allocation9 + $0x1b4] sm:$0xf]
    %v2356 = vld [vmem:[#allocation9 + $0x1b8] sm:$0xf]
    %v2357 = vld [vmem:[#allocation9 + $0x1bc] sm:$0xf]
    %v2358 = vld [vmem:[#allocation9 + $0x1c0] sm:$0xf]
    %v2359 = vld [vmem:[#allocation9 + $0x1c4] sm:$0xf]
    %v2360 = vld [vmem:[#allocation9 + $0x1c8] sm:$0xf]
    %v2361 = vld [vmem:[#allocation9 + $0x1cc] sm:$0xf]
    %v2362 = vld [vmem:[#allocation9 + $0x1d0] sm:$0xf]
    %v2363 = vld [vmem:[#allocation9 + $0x1d4] sm:$0xf]
    %v2364 = vld [vmem:[#allocation9 + $0x1d8] sm:$0xf]
    %v2365 = vld [vmem:[#allocation9 + $0x1dc] sm:$0xf]
    %v2366 = vld [vmem:[#allocation9 + $0x1e0] sm:$0xf]
    %v2367 = vld [vmem:[#allocation9 + $0x1e4] sm:$0xf]
    %v2368 = vld [vmem:[#allocation9 + $0x1e8] sm:$0xf]
    %v2369 = vld [vmem:[#allocation9 + $0x1ec] sm:$0xf]
    %v2370 = vld [vmem:[#allocation9 + $0x1f0] sm:$0xf]
    %v2371 = vld [vmem:[#allocation9 + $0x1f4] sm:$0xf]
    %v2372 = vld [vmem:[#allocation9 + $0x1f8] sm:$0xf]
    %v2373 = vld [vmem:[#allocation9 + $0x1fc] sm:$0xf]
    %v2374 = vld [vmem:[#allocation9 + $0x200] sm:$0xf]
    %v2375 = vld [vmem:[#allocation9 + $0x204] sm:$0xf]
    %v2376 = vld [vmem:[#allocation9 + $0x208] sm:$0xf]
    %v2377 = vld [vmem:[#allocation9 + $0x20c] sm:$0xf]
    %v2378 = vld [vmem:[#allocation9 + $0x210] sm:$0xf]
    %v2379 = vld [vmem:[#allocation9 + $0x214] sm:$0xf]
    %v2380 = vld [vmem:[#allocation9 + $0x218] sm:$0xf]
    %v2381 = vld [vmem:[#allocation9 + $0x21c] sm:$0xf]
    %v2382 = vld [vmem:[#allocation9 + $0x220] sm:$0xf]
    %v2383 = vld [vmem:[#allocation9 + $0x224] sm:$0xf]
    %v2384 = vld [vmem:[#allocation9 + $0x228] sm:$0xf]
    %v2385 = vld [vmem:[#allocation9 + $0x22c] sm:$0xf]
    %v2386 = vld [vmem:[#allocation9 + $0x230] sm:$0xf]
    %v2387 = vld [vmem:[#allocation9 + $0x234] sm:$0xf]
    %v2388 = vld [vmem:[#allocation9 + $0x238] sm:$0xf]
    %v2389 = vld [vmem:[#allocation9 + $0x23c] sm:$0xf]
    %v2534 = vunpack.c.l.b16 %v2246
    %v2535 = vunpack.c.l.b16 %v2247
    %v2536 = vunpack.c.l.b16 %v2248
    %v2537 = vunpack.c.l.b16 %v2249
    %v2538 = vunpack.c.l.b16 %v2250
    %v2539 = vunpack.c.l.b16 %v2251
    %v2540 = vunpack.c.l.b16 %v2252
    %v2541 = vunpack.c.l.b16 %v2253
    %v2542 = vunpack.c.l.b16 %v2254
    %v2543 = vunpack.c.l.b16 %v2255
    %v2544 = vunpack.c.l.b16 %v2256
    %v2545 = vunpack.c.l.b16 %v2257
    %v2546 = vunpack.c.l.b16 %v2258
    %v2547 = vunpack.c.l.b16 %v2259
    %v2548 = vunpack.c.l.b16 %v2260
    %v2549 = vunpack.c.l.b16 %v2261
    %v2550 = vunpack.c.l.b16 %v2262
    %v2551 = vunpack.c.l.b16 %v2263
    %v2552 = vunpack.c.l.b16 %v2264
    %v2553 = vunpack.c.l.b16 %v2265
    %v2554 = vunpack.c.l.b16 %v2266
    %v2555 = vunpack.c.l.b16 %v2267
    %v2556 = vunpack.c.l.b16 %v2268
    %v2557 = vunpack.c.l.b16 %v2269
    %v2558 = vunpack.c.l.b16 %v2270
    %v2559 = vunpack.c.l.b16 %v2271
    %v2560 = vunpack.c.l.b16 %v2272
    %v2561 = vunpack.c.l.b16 %v2273
    %v2562 = vunpack.c.l.b16 %v2274
    %v2563 = vunpack.c.l.b16 %v2275
    %v2564 = vunpack.c.l.b16 %v2276
    %v2565 = vunpack.c.l.b16 %v2277
    %v2566 = vunpack.c.l.b16 %v2278
    %v2567 = vunpack.c.l.b16 %v2279
    %v2568 = vunpack.c.l.b16 %v2280
    %v2569 = vunpack.c.l.b16 %v2281
    %v2570 = vunpack.c.l.b16 %v2282
    %v2571 = vunpack.c.l.b16 %v2283
    %v2572 = vunpack.c.l.b16 %v2284
    %v2573 = vunpack.c.l.b16 %v2285
    %v2574 = vunpack.c.l.b16 %v2286
    %v2575 = vunpack.c.l.b16 %v2287
    %v2576 = vunpack.c.l.b16 %v2288
    %v2577 = vunpack.c.l.b16 %v2289
    %v2578 = vunpack.c.l.b16 %v2290
    %v2579 = vunpack.c.l.b16 %v2291
    %v2580 = vunpack.c.l.b16 %v2292
    %v2581 = vunpack.c.l.b16 %v2293
    %v2582 = vunpack.c.l.b16 %v2294
    %v2583 = vunpack.c.l.b16 %v2295
    %v2584 = vunpack.c.l.b16 %v2296
    %v2585 = vunpack.c.l.b16 %v2297
    %v2586 = vunpack.c.l.b16 %v2298
    %v2587 = vunpack.c.l.b16 %v2299
    %v2588 = vunpack.c.l.b16 %v2300
    %v2589 = vunpack.c.l.b16 %v2301
    %v2590 = vunpack.c.l.b16 %v2302
    %v2591 = vunpack.c.l.b16 %v2303
    %v2592 = vunpack.c.l.b16 %v2304
    %v2593 = vunpack.c.l.b16 %v2305
    %v2594 = vunpack.c.l.b16 %v2306
    %v2595 = vunpack.c.l.b16 %v2307
    %v2596 = vunpack.c.l.b16 %v2308
    %v2597 = vunpack.c.l.b16 %v2309
    %v2598 = vunpack.c.l.b16 %v2310
    %v2599 = vunpack.c.l.b16 %v2311
    %v2600 = vunpack.c.l.b16 %v2312
    %v2601 = vunpack.c.l.b16 %v2313
    %v2602 = vunpack.c.l.b16 %v2314
    %v2603 = vunpack.c.l.b16 %v2315
    %v2604 = vunpack.c.l.b16 %v2316
    %v2605 = vunpack.c.l.b16 %v2317
    %v2606 = vunpack.c.l.b16 %v2318
    %v2607 = vunpack.c.l.b16 %v2319
    %v2608 = vunpack.c.l.b16 %v2320
    %v2609 = vunpack.c.l.b16 %v2321
    %v2610 = vunpack.c.l.b16 %v2322
    %v2611 = vunpack.c.l.b16 %v2323
    %v2612 = vunpack.c.l.b16 %v2324
    %v2613 = vunpack.c.l.b16 %v2325
    %v2614 = vunpack.c.l.b16 %v2326
    %v2615 = vunpack.c.l.b16 %v2327
    %v2616 = vunpack.c.l.b16 %v2328
    %v2617 = vunpack.c.l.b16 %v2329
    %v2618 = vunpack.c.l.b16 %v2330
    %v2619 = vunpack.c.l.b16 %v2331
    %v2620 = vunpack.c.l.b16 %v2332
    %v2621 = vunpack.c.l.b16 %v2333
    %v2622 = vunpack.c.l.b16 %v2334
    %v2623 = vunpack.c.l.b16 %v2335
    %v2624 = vunpack.c.l.b16 %v2336
    %v2625 = vunpack.c.l.b16 %v2337
    %v2626 = vunpack.c.l.b16 %v2338
    %v2627 = vunpack.c.l.b16 %v2339
    %v2628 = vunpack.c.l.b16 %v2340
    %v2629 = vunpack.c.l.b16 %v2341
    %v2630 = vunpack.c.l.b16 %v2342
    %v2631 = vunpack.c.l.b16 %v2343
    %v2632 = vunpack.c.l.b16 %v2344
    %v2633 = vunpack.c.l.b16 %v2345
    %v2634 = vunpack.c.l.b16 %v2346
    %v2635 = vunpack.c.l.b16 %v2347
    %v2636 = vunpack.c.l.b16 %v2348
    %v2637 = vunpack.c.l.b16 %v2349
    %v2638 = vunpack.c.l.b16 %v2350
    %v2639 = vunpack.c.l.b16 %v2351
    %v2640 = vunpack.c.l.b16 %v2352
    %v2641 = vunpack.c.l.b16 %v2353
    %v2642 = vunpack.c.l.b16 %v2354
    %v2643 = vunpack.c.l.b16 %v2355
    %v2644 = vunpack.c.l.b16 %v2356
    %v2645 = vunpack.c.l.b16 %v2357
    %v2646 = vunpack.c.l.b16 %v2358
    %v2647 = vunpack.c.l.b16 %v2359
    %v2648 = vunpack.c.l.b16 %v2360
    %v2649 = vunpack.c.l.b16 %v2361
    %v2650 = vunpack.c.l.b16 %v2362
    %v2651 = vunpack.c.l.b16 %v2363
    %v2652 = vunpack.c.l.b16 %v2364
    %v2653 = vunpack.c.l.b16 %v2365
    %v2654 = vunpack.c.l.b16 %v2366
    %v2655 = vunpack.c.l.b16 %v2367
    %v2656 = vunpack.c.l.b16 %v2368
    %v2657 = vunpack.c.l.b16 %v2369
    %v2658 = vunpack.c.l.b16 %v2370
    %v2659 = vunpack.c.l.b16 %v2371
    %v2660 = vunpack.c.l.b16 %v2372
    %v2661 = vunpack.c.l.b16 %v2373
    %v2662 = vunpack.c.l.b16 %v2374
    %v2663 = vunpack.c.l.b16 %v2375
    %v2664 = vunpack.c.l.b16 %v2376
    %v2665 = vunpack.c.l.b16 %v2377
    %v2666 = vunpack.c.l.b16 %v2378
    %v2667 = vunpack.c.l.b16 %v2379
    %v2668 = vunpack.c.l.b16 %v2380
    %v2669 = vunpack.c.l.b16 %v2381
    %v2670 = vunpack.c.l.b16 %v2382
    %v2671 = vunpack.c.l.b16 %v2383
    %v2672 = vunpack.c.l.b16 %v2384
    %v2673 = vunpack.c.l.b16 %v2385
    %v2674 = vunpack.c.l.b16 %v2386
    %v2675 = vunpack.c.l.b16 %v2387
    %v2676 = vunpack.c.l.b16 %v2388
    %v2677 = vunpack.c.l.b16 %v2389
    %v2678 = vpack.c.b16 %v2535, %v2534
    %v2679 = vpack.c.b16 %v2537, %v2536
    %v2680 = vpack.c.b16 %v2539, %v2538
    %v2681 = vpack.c.b16 %v2541, %v2540
    %v2682 = vpack.c.b16 %v2543, %v2542
    %v2683 = vpack.c.b16 %v2545, %v2544
    %v2684 = vpack.c.b16 %v2547, %v2546
    %v2685 = vpack.c.b16 %v2549, %v2548
    %v2686 = vpack.c.b16 %v2551, %v2550
    %v2687 = vpack.c.b16 %v2553, %v2552
    %v2688 = vpack.c.b16 %v2555, %v2554
    %v2689 = vpack.c.b16 %v2557, %v2556
    %v2690 = vpack.c.b16 %v2559, %v2558
    %v2691 = vpack.c.b16 %v2561, %v2560
    %v2692 = vpack.c.b16 %v2563, %v2562
    %v2693 = vpack.c.b16 %v2565, %v2564
    %v2694 = vpack.c.b16 %v2567, %v2566
    %v2695 = vpack.c.b16 %v2569, %v2568
    %v2696 = vpack.c.b16 %v2571, %v2570
    %v2697 = vpack.c.b16 %v2573, %v2572
    %v2698 = vpack.c.b16 %v2575, %v2574
    %v2699 = vpack.c.b16 %v2577, %v2576
    %v2700 = vpack.c.b16 %v2579, %v2578
    %v2701 = vpack.c.b16 %v2581, %v2580
    %v2702 = vpack.c.b16 %v2583, %v2582
    %v2703 = vpack.c.b16 %v2585, %v2584
    %v2704 = vpack.c.b16 %v2587, %v2586
    %v2705 = vpack.c.b16 %v2589, %v2588
    %v2706 = vpack.c.b16 %v2591, %v2590
    %v2707 = vpack.c.b16 %v2593, %v2592
    %v2708 = vpack.c.b16 %v2595, %v2594
    %v2709 = vpack.c.b16 %v2597, %v2596
    %v2710 = vpack.c.b16 %v2599, %v2598
    %v2711 = vpack.c.b16 %v2601, %v2600
    %v2712 = vpack.c.b16 %v2603, %v2602
    %v2713 = vpack.c.b16 %v2605, %v2604
    %v2714 = vpack.c.b16 %v2607, %v2606
    %v2715 = vpack.c.b16 %v2609, %v2608
    %v2716 = vpack.c.b16 %v2611, %v2610
    %v2717 = vpack.c.b16 %v2613, %v2612
    %v2718 = vpack.c.b16 %v2615, %v2614
    %v2719 = vpack.c.b16 %v2617, %v2616
    %v2720 = vpack.c.b16 %v2619, %v2618
    %v2721 = vpack.c.b16 %v2621, %v2620
    %v2722 = vpack.c.b16 %v2623, %v2622
    %v2723 = vpack.c.b16 %v2625, %v2624
    %v2724 = vpack.c.b16 %v2627, %v2626
    %v2725 = vpack.c.b16 %v2629, %v2628
    %v2726 = vpack.c.b16 %v2631, %v2630
    %v2727 = vpack.c.b16 %v2633, %v2632
    %v2728 = vpack.c.b16 %v2635, %v2634
    %v2729 = vpack.c.b16 %v2637, %v2636
    %v2730 = vpack.c.b16 %v2639, %v2638
    %v2731 = vpack.c.b16 %v2641, %v2640
    %v2732 = vpack.c.b16 %v2643, %v2642
    %v2733 = vpack.c.b16 %v2645, %v2644
    %v2734 = vpack.c.b16 %v2647, %v2646
    %v2735 = vpack.c.b16 %v2649, %v2648
    %v2736 = vpack.c.b16 %v2651, %v2650
    %v2737 = vpack.c.b16 %v2653, %v2652
    %v2738 = vpack.c.b16 %v2655, %v2654
    %v2739 = vpack.c.b16 %v2657, %v2656
    %v2740 = vpack.c.b16 %v2659, %v2658
    %v2741 = vpack.c.b16 %v2661, %v2660
    %v2742 = vpack.c.b16 %v2663, %v2662
    %v2743 = vpack.c.b16 %v2665, %v2664
    %v2744 = vpack.c.b16 %v2667, %v2666
    %v2745 = vpack.c.b16 %v2669, %v2668
    %v2746 = vpack.c.b16 %v2671, %v2670
    %v2747 = vpack.c.b16 %v2673, %v2672
    %v2748 = vpack.c.b16 %v2675, %v2674
    %v2749 = vpack.c.b16 %v2677, %v2676
    %2822 = vmatprep.subr.bf16.mxu0 0
    %2823 = vmatpush1.bf16.msra.mxu0 %v2678
    %2824 = vmatprep.subr.bf16.mxu0 0
    %2825 = vmatpush1.bf16.msra.mxu0 %v2679
    %2826 = vmatprep.subr.bf16.mxu0 0
    %2827 = vmatpush1.bf16.msra.mxu0 %v2680
    %2828 = vmatprep.subr.bf16.mxu0 0
    %2829 = vmatpush1.bf16.msra.mxu0 %v2681
    %2830 = vmatprep.subr.bf16.mxu0 0
    %2831 = vmatpush1.bf16.msra.mxu0 %v2682
    %2832 = vmatprep.subr.bf16.mxu0 0
    %2833 = vmatpush1.bf16.msra.mxu0 %v2683
    %2834 = vmatprep.subr.bf16.mxu0 0
    %2835 = vmatpush1.bf16.msra.mxu0 %v2684
    %2836 = vmatprep.subr.bf16.mxu0 0
    %2837 = vmatpush1.bf16.msra.mxu0 %v2685
    %2838 = vmatprep.subr.bf16.mxu0 0
    %2839 = vmatpush1.bf16.msra.mxu0 %v2686
    %2840 = vmatprep.subr.bf16.mxu0 0
    %2841 = vmatpush1.bf16.msra.mxu0 %v2687
    %2842 = vmatprep.subr.bf16.mxu0 0
    %2843 = vmatpush1.bf16.msra.mxu0 %v2688
    %2844 = vmatprep.subr.bf16.mxu0 0
    %2845 = vmatpush1.bf16.msra.mxu0 %v2689
    %2846 = vmatprep.subr.bf16.mxu0 0
    %2847 = vmatpush1.bf16.msra.mxu0 %v2690
    %2848 = vmatprep.subr.bf16.mxu0 0
    %2849 = vmatpush1.bf16.msra.mxu0 %v2691
    %2850 = vmatprep.subr.bf16.mxu0 0
    %2851 = vmatpush1.bf16.msra.mxu0 %v2692
    %2852 = vmatprep.subr.bf16.mxu0 0
    %2853 = vmatpush1.bf16.msra.mxu0 %v2693
    %2854 = vmatprep.mubr.bf16.mxu0 %v2175
    %2855 = vmatmul.mubr.bf16.gmra.mrb[0].mxu0 %v2174
    %v2856 = vpop.f32.mrb[0].mxu0
    %v2857 = vadd.f32 0.0, %v2856
    %v2858 = vpop.f32.mrb[0].mxu0
    %v2859 = vpop.f32.mrb[0].mxu0
    %v2860 = vadd.f32 0.0, %v2859
    %v2861 = vpop.f32.mrb[0].mxu0
    %2862 = vmatprep.mubr.bf16.mxu0 %v2184
    %2863 = vmatmul.mubr.bf16.gmra.mrb[0].mxu0 %v2183
    %v2864 = vpop.f32.mrb[0].mxu0
    %v2865 = vadd.f32 0.0, %v2864
    %v2866 = vpop.f32.mrb[0].mxu0
    %v2867 = vpop.f32.mrb[0].mxu0
    %v2868 = vadd.f32 0.0, %v2867
    %v2869 = vpop.f32.mrb[0].mxu0
    %2870 = vmatprep.mubr.bf16.mxu0 %v2193
    %2871 = vmatmul.mubr.bf16.gmra.mrb[0].mxu0 %v2192
    %v2872 = vpop.f32.mrb[0].mxu0
    %v2873 = vadd.f32 0.0, %v2872
    %v2874 = vpop.f32.mrb[0].mxu0
    %v2875 = vpop.f32.mrb[0].mxu0
    %v2876 = vadd.f32 0.0, %v2875
    %v2877 = vpop.f32.mrb[0].mxu0
    %2878 = vmatprep.mubr.bf16.mxu0 %v2202
    %2879 = vmatmul.mubr.bf16.gmra.mrb[0].mxu0 %v2201
    %v2880 = vpop.f32.mrb[0].mxu0
    %v2881 = vadd.f32 0.0, %v2880
    %v2882 = vpop.f32.mrb[0].mxu0
    %v2883 = vpop.f32.mrb[0].mxu0
    %v2884 = vadd.f32 0.0, %v2883
    %v2885 = vpop.f32.mrb[0].mxu0
    %2886 = vmatprep.mubr.bf16.mxu0 %v2211
    %2887 = vmatmul.mubr.bf16.gmra.mrb[0].mxu0 %v2210
    %v2888 = vpop.f32.mrb[0].mxu0
    %v2889 = vadd.f32 0.0, %v2888
    %v2890 = vpop.f32.mrb[0].mxu0
    %v2891 = vpop.f32.mrb[0].mxu0
    %v2892 = vadd.f32 0.0, %v2891
    %v2893 = vpop.f32.mrb[0].mxu0
    %2894 = vmatprep.mubr.bf16.mxu0 %v2220
    %2895 = vmatmul.mubr.bf16.gmra.mrb[0].mxu0 %v2219
    %v2896 = vpop.f32.mrb[0].mxu0
    %v2897 = vadd.f32 0.0, %v2896
    %v2898 = vpop.f32.mrb[0].mxu0
    %v2899 = vpop.f32.mrb[0].mxu0
    %v2900 = vadd.f32 0.0, %v2899
    %v2901 = vpop.f32.mrb[0].mxu0
    %2902 = vmatprep.mubr.bf16.mxu0 %v2229
    %2903 = vmatmul.mubr.bf16.gmra.mrb[0].mxu0 %v2228
    %v2904 = vpop.f32.mrb[0].mxu0
    %v2905 = vadd.f32 0.0, %v2904
    %v2906 = vpop.f32.mrb[0].mxu0
    %v2907 = vpop.f32.mrb[0].mxu0
    %v2908 = vadd.f32 0.0, %v2907
    %v2909 = vpop.f32.mrb[0].mxu0
    %2910 = vmatprep.mubr.bf16.mxu0 %v2238
    %2911 = vmatmul.mubr.bf16.gmra.mrb[0].mxu0 %v2237
    %v2912 = vpop.f32.mrb[0].mxu0
    %v2913 = vadd.f32 0.0, %v2912
    %v2914 = vpop.f32.mrb[0].mxu0
    %v2915 = vpop.f32.mrb[0].mxu0
    %v2916 = vadd.f32 0.0, %v2915
    %v2917 = vpop.f32.mrb[0].mxu0
    %2918 = vdwg.mxu0
    %2919 = vmatprep.subr.bf16.mxu0 0
    %2920 = vmatpush1.bf16.msra.mxu0 %v2694
    %2921 = vmatprep.subr.bf16.mxu0 0
    %2922 = vmatpush1.bf16.msra.mxu0 %v2695
    %2923 = vmatprep.subr.bf16.mxu0 0
    %2924 = vmatpush1.bf16.msra.mxu0 %v2696
    %2925 = vmatprep.subr.bf16.mxu0 0
    %2926 = vmatpush1.bf16.msra.mxu0 %v2697
    %2927 = vmatprep.subr.bf16.mxu0 0
    %2928 = vmatpush1.bf16.msra.mxu0 %v2698
    %2929 = vmatprep.subr.bf16.mxu0 0
    %2930 = vmatpush1.bf16.msra.mxu0 %v2699
    %2931 = vmatprep.subr.bf16.mxu0 0
    %2932 = vmatpush1.bf16.msra.mxu0 %v2700
    %2933 = vmatprep.subr.bf16.mxu0 0
    %2934 = vmatpush1.bf16.msra.mxu0 %v2701
    %2935 = vmatprep.subr.bf16.mxu0 0
    %2936 = vmatpush1.bf16.msra.mxu0 %v2702
    %2937 = vmatprep.subr.bf16.mxu0 0
    %2938 = vmatpush1.bf16.msra.mxu0 %v2703
    %2939 = vmatprep.subr.bf16.mxu0 0
    %2940 = vmatpush1.bf16.msra.mxu0 %v2704
    %2941 = vmatprep.subr.bf16.mxu0 0
    %2942 = vmatpush1.bf16.msra.mxu0 %v2705
    %2943 = vmatprep.subr.bf16.mxu0 0
    %2944 = vmatpush1.bf16.msra.mxu0 %v2706
    %2945 = vmatprep.subr.bf16.mxu0 0
    %2946 = vmatpush1.bf16.msra.mxu0 %v2707
    %2947 = vmatprep.subr.bf16.mxu0 0
    %2948 = vmatpush1.bf16.msra.mxu0 %v2708
    %2949 = vmatprep.subr.bf16.mxu0 0
    %2950 = vmatpush1.bf16.msra.mxu0 %v2709
    %2951 = vmatprep.mubr.bf16.mxu0 %v2177
    %2952 = vmatmul.mubr.bf16.gmra.mrb[0].mxu0 %v2176
    %v2953 = vpop.f32.mrb[0].mxu0
    %v2954 = vadd.f32 %v2857, %v2953
    %v2955 = vpop.f32.mrb[0].mxu0
    %v2956 = vpop.f32.mrb[0].mxu0
    %v2957 = vadd.f32 %v2860, %v2956
    %v2958 = vpop.f32.mrb[0].mxu0
    %2959 = vmatprep.mubr.bf16.mxu0 %v2186
    %2960 = vmatmul.mubr.bf16.gmra.mrb[0].mxu0 %v2185
    %v2961 = vpop.f32.mrb[0].mxu0
    %v2962 = vadd.f32 %v2865, %v2961
    %v2963 = vpop.f32.mrb[0].mxu0
    %v2964 = vpop.f32.mrb[0].mxu0
    %v2965 = vadd.f32 %v2868, %v2964
    %v2966 = vpop.f32.mrb[0].mxu0
    %2967 = vmatprep.mubr.bf16.mxu0 %v2195
    %2968 = vmatmul.mubr.bf16.gmra.mrb[0].mxu0 %v2194
    %v2969 = vpop.f32.mrb[0].mxu0
    %v2970 = vadd.f32 %v2873, %v2969
    %v2971 = vpop.f32.mrb[0].mxu0
    %v2972 = vpop.f32.mrb[0].mxu0
    %v2973 = vadd.f32 %v2876, %v2972
    %v2974 = vpop.f32.mrb[0].mxu0
    %2975 = vmatprep.mubr.bf16.mxu0 %v2204
    %2976 = vmatmul.mubr.bf16.gmra.mrb[0].mxu0 %v2203
    %v2977 = vpop.f32.mrb[0].mxu0
    %v2978 = vadd.f32 %v2881, %v2977
    %v2979 = vpop.f32.mrb[0].mxu0
    %v2980 = vpop.f32.mrb[0].mxu0
    %v2981 = vadd.f32 %v2884, %v2980
    %v2982 = vpop.f32.mrb[0].mxu0
    %2983 = vmatprep.mubr.bf16.mxu0 %v2213
    %2984 = vmatmul.mubr.bf16.gmra.mrb[0].mxu0 %v2212
    %v2985 = vpop.f32.mrb[0].mxu0
    %v2986 = vadd.f32 %v2889, %v2985
    %v2987 = vpop.f32.mrb[0].mxu0
    %v2988 = vpop.f32.mrb[0].mxu0
    %v2989 = vadd.f32 %v2892, %v2988
    %v2990 = vpop.f32.mrb[0].mxu0
    %2991 = vmatprep.mubr.bf16.mxu0 %v2222
    %2992 = vmatmul.mubr.bf16.gmra.mrb[0].mxu0 %v2221
    %v2993 = vpop.f32.mrb[0].mxu0
    %v2994 = vadd.f32 %v2897, %v2993
    %v2995 = vpop.f32.mrb[0].mxu0
    %v2996 = vpop.f32.mrb[0].mxu0
    %v2997 = vadd.f32 %v2900, %v2996
    %v2998 = vpop.f32.mrb[0].mxu0
    %2999 = vmatprep.mubr.bf16.mxu0 %v2231
    %3000 = vmatmul.mubr.bf16.gmra.mrb[0].mxu0 %v2230
    %v3001 = vpop.f32.mrb[0].mxu0
    %v3002 = vadd.f32 %v2905, %v3001
    %v3003 = vpop.f32.mrb[0].mxu0
    %v3004 = vpop.f32.mrb[0].mxu0
    %v3005 = vadd.f32 %v2908, %v3004
    %v3006 = vpop.f32.mrb[0].mxu0
    %3007 = vmatprep.mubr.bf16.mxu0 %v2240
    %3008 = vmatmul.mubr.bf16.gmra.mrb[0].mxu0 %v2239
    %v3009 = vpop.f32.mrb[0].mxu0
    %v3010 = vadd.f32 %v2913, %v3009
    %v3011 = vpop.f32.mrb[0].mxu0
    %v3012 = vpop.f32.mrb[0].mxu0
    %v3013 = vadd.f32 %v2916, %v3012
    %v3014 = vpop.f32.mrb[0].mxu0
    %3015 = vdwg.mxu0
    %3016 = vmatprep.subr.bf16.mxu0 0
    %3017 = vmatpush1.bf16.msra.mxu0 %v2710
    %3018 = vmatprep.subr.bf16.mxu0 0
    %3019 = vmatpush1.bf16.msra.mxu0 %v2711
    %3020 = vmatprep.subr.bf16.mxu0 0
    %3021 = vmatpush1.bf16.msra.mxu0 %v2712
    %3022 = vmatprep.subr.bf16.mxu0 0
    %3023 = vmatpush1.bf16.msra.mxu0 %v2713
    %3024 = vmatprep.subr.bf16.mxu0 0
    %3025 = vmatpush1.bf16.msra.mxu0 %v2714
    %3026 = vmatprep.subr.bf16.mxu0 0
    %3027 = vmatpush1.bf16.msra.mxu0 %v2715
    %3028 = vmatprep.subr.bf16.mxu0 0
    %3029 = vmatpush1.bf16.msra.mxu0 %v2716
    %3030 = vmatprep.subr.bf16.mxu0 0
    %3031 = vmatpush1.bf16.msra.mxu0 %v2717
    %3032 = vmatprep.subr.bf16.mxu0 0
    %3033 = vmatpush1.bf16.msra.mxu0 %v2718
    %3034 = vmatprep.subr.bf16.mxu0 0
    %3035 = vmatpush1.bf16.msra.mxu0 %v2719
    %3036 = vmatprep.subr.bf16.mxu0 0
    %3037 = vmatpush1.bf16.msra.mxu0 %v2720
    %3038 = vmatprep.subr.bf16.mxu0 0
    %3039 = vmatpush1.bf16.msra.mxu0 %v2721
    %3040 = vmatprep.subr.bf16.mxu0 0
    %3041 = vmatpush1.bf16.msra.mxu0 %v2722
    %3042 = vmatprep.subr.bf16.mxu0 0
    %3043 = vmatpush1.bf16.msra.mxu0 %v2723
    %3044 = vmatprep.subr.bf16.mxu0 0
    %3045 = vmatpush1.bf16.msra.mxu0 %v2724
    %3046 = vmatprep.subr.bf16.mxu0 0
    %3047 = vmatpush1.bf16.msra.mxu0 %v2725
    %3048 = vmatprep.mubr.bf16.mxu0 %v2179
    %3049 = vmatmul.mubr.bf16.gmra.mrb[0].mxu0 %v2178
    %v3050 = vpop.f32.mrb[0].mxu0
    %v3051 = vadd.f32 %v2954, %v3050
    %v3052 = vpop.f32.mrb[0].mxu0
    %v3053 = vpop.f32.mrb[0].mxu0
    %v3054 = vadd.f32 %v2957, %v3053
    %v3055 = vpop.f32.mrb[0].mxu0
    %3056 = vmatprep.mubr.bf16.mxu0 %v2188
    %3057 = vmatmul.mubr.bf16.gmra.mrb[0].mxu0 %v2187
    %v3058 = vpop.f32.mrb[0].mxu0
    %v3059 = vadd.f32 %v2962, %v3058
    %v3060 = vpop.f32.mrb[0].mxu0
    %v3061 = vpop.f32.mrb[0].mxu0
    %v3062 = vadd.f32 %v2965, %v3061
    %v3063 = vpop.f32.mrb[0].mxu0
    %3064 = vmatprep.mubr.bf16.mxu0 %v2197
    %3065 = vmatmul.mubr.bf16.gmra.mrb[0].mxu0 %v2196
    %v3066 = vpop.f32.mrb[0].mxu0
    %v3067 = vadd.f32 %v2970, %v3066
    %v3068 = vpop.f32.mrb[0].mxu0
    %v3069 = vpop.f32.mrb[0].mxu0
    %v3070 = vadd.f32 %v2973, %v3069
    %v3071 = vpop.f32.mrb[0].mxu0
    %3072 = vmatprep.mubr.bf16.mxu0 %v2206
    %3073 = vmatmul.mubr.bf16.gmra.mrb[0].mxu0 %v2205
    %v3074 = vpop.f32.mrb[0].mxu0
    %v3075 = vadd.f32 %v2978, %v3074
    %v3076 = vpop.f32.mrb[0].mxu0
    %v3077 = vpop.f32.mrb[0].mxu0
    %v3078 = vadd.f32 %v2981, %v3077
    %v3079 = vpop.f32.mrb[0].mxu0
    %3080 = vmatprep.mubr.bf16.mxu0 %v2215
    %3081 = vmatmul.mubr.bf16.gmra.mrb[0].mxu0 %v2214
    %v3082 = vpop.f32.mrb[0].mxu0
    %v3083 = vadd.f32 %v2986, %v3082
    %v3084 = vpop.f32.mrb[0].mxu0
    %v3085 = vpop.f32.mrb[0].mxu0
    %v3086 = vadd.f32 %v2989, %v3085
    %v3087 = vpop.f32.mrb[0].mxu0
    %3088 = vmatprep.mubr.bf16.mxu0 %v2224
    %3089 = vmatmul.mubr.bf16.gmra.mrb[0].mxu0 %v2223
    %v3090 = vpop.f32.mrb[0].mxu0
    %v3091 = vadd.f32 %v2994, %v3090
    %v3092 = vpop.f32.mrb[0].mxu0
    %v3093 = vpop.f32.mrb[0].mxu0
    %v3094 = vadd.f32 %v2997, %v3093
    %v3095 = vpop.f32.mrb[0].mxu0
    %3096 = vmatprep.mubr.bf16.mxu0 %v2233
    %3097 = vmatmul.mubr.bf16.gmra.mrb[0].mxu0 %v2232
    %v3098 = vpop.f32.mrb[0].mxu0
    %v3099 = vadd.f32 %v3002, %v3098
    %v3100 = vpop.f32.mrb[0].mxu0
    %v3101 = vpop.f32.mrb[0].mxu0
    %v3102 = vadd.f32 %v3005, %v3101
    %v3103 = vpop.f32.mrb[0].mxu0
    %3104 = vmatprep.mubr.bf16.mxu0 %v2242
    %3105 = vmatmul.mubr.bf16.gmra.mrb[0].mxu0 %v2241
    %v3106 = vpop.f32.mrb[0].mxu0
    %v3107 = vadd.f32 %v3010, %v3106
    %v3108 = vpop.f32.mrb[0].mxu0
    %v3109 = vpop.f32.mrb[0].mxu0
    %v3110 = vadd.f32 %v3013, %v3109
    %v3111 = vpop.f32.mrb[0].mxu0
    %3112 = vdwg.mxu0
    %3113 = vmatprep.subr.bf16.mxu0 0
    %3114 = vmatpush1.bf16.msra.mxu0 %v2726
    %3115 = vmatprep.subr.bf16.mxu0 0
    %3116 = vmatpush1.bf16.msra.mxu0 %v2727
    %3117 = vmatprep.subr.bf16.mxu0 0
    %3118 = vmatpush1.bf16.msra.mxu0 %v2728
    %3119 = vmatprep.subr.bf16.mxu0 0
    %3120 = vmatpush1.bf16.msra.mxu0 %v2729
    %3121 = vmatprep.subr.bf16.mxu0 0
    %3122 = vmatpush1.bf16.msra.mxu0 %v2730
    %3123 = vmatprep.subr.bf16.mxu0 0
    %3124 = vmatpush1.bf16.msra.mxu0 %v2731
    %3125 = vmatprep.subr.bf16.mxu0 0
    %3126 = vmatpush1.bf16.msra.mxu0 %v2732
    %3127 = vmatprep.subr.bf16.mxu0 0
    %3128 = vmatpush1.bf16.msra.mxu0 %v2733
    %3129 = vmatprep.subr.bf16.mxu0 0
    %3130 = vmatpush1.bf16.msra.mxu0 %v2734
    %3131 = vmatprep.subr.bf16.mxu0 0
    %3132 = vmatpush1.bf16.msra.mxu0 %v2735
    %3133 = vmatprep.subr.bf16.mxu0 0
    %3134 = vmatpush1.bf16.msra.mxu0 %v2736
    %3135 = vmatprep.subr.bf16.mxu0 0
    %3136 = vmatpush1.bf16.msra.mxu0 %v2737
    %3137 = vmatprep.subr.bf16.mxu0 0
    %3138 = vmatpush1.bf16.msra.mxu0 %v2738
    %3139 = vmatprep.subr.bf16.mxu0 0
    %3140 = vmatpush1.bf16.msra.mxu0 %v2739
    %3141 = vmatprep.subr.bf16.mxu0 0
    %3142 = vmatpush1.bf16.msra.mxu0 %v2740
    %3143 = vmatprep.subr.bf16.mxu0 0
    %3144 = vmatpush1.bf16.msra.mxu0 %v2741
    %3145 = vmatprep.mubr.bf16.mxu0 %v2181
    %3146 = vmatmul.mubr.bf16.gmra.mrb[0].mxu0 %v2180
    %v3147 = vpop.f32.mrb[0].mxu0
    %v3148 = vadd.f32 %v3051, %v3147
    %v3149 = vpop.f32.mrb[0].mxu0
    %v3150 = vpop.f32.mrb[0].mxu0
    %v3151 = vadd.f32 %v3054, %v3150
    %v3152 = vpop.f32.mrb[0].mxu0
    %3153 = vmatprep.mubr.bf16.mxu0 %v2190
    %3154 = vmatmul.mubr.bf16.gmra.mrb[0].mxu0 %v2189
    %v3155 = vpop.f32.mrb[0].mxu0
    %v3156 = vadd.f32 %v3059, %v3155
    %v3157 = vpop.f32.mrb[0].mxu0
    %v3158 = vpop.f32.mrb[0].mxu0
    %v3159 = vadd.f32 %v3062, %v3158
    %v3160 = vpop.f32.mrb[0].mxu0
    %3161 = vmatprep.mubr.bf16.mxu0 %v2199
    %3162 = vmatmul.mubr.bf16.gmra.mrb[0].mxu0 %v2198
    %v3163 = vpop.f32.mrb[0].mxu0
    %v3164 = vadd.f32 %v3067, %v3163
    %v3165 = vpop.f32.mrb[0].mxu0
    %v3166 = vpop.f32.mrb[0].mxu0
    %v3167 = vadd.f32 %v3070, %v3166
    %v3168 = vpop.f32.mrb[0].mxu0
    %3169 = vmatprep.mubr.bf16.mxu0 %v2208
    %3170 = vmatmul.mubr.bf16.gmra.mrb[0].mxu0 %v2207
    %v3171 = vpop.f32.mrb[0].mxu0
    %v3172 = vadd.f32 %v3075, %v3171
    %v3173 = vpop.f32.mrb[0].mxu0
    %v3174 = vpop.f32.mrb[0].mxu0
    %v3175 = vadd.f32 %v3078, %v3174
    %v3176 = vpop.f32.mrb[0].mxu0
    %3177 = vmatprep.mubr.bf16.mxu0 %v2217
    %3178 = vmatmul.mubr.bf16.gmra.mrb[0].mxu0 %v2216
    %v3179 = vpop.f32.mrb[0].mxu0
    %v3180 = vadd.f32 %v3083, %v3179
    %v3181 = vpop.f32.mrb[0].mxu0
    %v3182 = vpop.f32.mrb[0].mxu0
    %v3183 = vadd.f32 %v3086, %v3182
    %v3184 = vpop.f32.mrb[0].mxu0
    %3185 = vmatprep.mubr.bf16.mxu0 %v2226
    %3186 = vmatmul.mubr.bf16.gmra.mrb[0].mxu0 %v2225
    %v3187 = vpop.f32.mrb[0].mxu0
    %v3188 = vadd.f32 %v3091, %v3187
    %v3189 = vpop.f32.mrb[0].mxu0
    %v3190 = vpop.f32.mrb[0].mxu0
    %v3191 = vadd.f32 %v3094, %v3190
    %v3192 = vpop.f32.mrb[0].mxu0
    %3193 = vmatprep.mubr.bf16.mxu0 %v2235
    %3194 = vmatmul.mubr.bf16.gmra.mrb[0].mxu0 %v2234
    %v3195 = vpop.f32.mrb[0].mxu0
    %v3196 = vadd.f32 %v3099, %v3195
    %v3197 = vpop.f32.mrb[0].mxu0
    %v3198 = vpop.f32.mrb[0].mxu0
    %v3199 = vadd.f32 %v3102, %v3198
    %v3200 = vpop.f32.mrb[0].mxu0
    %3201 = vmatprep.mubr.bf16.mxu0 %v2244
    %3202 = vmatmul.mubr.bf16.gmra.mrb[0].mxu0 %v2243
    %v3203 = vpop.f32.mrb[0].mxu0
    %v3204 = vadd.f32 %v3107, %v3203
    %v3205 = vpop.f32.mrb[0].mxu0
    %v3206 = vpop.f32.mrb[0].mxu0
    %v3207 = vadd.f32 %v3110, %v3206
    %v3208 = vpop.f32.mrb[0].mxu0
    %3209 = vdwg.mxu0
    %3210 = vmatprep.subr.bf16.mxu0 0
    %3211 = vmatpush1.bf16.msra.mxu0 %v2742
    %3212 = vmatprep.subr.bf16.mxu0 0
    %3213 = vmatpush1.bf16.msra.mxu0 %v2743
    %3214 = vmatprep.subr.bf16.mxu0 0
    %3215 = vmatpush1.bf16.msra.mxu0 %v2744
    %3216 = vmatprep.subr.bf16.mxu0 0
    %3217 = vmatpush1.bf16.msra.mxu0 %v2745
    %3218 = vmatprep.subr.bf16.mxu0 0
    %3219 = vmatpush1.bf16.msra.mxu0 %v2746
    %3220 = vmatprep.subr.bf16.mxu0 0
    %3221 = vmatpush1.bf16.msra.mxu0 %v2747
    %3222 = vmatprep.subr.bf16.mxu0 0
    %3223 = vmatpush1.bf16.msra.mxu0 %v2748
    %3224 = vmatprep.subr.bf16.mxu0 0
    %3225 = vmatpush1.bf16.msra.mxu0 %v2749
    %3226 = vmatprep.subr.bf16.mxu0 0
    %3227 = vmatpush1.bf16.msra.mxu0 0
    %3228 = vmatprep.subr.bf16.mxu0 0
    %3229 = vmatpush1.bf16.msra.mxu0 0
    %3230 = vmatprep.subr.bf16.mxu0 0
    %3231 = vmatpush1.bf16.msra.mxu0 0
    %3232 = vmatprep.subr.bf16.mxu0 0
    %3233 = vmatpush1.bf16.msra.mxu0 0
    %3234 = vmatprep.subr.bf16.mxu0 0
    %3235 = vmatpush1.bf16.msra.mxu0 0
    %3236 = vmatprep.subr.bf16.mxu0 0
    %3237 = vmatpush1.bf16.msra.mxu0 0
    %3238 = vmatprep.subr.bf16.mxu0 0
    %3239 = vmatpush1.bf16.msra.mxu0 0
    %3240 = vmatprep.subr.bf16.mxu0 0
    %3241 = vmatpush1.bf16.msra.mxu0 0
    %3242 = vmatprep.mubr.bf16.mxu0 0
    %3243 = vmatmul.mubr.bf16.gmra.mrb[0].mxu0 %v2182
    %v3244 = vpop.f32.mrb[0].mxu0
    %v3245 = vadd.f32 %v3148, %v3244
    %v3246 = vpop.f32.mrb[0].mxu0
    %v3247 = vpop.f32.mrb[0].mxu0
    %v3248 = vadd.f32 %v3151, %v3247
    %v3249 = vpop.f32.mrb[0].mxu0
    %3250 = vmatprep.mubr.bf16.mxu0 0
    %3251 = vmatmul.mubr.bf16.gmra.mrb[0].mxu0 %v2191
    %v3252 = vpop.f32.mrb[0].mxu0
    %v3253 = vadd.f32 %v3156, %v3252
    %v3254 = vpop.f32.mrb[0].mxu0
    %v3255 = vpop.f32.mrb[0].mxu0
    %v3256 = vadd.f32 %v3159, %v3255
    %v3257 = vpop.f32.mrb[0].mxu0
    %3258 = vmatprep.mubr.bf16.mxu0 0
    %3259 = vmatmul.mubr.bf16.gmra.mrb[0].mxu0 %v2200
    %v3260 = vpop.f32.mrb[0].mxu0
    %v3261 = vadd.f32 %v3164, %v3260
    %v3262 = vpop.f32.mrb[0].mxu0
    %v3263 = vpop.f32.mrb[0].mxu0
    %v3264 = vadd.f32 %v3167, %v3263
    %v3265 = vpop.f32.mrb[0].mxu0
    %3266 = vmatprep.mubr.bf16.mxu0 0
    %3267 = vmatmul.mubr.bf16.gmra.mrb[0].mxu0 %v2209
    %v3268 = vpop.f32.mrb[0].mxu0
    %v3269 = vadd.f32 %v3172, %v3268
    %v3270 = vpop.f32.mrb[0].mxu0
    %v3271 = vpop.f32.mrb[0].mxu0
    %v3272 = vadd.f32 %v3175, %v3271
    %v3273 = vpop.f32.mrb[0].mxu0
    %3274 = vmatprep.mubr.bf16.mxu0 0
    %3275 = vmatmul.mubr.bf16.gmra.mrb[0].mxu0 %v2218
    %v3276 = vpop.f32.mrb[0].mxu0
    %v3277 = vadd.f32 %v3180, %v3276
    %v3278 = vpop.f32.mrb[0].mxu0
    %v3279 = vpop.f32.mrb[0].mxu0
    %v3280 = vadd.f32 %v3183, %v3279
    %v3281 = vpop.f32.mrb[0].mxu0
    %3282 = vmatprep.mubr.bf16.mxu0 0
    %3283 = vmatmul.mubr.bf16.gmra.mrb[0].mxu0 %v2227
    %v3284 = vpop.f32.mrb[0].mxu0
    %v3285 = vadd.f32 %v3188, %v3284
    %v3286 = vpop.f32.mrb[0].mxu0
    %v3287 = vpop.f32.mrb[0].mxu0
    %v3288 = vadd.f32 %v3191, %v3287
    %v3289 = vpop.f32.mrb[0].mxu0
    %3290 = vmatprep.mubr.bf16.mxu0 0
    %3291 = vmatmul.mubr.bf16.gmra.mrb[0].mxu0 %v2236
    %v3292 = vpop.f32.mrb[0].mxu0
    %v3293 = vadd.f32 %v3196, %v3292
    %v3294 = vpop.f32.mrb[0].mxu0
    %v3295 = vpop.f32.mrb[0].mxu0
    %v3296 = vadd.f32 %v3199, %v3295
    %v3297 = vpop.f32.mrb[0].mxu0
    %3298 = vmatprep.mubr.bf16.mxu0 0
    %3299 = vmatmul.mubr.bf16.gmra.mrb[0].mxu0 %v2245
    %v3300 = vpop.f32.mrb[0].mxu0
    %v3301 = vadd.f32 %v3204, %v3300
    %v3302 = vpop.f32.mrb[0].mxu0
    %v3303 = vpop.f32.mrb[0].mxu0
    %v3304 = vadd.f32 %v3207, %v3303
    %v3305 = vpop.f32.mrb[0].mxu0
    %3306 = vdwg.mxu0
    %v3307 = vadd.f32 %v3245, %v3248
    %v3308 = vadd.f32 %v3307, %v3253
    %v3309 = vadd.f32 %v3308, %v3256
    %v3310 = vadd.f32 %v3309, %v3261
    %v3311 = vadd.f32 %v3310, %v3264
    %v3312 = vadd.f32 %v3311, %v3269
    %v3313 = vadd.f32 %v3312, %v3272
    %v3314 = vadd.f32 %v3313, %v3277
    %v3315 = vadd.f32 %v3314, %v3280
    %v3316 = vadd.f32 %v3315, %v3285
    %v3317 = vadd.f32 %v3316, %v3288
    %v3318 = vadd.f32 %v3317, %v3293
    %v3319 = vadd.f32 %v3318, %v3296
    %v3320 = vadd.f32 %v3319, %v3301
    %v3321 = vadd.f32 %v3320, %v3304
    %v3322 = vrot.slane %v3321, 4
    %v3323 = vadd.f32 %v3321, %v3322
    %v3324 = vrot.slane %v3323, 2
    %v3325 = vadd.f32 %v3323, %v3324
    %v3326 = vrot.slane %v3325, 1
    %v3327 = vadd.f32 %v3325, %v3326
    %v3328 = vmul.f32 %v3327, %v1747
    %v3329 = vsub.f32 %v3245, %v3328
    %v3330 = vsub.f32 %v3248, %v3328
    %v3331 = vsub.f32 %v3253, %v3328
    %v3332 = vsub.f32 %v3256, %v3328
    %v3333 = vsub.f32 %v3261, %v3328
    %v3334 = vsub.f32 %v3264, %v3328
    %v3335 = vsub.f32 %v3269, %v3328
    %v3336 = vsub.f32 %v3272, %v3328
    %v3337 = vsub.f32 %v3277, %v3328
    %v3338 = vsub.f32 %v3280, %v3328
    %v3339 = vsub.f32 %v3285, %v3328
    %v3340 = vsub.f32 %v3288, %v3328
    %v3341 = vsub.f32 %v3293, %v3328
    %v3342 = vsub.f32 %v3296, %v3328
    %v3343 = vsub.f32 %v3301, %v3328
    %v3344 = vsub.f32 %v3304, %v3328
    %v3345 = vmul.f32 %v3329, %v3329
    %v3346 = vmul.f32 %v3330, %v3330
    %v3347 = vmul.f32 %v3331, %v3331
    %v3348 = vmul.f32 %v3332, %v3332
    %v3349 = vmul.f32 %v3333, %v3333
    %v3350 = vmul.f32 %v3334, %v3334
    %v3351 = vmul.f32 %v3335, %v3335
    %v3352 = vmul.f32 %v3336, %v3336
    %v3353 = vmul.f32 %v3337, %v3337
    %v3354 = vmul.f32 %v3338, %v3338
    %v3355 = vmul.f32 %v3339, %v3339
    %v3356 = vmul.f32 %v3340, %v3340
    %v3357 = vmul.f32 %v3341, %v3341
    %v3358 = vmul.f32 %v3342, %v3342
    %v3359 = vmul.f32 %v3343, %v3343
    %v3360 = vmul.f32 %v3344, %v3344
    %v3361 = vadd.f32 %v3345, %v3346
    %v3362 = vadd.f32 %v3361, %v3347
    %v3363 = vadd.f32 %v3362, %v3348
    %v3364 = vadd.f32 %v3363, %v3349
    %v3365 = vadd.f32 %v3364, %v3350
    %v3366 = vadd.f32 %v3365, %v3351
    %v3367 = vadd.f32 %v3366, %v3352
    %v3368 = vadd.f32 %v3367, %v3353
    %v3369 = vadd.f32 %v3368, %v3354
    %v3370 = vadd.f32 %v3369, %v3355
    %v3371 = vadd.f32 %v3370, %v3356
    %v3372 = vadd.f32 %v3371, %v3357
    %v3373 = vadd.f32 %v3372, %v3358
    %v3374 = vadd.f32 %v3373, %v3359
    %v3375 = vadd.f32 %v3374, %v3360
    %v3376 = vrot.slane %v3375, 4
    %v3377 = vadd.f32 %v3375, %v3376
    %v3378 = vrot.slane %v3377, 2
    %v3379 = vadd.f32 %v3377, %v3378
    %v3380 = vrot.slane %v3379, 1
    %v3381 = vadd.f32 %v3379, %v3380
    %v3382 = vmul.f32 %v3381, %v1747
    %v3383 = vld [vmem:[%s5] sm:$0x1]
    %v3384 = vadd.f32 %v3382, 1e-05
    %v3385 = vrsqrt.pop %v3384
    %v3386 = vmul.f32 %v3383, %v3385
    %v3387 = vld [vmem:[%s6] sm:$0x1]
    %v3388 = vmul.f32 %v3328, %v3386
    %v3389 = vsub.f32 %v3387, %v3388
    %v3391 = vlaneseq
    %v3392 = vshrl.u32 %v3391, 7
    %v3393 = vsub.s32 0, %v3392
    %v3394 = vrot.slane %v3386, %v3393
    %v3396 = vmul.f32 %v3245, %v3394
    %v3397 = vmul.f32 %v3248, %v3394
    %v3398 = vmul.f32 %v3253, %v3394
    %v3399 = vmul.f32 %v3256, %v3394
    %v3400 = vmul.f32 %v3261, %v3394
    %v3401 = vmul.f32 %v3264, %v3394
    %v3402 = vmul.f32 %v3269, %v3394
    %v3403 = vmul.f32 %v3272, %v3394
    %v3404 = vmul.f32 %v3277, %v3394
    %v3405 = vmul.f32 %v3280, %v3394
    %v3406 = vmul.f32 %v3285, %v3394
    %v3407 = vmul.f32 %v3288, %v3394
    %v3408 = vmul.f32 %v3293, %v3394
    %v3409 = vmul.f32 %v3296, %v3394
    %v3410 = vmul.f32 %v3301, %v3394
    %v3411 = vmul.f32 %v3304, %v3394
    %v3413 = vlaneseq
    %v3414 = vshrl.u32 %v3413, 7
    %v3415 = vsub.s32 0, %v3414
    %v3416 = vrot.slane %v3389, %v3415
    %v3418 = vadd.f32 %v3396, %v3416
    %v3419 = vadd.f32 %v3397, %v3416
    %v3420 = vadd.f32 %v3398, %v3416
    %v3421 = vadd.f32 %v3399, %v3416
    %v3422 = vadd.f32 %v3400, %v3416
    %v3423 = vadd.f32 %v3401, %v3416
    %v3424 = vadd.f32 %v3402, %v3416
    %v3425 = vadd.f32 %v3403, %v3416
    %v3426 = vadd.f32 %v3404, %v3416
    %v3427 = vadd.f32 %v3405, %v3416
    %v3428 = vadd.f32 %v3406, %v3416
    %v3429 = vadd.f32 %v3407, %v3416
    %v3430 = vadd.f32 %v3408, %v3416
    %v3431 = vadd.f32 %v3409, %v3416
    %v3432 = vadd.f32 %v3410, %v3416
    %v3433 = vadd.f32 %v3411, %v3416
    %v3434 = vmax.f32 %v3418, 0.0
    %v3435 = vmax.f32 %v3419, 0.0
    %v3436 = vmax.f32 %v3420, 0.0
    %v3437 = vmax.f32 %v3421, 0.0
    %v3438 = vmax.f32 %v3422, 0.0
    %v3439 = vmax.f32 %v3423, 0.0
    %v3440 = vmax.f32 %v3424, 0.0
    %v3441 = vmax.f32 %v3425, 0.0
    %v3442 = vmax.f32 %v3426, 0.0
    %v3443 = vmax.f32 %v3427, 0.0
    %v3444 = vmax.f32 %v3428, 0.0
    %v3445 = vmax.f32 %v3429, 0.0
    %v3446 = vmax.f32 %v3430, 0.0
    %v3447 = vmax.f32 %v3431, 0.0
    %v3448 = vmax.f32 %v3432, 0.0
    %v3449 = vmax.f32 %v3433, 0.0
    %3450 = vst [vmem:[#allocation10] sm:$0xff] %v3434
    %3451 = vst [vmem:[#allocation10 + $0x8] sm:$0xff] %v3435
    %3452 = vst [vmem:[#allocation10 + $0x10] sm:$0xff] %v3436
    %3453 = vst [vmem:[#allocation10 + $0x18] sm:$0xff] %v3437
    %3454 = vst [vmem:[#allocation10 + $0x20] sm:$0xff] %v3438
    %3455 = vst [vmem:[#allocation10 + $0x28] sm:$0xff] %v3439
    %3456 = vst [vmem:[#allocation10 + $0x30] sm:$0xff] %v3440
    %3457 = vst [vmem:[#allocation10 + $0x38] sm:$0xff] %v3441
    %3458 = vst [vmem:[#allocation10 + $0x40] sm:$0xff] %v3442
    %3459 = vst [vmem:[#allocation10 + $0x48] sm:$0xff] %v3443
    %3460 = vst [vmem:[#allocation10 + $0x50] sm:$0xff] %v3444
    %3461 = vst [vmem:[#allocation10 + $0x58] sm:$0xff] %v3445
    %3462 = vst [vmem:[#allocation10 + $0x60] sm:$0xff] %v3446
    %3463 = vst [vmem:[#allocation10 + $0x68] sm:$0xff] %v3447
    %3464 = vst [vmem:[#allocation10 + $0x70] sm:$0xff] %v3448
    %3465 = vst [vmem:[#allocation10 + $0x78] sm:$0xff] %v3449
    // Predicated region
    $region42: #{tpu_custom_call.1} parent=1 // pred_check
      _
    $region43: #{tpu_custom_call.1} parent=1 // pred_check_branch
      %3467 = sbr.rel (0) target = $region45
    $region44: #{tpu_custom_call.1} parent=1 // pred_region
      %s3469 = ssub.s32 2048, 2048
      %3470 = vsyncadd [#allocation6], %s3469
      %s3471 = sshll.u32 [#allocation10], 4
      %s3472 = int_to_ptr.vmem [resolvable:$true] %s3471
      %3477 = dma.vmem_to_hbm [thread:$0]  %s3472, 2048, %s7, [#allocation6], 128, 128, 8
    $region45: #{tpu_custom_call.1} parent=1 // pred_fallthru
      _
    // Predicated region
    $region46: #{tpu_custom_call.1} parent=1 // pred_check
      _
    $region47: #{tpu_custom_call.1} parent=1 // pred_check_branch
      %3479 = sbr.rel (0) target = $region49
    $region48: #{tpu_custom_call.1} parent=1 // pred_region
      %3480 = dma.done [#allocation6], 2048
    $region49: #{tpu_custom_call.1} parent=1 // pred_fallthru
      _
    %3481 = vsyncpa [#allocation5], 1
    %3482 = vsyncpa [#allocation8], 1
    %3483 = vsyncpa [#allocation6], 1

</llo_original>
